<compile_context>
chip_gen: v6e
topology: v6e:2x2x1
jax: 0.10.0
libtpu: 0.0.40
codegen_flags: <defaults>
</compile_context>

<pallas_src>
import functools

import jax
import jax.numpy as jnp
from jax.experimental import pallas as pl
from jax.experimental.pallas import tpu as pltpu

raw_text = ('We are about to study the idea of a computational process.\n'
            'Computational processes are abstract beings that inhabit computers.\n'
            'As they evolve, processes manipulate other abstract things called data.\n'
            'The evolution of a process is directed by a pattern of rules\n'
            'called a program. People create programs to direct processes. In effect,\n'
            'we conjure the spirits of the computer with our spells.').split()

vocab = sorted(set(raw_text))
VOCAB_SIZE = len(vocab)

EMB_SIZE = 16      # embedding_size
HIDDEN_SIZE = 32   # hidden_size
CONTEXT = 4        # the model flattens 4 context-word embeddings (4 * E input)


def _round_up(x, m):
    return (x + m - 1) // m * m


@functools.lru_cache(maxsize=1)
def _device_kind():
    try:
        return jax.devices()[0].device_kind.lower()
    except Exception:
        return ""


def _is_multi_tensorcore():
    # v7x is the only listed generation with 2 TensorCores per chip.
    return "v7" in _device_kind()


def cbow_kernel(idx_ref,            # (Bt, CONTEXT) int32
                emb_ref,            # (v_sub, E) bf16 embedding table
                w1_ref, b1_ref,     # (4E, H) bf16, (1, H) f32
                w2_ref, b2_ref,     # (H, V_lane) bf16, (1, V_lane) f32
                out_ref):           # (Bt, V_lane) f32
    bt = idx_ref.shape[0]
    v_sub = emb_ref.shape[0]

    emb = emb_ref[...]
    # Per-position one-hot over only v_sub columns, built directly in bf16.
    # Each dot is an exact row gather (one-hot x bf16 table, f32 accumulate),
    # so concatenating the 4 results reproduces .view(1, -1) exactly.
    col = jax.lax.broadcasted_iota(jnp.int32, (bt, v_sub), 1)
    xs = []
    for i in range(CONTEXT):
        onehot_i = (col == idx_ref[:, i:i + 1]).astype(emb.dtype)      # (bt, v_sub) bf16
        xs.append(jnp.dot(onehot_i, emb,
                          preferred_element_type=jnp.float32))         # (bt, E) exact gather
    x = jnp.concatenate(xs, axis=1)                                     # (bt, 4E) f32

    h = jnp.dot(x.astype(w1_ref.dtype), w1_ref[...],
                preferred_element_type=jnp.float32) + b1_ref[...]
    h = jnp.maximum(h, 0.0)                                             # ReLU in f32
    logits = jnp.dot(h.astype(w2_ref.dtype), w2_ref[...],
                     preferred_element_type=jnp.float32) + b2_ref[...]
    out_ref[...] = logits.astype(out_ref.dtype)


def cbow_forward(indices, emb, w1, b1, w2, b2, *, block_b=None, trim=True):
    """indices: (B, CONTEXT) int32 -> (B, V) f32 logits (trim=True)."""
    B, ctx = indices.shape
    V, E = emb.shape
    H = w1.shape[1]
    assert ctx == CONTEXT and w1.shape[0] == CONTEXT * E
    assert w2.shape == (H, V)

    if block_b is None:
        # ~512-row tiles amortize the ~0.35us/grid-step overhead; the per-tile
        # working set is far below any generation's VMEM limit.
        block_b = min(512, _round_up(B, 8))
        # On v7x keep >= 2 grid steps so the "parallel" batch axis actually
        # shards across both TensorCores.
        if (_is_multi_tensorcore() and _round_up(B, block_b) // block_b < 2
                and block_b % 16 == 0):
            block_b //= 2

    b_pad = _round_up(B, block_b)
    v_sub = _round_up(V, 8)          # sublane-padded vocab (embedding rows)
    v_lane = _round_up(V, 128)       # lane-padded vocab (logit columns / stores)

    idx_p = jnp.pad(indices.astype(jnp.int32), ((0, b_pad - B), (0, 0)))
    emb_p = jnp.pad(emb, ((0, v_sub - V), (0, 0)))
    w2_p = jnp.pad(w2, ((0, 0), (0, v_lane - V)))
    b2_p = jnp.pad(b2, ((0, 0), (0, v_lane - V)))

    flops = 2 * b_pad * (CONTEXT * v_sub * E + CONTEXT * E * H + H * v_lane)
    bytes_accessed = (idx_p.size * 4 + b_pad * v_lane * 4
                      + emb_p.size * 2 + w1.size * 2 + w2_p.size * 2
                      + b1.size * 4 + b2_p.size * 4)

    out = pl.pallas_call(
        cbow_kernel,
        out_shape=jax.ShapeDtypeStruct((b_pad, v_lane), jnp.float32),
        grid=(b_pad // block_b,),
        in_specs=[
            pl.BlockSpec((block_b, CONTEXT), lambda b: (b, 0)),
            # Weights: constant index_maps -> stay VMEM-resident across tiles.
            pl.BlockSpec((v_sub, E), lambda b: (0, 0)),
            pl.BlockSpec((CONTEXT * E, H), lambda b: (0, 0)),
            pl.BlockSpec((1, H), lambda b: (0, 0)),
            pl.BlockSpec((H, v_lane), lambda b: (0, 0)),
            pl.BlockSpec((1, v_lane), lambda b: (0, 0)),
        ],
        out_specs=pl.BlockSpec((block_b, v_lane), lambda b: (b, 0)),
        compiler_params=pltpu.CompilerParams(
            dimension_semantics=("parallel",)),
        cost_estimate=pl.CostEstimate(flops=flops, transcendentals=0,
                                      bytes_accessed=bytes_accessed),
    )(idx_p, emb_p, w1, b1, w2_p, b2_p)

    if trim:
        # NOTE: downstream consumers (e.g. cross-entropy) can take the padded
        # (b_pad, 128) buffer (trim=False) and mask columns >= V to skip this
        # extra slice pass over the output.
        return out[:B, :V]
    return out


def reference_forward(indices, emb, w1, b1, w2, b2):
    B = indices.shape[0]
    x = emb[indices].reshape(B, -1)                               # (B, 4E) bf16
    h = jnp.maximum(jnp.dot(x, w1, preferred_element_type=jnp.float32) + b1, 0.0)
    return jnp.dot(h.astype(w2.dtype), w2, preferred_element_type=jnp.float32) + b2


if __name__ == "__main__":
    key = jax.random.PRNGKey(0)
    k_emb, k_w1, k_b1, k_w2, k_b2, k_idx = jax.random.split(key, 6)

    # nn.Embedding / nn.Linear-shaped params; matmul weights stored as
    # (in_features, out_features), cast to bf16 (MXU operands); biases in f32.
    emb = (jax.random.normal(k_emb, (VOCAB_SIZE, EMB_SIZE), jnp.float32) * 0.1
           ).astype(jnp.bfloat16)
    w1 = (jax.random.normal(k_w1, (CONTEXT * EMB_SIZE, HIDDEN_SIZE), jnp.float32) * 0.1
          ).astype(jnp.bfloat16)
    b1 = jax.random.normal(k_b1, (1, HIDDEN_SIZE), jnp.float32) * 0.1
    w2 = (jax.random.normal(k_w2, (HIDDEN_SIZE, VOCAB_SIZE), jnp.float32) * 0.1
          ).astype(jnp.bfloat16)
    b2 = jax.random.normal(k_b2, (1, VOCAB_SIZE), jnp.float32) * 0.1

    # Batch of context windows (each row = 4 context-word indices).
    B = 512
    indices = jax.random.randint(k_idx, (B, CONTEXT), 0, VOCAB_SIZE, dtype=jnp.int32)

    out = cbow_forward(indices, emb, w1, b1, w2, b2)
    out = jax.block_until_ready(out)

    ref = reference_forward(indices, emb, w1, b1, w2, b2)
    assert out.shape == (B, VOCAB_SIZE)
    # bf16 matmul operands: the hidden activation's bf16 rounding can differ by
    # one ulp between the MXU kernel and the XLA reference near rounding
    # boundaries, hence the slightly loose tolerance.
    assert jnp.allclose(out, ref, atol=2e-3, rtol=2e-3), "mismatch vs reference"

    print("KERNEL_OK")
</pallas_src>

<mosaic_0001>
module attributes {stable_mosaic.version = 11 : i64} {
  func.func @cbow_kernel(%arg0: i32, %arg1: memref<512x4xi32, #tpu.memory_space<vmem>>, %arg2: memref<56x16xbf16, #tpu.memory_space<vmem>>, %arg3: memref<64x32xbf16, #tpu.memory_space<vmem>>, %arg4: memref<1x32xf32, #tpu.memory_space<vmem>>, %arg5: memref<32x128xbf16, #tpu.memory_space<vmem>>, %arg6: memref<1x128xf32, #tpu.memory_space<vmem>>, %arg7: memref<512x128xf32, #tpu.memory_space<vmem>>) attributes {dimension_semantics = [#tpu.dimension_semantics<parallel>], iteration_bounds = array<i64: 1>, scalar_prefetch = 0 : i64, scratch_operands = 0 : i64, tpu.core_type = #tpu.core_type<tc>, window_params = [{transform_indices = @transform_0, window_bounds = array<i64: 512, 4>}, {pipeline_mode = #tpu.pipeline_mode<synchronous>, transform_indices = @transform_1, window_bounds = array<i64: 56, 16>}, {pipeline_mode = #tpu.pipeline_mode<synchronous>, transform_indices = @transform_2, window_bounds = array<i64: 64, 32>}, {pipeline_mode = #tpu.pipeline_mode<synchronous>, transform_indices = @transform_3, window_bounds = array<i64: 1, 32>}, {pipeline_mode = #tpu.pipeline_mode<synchronous>, transform_indices = @transform_4, window_bounds = array<i64: 32, 128>}, {pipeline_mode = #tpu.pipeline_mode<synchronous>, transform_indices = @transform_5, window_bounds = array<i64: 1, 128>}, {transform_indices = @transform_6, window_bounds = array<i64: 512, 128>}]} {
    %c0 = arith.constant 0 : index
    %c0_0 = arith.constant 0 : index
    %0 = vector.load %arg2[%c0, %c0_0] : memref<56x16xbf16, #tpu.memory_space<vmem>>, vector<56x16xbf16>
    %1 = tpu.iota {dimensions = array<i32: 1>} : vector<512x56xi32>
    %c0_1 = arith.constant 0 : index
    %c0_2 = arith.constant 0 : index
    %2 = vector.load %arg1[%c0_1, %c0_2] : memref<512x4xi32, #tpu.memory_space<vmem>>, vector<512x1xi32>
    %3 = vector.broadcast %2 : vector<512x1xi32> to vector<512x56xi32>
    %4 = arith.cmpi eq, %1, %3 : vector<512x56xi32>
    %5 = arith.extui %4 : vector<512x56xi1> to vector<512x56xi32>
    %6 = arith.sitofp %5 : vector<512x56xi32> to vector<512x56xf32>
    %7 = arith.truncf %6 : vector<512x56xf32> to vector<512x56xbf16>
    %cst = arith.constant dense<0.000000e+00> : vector<512x16xf32>
    %8 = tpu.matmul %7, %0, %cst {dimension_numbers = #tpu.dot_dimension_numbers<[1], [0], [0], [1], [0, 0, 1, 1], [], []>} : vector<512x56xbf16>, vector<56x16xbf16>, vector<512x16xf32> -> vector<512x16xf32>
    %c0_3 = arith.constant 0 : index
    %c1 = arith.constant 1 : index
    %9 = vector.load %arg1[%c0_3, %c1] : memref<512x4xi32, #tpu.memory_space<vmem>>, vector<512x1xi32>
    %10 = vector.broadcast %9 : vector<512x1xi32> to vector<512x56xi32>
    %11 = arith.cmpi eq, %1, %10 : vector<512x56xi32>
    %12 = arith.extui %11 : vector<512x56xi1> to vector<512x56xi32>
    %13 = arith.sitofp %12 : vector<512x56xi32> to vector<512x56xf32>
    %14 = arith.truncf %13 : vector<512x56xf32> to vector<512x56xbf16>
    %cst_4 = arith.constant dense<0.000000e+00> : vector<512x16xf32>
    %15 = tpu.matmul %14, %0, %cst_4 {dimension_numbers = #tpu.dot_dimension_numbers<[1], [0], [0], [1], [0, 0, 1, 1], [], []>} : vector<512x56xbf16>, vector<56x16xbf16>, vector<512x16xf32> -> vector<512x16xf32>
    %c0_5 = arith.constant 0 : index
    %c2 = arith.constant 2 : index
    %16 = vector.load %arg1[%c0_5, %c2] : memref<512x4xi32, #tpu.memory_space<vmem>>, vector<512x1xi32>
    %17 = vector.broadcast %16 : vector<512x1xi32> to vector<512x56xi32>
    %18 = arith.cmpi eq, %1, %17 : vector<512x56xi32>
    %19 = arith.extui %18 : vector<512x56xi1> to vector<512x56xi32>
    %20 = arith.sitofp %19 : vector<512x56xi32> to vector<512x56xf32>
    %21 = arith.truncf %20 : vector<512x56xf32> to vector<512x56xbf16>
    %cst_6 = arith.constant dense<0.000000e+00> : vector<512x16xf32>
    %22 = tpu.matmul %21, %0, %cst_6 {dimension_numbers = #tpu.dot_dimension_numbers<[1], [0], [0], [1], [0, 0, 1, 1], [], []>} : vector<512x56xbf16>, vector<56x16xbf16>, vector<512x16xf32> -> vector<512x16xf32>
    %c0_7 = arith.constant 0 : index
    %c3 = arith.constant 3 : index
    %23 = vector.load %arg1[%c0_7, %c3] : memref<512x4xi32, #tpu.memory_space<vmem>>, vector<512x1xi32>
    %24 = vector.broadcast %23 : vector<512x1xi32> to vector<512x56xi32>
    %25 = arith.cmpi eq, %1, %24 : vector<512x56xi32>
    %26 = arith.extui %25 : vector<512x56xi1> to vector<512x56xi32>
    %27 = arith.sitofp %26 : vector<512x56xi32> to vector<512x56xf32>
    %28 = arith.truncf %27 : vector<512x56xf32> to vector<512x56xbf16>
    %cst_8 = arith.constant dense<0.000000e+00> : vector<512x16xf32>
    %29 = tpu.matmul %28, %0, %cst_8 {dimension_numbers = #tpu.dot_dimension_numbers<[1], [0], [0], [1], [0, 0, 1, 1], [], []>} : vector<512x56xbf16>, vector<56x16xbf16>, vector<512x16xf32> -> vector<512x16xf32>
    %30 = tpu.concatenate %8, %15, %22, %29 in 1 : vector<512x16xf32>, vector<512x16xf32>, vector<512x16xf32>, vector<512x16xf32> -> vector<512x64xf32>
    %31 = arith.truncf %30 : vector<512x64xf32> to vector<512x64xbf16>
    %c0_9 = arith.constant 0 : index
    %c0_10 = arith.constant 0 : index
    %32 = vector.load %arg3[%c0_9, %c0_10] : memref<64x32xbf16, #tpu.memory_space<vmem>>, vector<64x32xbf16>
    %cst_11 = arith.constant dense<0.000000e+00> : vector<512x32xf32>
    %33 = tpu.matmul %31, %32, %cst_11 {dimension_numbers = #tpu.dot_dimension_numbers<[1], [0], [0], [1], [0, 0, 1, 1], [], []>} : vector<512x64xbf16>, vector<64x32xbf16>, vector<512x32xf32> -> vector<512x32xf32>
    %c0_12 = arith.constant 0 : index
    %c0_13 = arith.constant 0 : index
    %34 = vector.load %arg4[%c0_12, %c0_13] : memref<1x32xf32, #tpu.memory_space<vmem>>, vector<1x32xf32>
    %35 = vector.broadcast %34 : vector<1x32xf32> to vector<512x32xf32>
    %36 = arith.addf %33, %35 : vector<512x32xf32>
    %cst_14 = arith.constant 0.000000e+00 : f32
    %37 = vector.broadcast %cst_14 : f32 to vector<512x32xf32>
    %38 = arith.maximumf %36, %37 : vector<512x32xf32>
    %39 = arith.truncf %38 : vector<512x32xf32> to vector<512x32xbf16>
    %c0_15 = arith.constant 0 : index
    %c0_16 = arith.constant 0 : index
    %40 = vector.load %arg5[%c0_15, %c0_16] : memref<32x128xbf16, #tpu.memory_space<vmem>>, vector<32x128xbf16>
    %cst_17 = arith.constant dense<0.000000e+00> : vector<512x128xf32>
    %41 = tpu.matmul %39, %40, %cst_17 {dimension_numbers = #tpu.dot_dimension_numbers<[1], [0], [0], [1], [0, 0, 1, 1], [], []>} : vector<512x32xbf16>, vector<32x128xbf16>, vector<512x128xf32> -> vector<512x128xf32>
    %c0_18 = arith.constant 0 : index
    %c0_19 = arith.constant 0 : index
    %42 = vector.load %arg6[%c0_18, %c0_19] : memref<1x128xf32, #tpu.memory_space<vmem>>, vector<1x128xf32>
    %43 = vector.broadcast %42 : vector<1x128xf32> to vector<512x128xf32>
    %44 = arith.addf %41, %43 : vector<512x128xf32>
    %c0_20 = arith.constant 0 : index
    %c0_21 = arith.constant 0 : index
    %45 = vector.load %arg7[%c0_20, %c0_21] : memref<512x128xf32, #tpu.memory_space<vmem>>, vector<512x128xf32>
    tpu.vector_store %arg7[%c0_20, %c0_21], %44 {strides = array<i32>} : memref<512x128xf32, #tpu.memory_space<vmem>>, vector<512x128xf32>,
    return
  }
  func.func @transform_0(%arg0: i32) -> (i32, i32) {
    %c0_i32 = arith.constant 0 : i32
    %c0_i32_0 = arith.constant 0 : i32
    return %arg0, %c0_i32 : i32, i32
  }
  func.func @transform_1(%arg0: i32) -> (i32, i32) {
    %c0_i32 = arith.constant 0 : i32
    %c0_i32_0 = arith.constant 0 : i32
    %c0_i32_1 = arith.constant 0 : i32
    return %c0_i32, %c0_i32_0 : i32, i32
  }
  func.func @transform_2(%arg0: i32) -> (i32, i32) {
    %c0_i32 = arith.constant 0 : i32
    %c0_i32_0 = arith.constant 0 : i32
    %c0_i32_1 = arith.constant 0 : i32
    return %c0_i32, %c0_i32_0 : i32, i32
  }
  func.func @transform_3(%arg0: i32) -> (i32, i32) {
    %c0_i32 = arith.constant 0 : i32
    %c0_i32_0 = arith.constant 0 : i32
    %c0_i32_1 = arith.constant 0 : i32
    return %c0_i32, %c0_i32_0 : i32, i32
  }
  func.func @transform_4(%arg0: i32) -> (i32, i32) {
    %c0_i32 = arith.constant 0 : i32
    %c0_i32_0 = arith.constant 0 : i32
    %c0_i32_1 = arith.constant 0 : i32
    return %c0_i32, %c0_i32_0 : i32, i32
  }
  func.func @transform_5(%arg0: i32) -> (i32, i32) {
    %c0_i32 = arith.constant 0 : i32
    %c0_i32_0 = arith.constant 0 : i32
    %c0_i32_1 = arith.constant 0 : i32
    return %c0_i32, %c0_i32_0 : i32, i32
  }
  func.func @transform_6(%arg0: i32) -> (i32, i32) {
    %c0_i32 = arith.constant 0 : i32
    %c0_i32_0 = arith.constant 0 : i32
    return %arg0, %c0_i32 : i32, i32
  }
}

</mosaic_0001>

<llo_original>
// kernel: tpu_custom_call.1
$region0: #{tpu_custom_call.1}
  #allocation0 [shape = 'u32[]', space=smem, size = 0x4, offset = 0x4, fixed_abs, tag = 'smem constant byte address 0x4 - core index']
  #allocation1 [shape = 'u32[144,128]{1,0:T(1,128)}', space=vmem, size = 0x12000, scoped, tag = 'internal scratch']
  %s0 = inlined_call_operand.vmem [shape: s32[512,4], index: 0, kind: input, shape index: {}]
  %s1 = inlined_call_operand.vmem [shape: bf16[56,16], index: 1, kind: input, shape index: {}]
  %s2 = inlined_call_operand.vmem [shape: bf16[64,32], index: 2, kind: input, shape index: {}]
  %s3 = inlined_call_operand.vmem [shape: f32[1,32], index: 3, kind: input, shape index: {}]
  %s4 = inlined_call_operand.vmem [shape: bf16[32,128], index: 4, kind: input, shape index: {}]
  %s5 = inlined_call_operand.vmem [shape: f32[1,128], index: 5, kind: input, shape index: {}]
  %s6 = inlined_call_operand.hbm [shape: f32[512,128], index: 6, kind: output, shape index: {}]
  %s7 = sld [smem:[#allocation0]]
  $region34: #{tpu_custom_call.1} parent=0
    _
  %s9 = ssub.s32 1, %s7
  %s10 = scalar_select 0, %s9, %s7
  $region1: #{tpu_custom_call.1} parent=0
    #allocation2 [shape = 'u8[262144]{0}', space=vmem, size = 0x40000, scoped, tag = 'output window, operand 0, single buffered']
    #allocation3 [shape = 's32[1]{0}', space=sflag, size = 0x4, scoped, tag = 'scoped memory for tpu_custom_call.1']
    %11 = vsyncpa [#allocation3], 0
    // Predicated region
    $region2: #{tpu_custom_call.1} parent=1 // pred_check
      _
    $region3: #{tpu_custom_call.1} parent=1 // pred_check_branch
      %13 = sbr.rel (0) target = $region5
    $region4: #{tpu_custom_call.1} parent=1 // pred_region
      _
    $region5: #{tpu_custom_call.1} parent=1 // pred_fallthru
      _
    // Predicated region
    $region6: #{tpu_custom_call.1} parent=1 // pred_check
      _
    $region7: #{tpu_custom_call.1} parent=1 // pred_check_branch
      %15 = sbr.rel (0) target = $region9
    $region8: #{tpu_custom_call.1} parent=1 // pred_region
      _
    $region9: #{tpu_custom_call.1} parent=1 // pred_fallthru
      _
    // Predicated region
    $region10: #{tpu_custom_call.1} parent=1 // pred_check
      _
    $region11: #{tpu_custom_call.1} parent=1 // pred_check_branch
      %17 = sbr.rel (0) target = $region13
    $region12: #{tpu_custom_call.1} parent=1 // pred_region
      _
    $region13: #{tpu_custom_call.1} parent=1 // pred_fallthru
      _
    // Predicated region
    $region14: #{tpu_custom_call.1} parent=1 // pred_check
      _
    $region15: #{tpu_custom_call.1} parent=1 // pred_check_branch
      %19 = sbr.rel (0) target = $region17
    $region16: #{tpu_custom_call.1} parent=1 // pred_region
      _
    $region17: #{tpu_custom_call.1} parent=1 // pred_fallthru
      _
    // Predicated region
    $region18: #{tpu_custom_call.1} parent=1 // pred_check
      _
    $region19: #{tpu_custom_call.1} parent=1 // pred_check_branch
      %21 = sbr.rel (0) target = $region21
    $region20: #{tpu_custom_call.1} parent=1 // pred_region
      _
    $region21: #{tpu_custom_call.1} parent=1 // pred_fallthru
      _
    // Predicated region
    $region22: #{tpu_custom_call.1} parent=1 // pred_check
      _
    $region23: #{tpu_custom_call.1} parent=1 // pred_check_branch
      %23 = sbr.rel (0) target = $region25
    $region24: #{tpu_custom_call.1} parent=1 // pred_region
      _
    $region25: #{tpu_custom_call.1} parent=1 // pred_fallthru
      _
    %v25 = vld [vmem:[%s1] sm:$0xf]
    %v26 = vld [vmem:[%s1 + $0x4] sm:$0xf]
    %v27 = vld [vmem:[%s1 + $0x8] sm:$0xf]
    %v28 = vld [vmem:[%s1 + $0xc] sm:$0xf]
    %v29 = vld [vmem:[%s1 + $0x10] sm:$0xf]
    %v30 = vld [vmem:[%s1 + $0x14] sm:$0xf]
    %v31 = vld [vmem:[%s1 + $0x18] sm:$0xf]
    %v32 = vlaneseq
    %v33 = vand.u32 %v32, 127
    %v34 = vld [vmem:[%s0] sm:$0xff]
    %v35 = vld [vmem:[%s0 + $0x8] sm:$0xff]
    %v36 = vld [vmem:[%s0 + $0x10] sm:$0xff]
    %v37 = vld [vmem:[%s0 + $0x18] sm:$0xff]
    %v38 = vld [vmem:[%s0 + $0x20] sm:$0xff]
    %v39 = vld [vmem:[%s0 + $0x28] sm:$0xff]
    %v40 = vld [vmem:[%s0 + $0x30] sm:$0xff]
    %v41 = vld [vmem:[%s0 + $0x38] sm:$0xff]
    %v42 = vld [vmem:[%s0 + $0x40] sm:$0xff]
    %v43 = vld [vmem:[%s0 + $0x48] sm:$0xff]
    %v44 = vld [vmem:[%s0 + $0x50] sm:$0xff]
    %v45 = vld [vmem:[%s0 + $0x58] sm:$0xff]
    %v46 = vld [vmem:[%s0 + $0x60] sm:$0xff]
    %v47 = vld [vmem:[%s0 + $0x68] sm:$0xff]
    %v48 = vld [vmem:[%s0 + $0x70] sm:$0xff]
    %v49 = vld [vmem:[%s0 + $0x78] sm:$0xff]
    %v50 = vld [vmem:[%s0 + $0x80] sm:$0xff]
    %v51 = vld [vmem:[%s0 + $0x88] sm:$0xff]
    %v52 = vld [vmem:[%s0 + $0x90] sm:$0xff]
    %v53 = vld [vmem:[%s0 + $0x98] sm:$0xff]
    %v54 = vld [vmem:[%s0 + $0xa0] sm:$0xff]
    %v55 = vld [vmem:[%s0 + $0xa8] sm:$0xff]
    %v56 = vld [vmem:[%s0 + $0xb0] sm:$0xff]
    %v57 = vld [vmem:[%s0 + $0xb8] sm:$0xff]
    %v58 = vld [vmem:[%s0 + $0xc0] sm:$0xff]
    %v59 = vld [vmem:[%s0 + $0xc8] sm:$0xff]
    %v60 = vld [vmem:[%s0 + $0xd0] sm:$0xff]
    %v61 = vld [vmem:[%s0 + $0xd8] sm:$0xff]
    %v62 = vld [vmem:[%s0 + $0xe0] sm:$0xff]
    %v63 = vld [vmem:[%s0 + $0xe8] sm:$0xff]
    %v64 = vld [vmem:[%s0 + $0xf0] sm:$0xff]
    %v65 = vld [vmem:[%s0 + $0xf8] sm:$0xff]
    %v66 = vld [vmem:[%s0 + $0x100] sm:$0xff]
    %v67 = vld [vmem:[%s0 + $0x108] sm:$0xff]
    %v68 = vld [vmem:[%s0 + $0x110] sm:$0xff]
    %v69 = vld [vmem:[%s0 + $0x118] sm:$0xff]
    %v70 = vld [vmem:[%s0 + $0x120] sm:$0xff]
    %v71 = vld [vmem:[%s0 + $0x128] sm:$0xff]
    %v72 = vld [vmem:[%s0 + $0x130] sm:$0xff]
    %v73 = vld [vmem:[%s0 + $0x138] sm:$0xff]
    %v74 = vld [vmem:[%s0 + $0x140] sm:$0xff]
    %v75 = vld [vmem:[%s0 + $0x148] sm:$0xff]
    %v76 = vld [vmem:[%s0 + $0x150] sm:$0xff]
    %v77 = vld [vmem:[%s0 + $0x158] sm:$0xff]
    %v78 = vld [vmem:[%s0 + $0x160] sm:$0xff]
    %v79 = vld [vmem:[%s0 + $0x168] sm:$0xff]
    %v80 = vld [vmem:[%s0 + $0x170] sm:$0xff]
    %v81 = vld [vmem:[%s0 + $0x178] sm:$0xff]
    %v82 = vld [vmem:[%s0 + $0x180] sm:$0xff]
    %v83 = vld [vmem:[%s0 + $0x188] sm:$0xff]
    %v84 = vld [vmem:[%s0 + $0x190] sm:$0xff]
    %v85 = vld [vmem:[%s0 + $0x198] sm:$0xff]
    %v86 = vld [vmem:[%s0 + $0x1a0] sm:$0xff]
    %v87 = vld [vmem:[%s0 + $0x1a8] sm:$0xff]
    %v88 = vld [vmem:[%s0 + $0x1b0] sm:$0xff]
    %v89 = vld [vmem:[%s0 + $0x1b8] sm:$0xff]
    %v90 = vld [vmem:[%s0 + $0x1c0] sm:$0xff]
    %v91 = vld [vmem:[%s0 + $0x1c8] sm:$0xff]
    %v92 = vld [vmem:[%s0 + $0x1d0] sm:$0xff]
    %v93 = vld [vmem:[%s0 + $0x1d8] sm:$0xff]
    %v94 = vld [vmem:[%s0 + $0x1e0] sm:$0xff]
    %v95 = vld [vmem:[%s0 + $0x1e8] sm:$0xff]
    %v96 = vld [vmem:[%s0 + $0x1f0] sm:$0xff]
    %v97 = vld [vmem:[%s0 + $0x1f8] sm:$0xff]
    %98 = vset.pattern.permute.xlu0 0
    %99 = vperm.xlu0 %98, %v34
    %v100 = vpop.permute.xlu0 %99
    %101 = vset.pattern.permute.xlu0 0
    %102 = vperm.xlu0 %101, %v35
    %v103 = vpop.permute.xlu0 %102
    %104 = vset.pattern.permute.xlu0 0
    %105 = vperm.xlu0 %104, %v36
    %v106 = vpop.permute.xlu0 %105
    %107 = vset.pattern.permute.xlu0 0
    %108 = vperm.xlu0 %107, %v37
    %v109 = vpop.permute.xlu0 %108
    %110 = vset.pattern.permute.xlu0 0
    %111 = vperm.xlu0 %110, %v38
    %v112 = vpop.permute.xlu0 %111
    %113 = vset.pattern.permute.xlu0 0
    %114 = vperm.xlu0 %113, %v39
    %v115 = vpop.permute.xlu0 %114
    %116 = vset.pattern.permute.xlu0 0
    %117 = vperm.xlu0 %116, %v40
    %v118 = vpop.permute.xlu0 %117
    %119 = vset.pattern.permute.xlu0 0
    %120 = vperm.xlu0 %119, %v41
    %v121 = vpop.permute.xlu0 %120
    %122 = vset.pattern.permute.xlu0 0
    %123 = vperm.xlu0 %122, %v42
    %v124 = vpop.permute.xlu0 %123
    %125 = vset.pattern.permute.xlu0 0
    %126 = vperm.xlu0 %125, %v43
    %v127 = vpop.permute.xlu0 %126
    %128 = vset.pattern.permute.xlu0 0
    %129 = vperm.xlu0 %128, %v44
    %v130 = vpop.permute.xlu0 %129
    %131 = vset.pattern.permute.xlu0 0
    %132 = vperm.xlu0 %131, %v45
    %v133 = vpop.permute.xlu0 %132
    %134 = vset.pattern.permute.xlu0 0
    %135 = vperm.xlu0 %134, %v46
    %v136 = vpop.permute.xlu0 %135
    %137 = vset.pattern.permute.xlu0 0
    %138 = vperm.xlu0 %137, %v47
    %v139 = vpop.permute.xlu0 %138
    %140 = vset.pattern.permute.xlu0 0
    %141 = vperm.xlu0 %140, %v48
    %v142 = vpop.permute.xlu0 %141
    %143 = vset.pattern.permute.xlu0 0
    %144 = vperm.xlu0 %143, %v49
    %v145 = vpop.permute.xlu0 %144
    %146 = vset.pattern.permute.xlu0 0
    %147 = vperm.xlu0 %146, %v50
    %v148 = vpop.permute.xlu0 %147
    %149 = vset.pattern.permute.xlu0 0
    %150 = vperm.xlu0 %149, %v51
    %v151 = vpop.permute.xlu0 %150
    %152 = vset.pattern.permute.xlu0 0
    %153 = vperm.xlu0 %152, %v52
    %v154 = vpop.permute.xlu0 %153
    %155 = vset.pattern.permute.xlu0 0
    %156 = vperm.xlu0 %155, %v53
    %v157 = vpop.permute.xlu0 %156
    %158 = vset.pattern.permute.xlu0 0
    %159 = vperm.xlu0 %158, %v54
    %v160 = vpop.permute.xlu0 %159
    %161 = vset.pattern.permute.xlu0 0
    %162 = vperm.xlu0 %161, %v55
    %v163 = vpop.permute.xlu0 %162
    %164 = vset.pattern.permute.xlu0 0
    %165 = vperm.xlu0 %164, %v56
    %v166 = vpop.permute.xlu0 %165
    %167 = vset.pattern.permute.xlu0 0
    %168 = vperm.xlu0 %167, %v57
    %v169 = vpop.permute.xlu0 %168
    %170 = vset.pattern.permute.xlu0 0
    %171 = vperm.xlu0 %170, %v58
    %v172 = vpop.permute.xlu0 %171
    %173 = vset.pattern.permute.xlu0 0
    %174 = vperm.xlu0 %173, %v59
    %v175 = vpop.permute.xlu0 %174
    %176 = vset.pattern.permute.xlu0 0
    %177 = vperm.xlu0 %176, %v60
    %v178 = vpop.permute.xlu0 %177
    %179 = vset.pattern.permute.xlu0 0
    %180 = vperm.xlu0 %179, %v61
    %v181 = vpop.permute.xlu0 %180
    %182 = vset.pattern.permute.xlu0 0
    %183 = vperm.xlu0 %182, %v62
    %v184 = vpop.permute.xlu0 %183
    %185 = vset.pattern.permute.xlu0 0
    %186 = vperm.xlu0 %185, %v63
    %v187 = vpop.permute.xlu0 %186
    %188 = vset.pattern.permute.xlu0 0
    %189 = vperm.xlu0 %188, %v64
    %v190 = vpop.permute.xlu0 %189
    %191 = vset.pattern.permute.xlu0 0
    %192 = vperm.xlu0 %191, %v65
    %v193 = vpop.permute.xlu0 %192
    %194 = vset.pattern.permute.xlu0 0
    %195 = vperm.xlu0 %194, %v66
    %v196 = vpop.permute.xlu0 %195
    %197 = vset.pattern.permute.xlu0 0
    %198 = vperm.xlu0 %197, %v67
    %v199 = vpop.permute.xlu0 %198
    %200 = vset.pattern.permute.xlu0 0
    %201 = vperm.xlu0 %200, %v68
    %v202 = vpop.permute.xlu0 %201
    %203 = vset.pattern.permute.xlu0 0
    %204 = vperm.xlu0 %203, %v69
    %v205 = vpop.permute.xlu0 %204
    %206 = vset.pattern.permute.xlu0 0
    %207 = vperm.xlu0 %206, %v70
    %v208 = vpop.permute.xlu0 %207
    %209 = vset.pattern.permute.xlu0 0
    %210 = vperm.xlu0 %209, %v71
    %v211 = vpop.permute.xlu0 %210
    %212 = vset.pattern.permute.xlu0 0
    %213 = vperm.xlu0 %212, %v72
    %v214 = vpop.permute.xlu0 %213
    %215 = vset.pattern.permute.xlu0 0
    %216 = vperm.xlu0 %215, %v73
    %v217 = vpop.permute.xlu0 %216
    %218 = vset.pattern.permute.xlu0 0
    %219 = vperm.xlu0 %218, %v74
    %v220 = vpop.permute.xlu0 %219
    %221 = vset.pattern.permute.xlu0 0
    %222 = vperm.xlu0 %221, %v75
    %v223 = vpop.permute.xlu0 %222
    %224 = vset.pattern.permute.xlu0 0
    %225 = vperm.xlu0 %224, %v76
    %v226 = vpop.permute.xlu0 %225
    %227 = vset.pattern.permute.xlu0 0
    %228 = vperm.xlu0 %227, %v77
    %v229 = vpop.permute.xlu0 %228
    %230 = vset.pattern.permute.xlu0 0
    %231 = vperm.xlu0 %230, %v78
    %v232 = vpop.permute.xlu0 %231
    %233 = vset.pattern.permute.xlu0 0
    %234 = vperm.xlu0 %233, %v79
    %v235 = vpop.permute.xlu0 %234
    %236 = vset.pattern.permute.xlu0 0
    %237 = vperm.xlu0 %236, %v80
    %v238 = vpop.permute.xlu0 %237
    %239 = vset.pattern.permute.xlu0 0
    %240 = vperm.xlu0 %239, %v81
    %v241 = vpop.permute.xlu0 %240
    %242 = vset.pattern.permute.xlu0 0
    %243 = vperm.xlu0 %242, %v82
    %v244 = vpop.permute.xlu0 %243
    %245 = vset.pattern.permute.xlu0 0
    %246 = vperm.xlu0 %245, %v83
    %v247 = vpop.permute.xlu0 %246
    %248 = vset.pattern.permute.xlu0 0
    %249 = vperm.xlu0 %248, %v84
    %v250 = vpop.permute.xlu0 %249
    %251 = vset.pattern.permute.xlu0 0
    %252 = vperm.xlu0 %251, %v85
    %v253 = vpop.permute.xlu0 %252
    %254 = vset.pattern.permute.xlu0 0
    %255 = vperm.xlu0 %254, %v86
    %v256 = vpop.permute.xlu0 %255
    %257 = vset.pattern.permute.xlu0 0
    %258 = vperm.xlu0 %257, %v87
    %v259 = vpop.permute.xlu0 %258
    %260 = vset.pattern.permute.xlu0 0
    %261 = vperm.xlu0 %260, %v88
    %v262 = vpop.permute.xlu0 %261
    %263 = vset.pattern.permute.xlu0 0
    %264 = vperm.xlu0 %263, %v89
    %v265 = vpop.permute.xlu0 %264
    %266 = vset.pattern.permute.xlu0 0
    %267 = vperm.xlu0 %266, %v90
    %v268 = vpop.permute.xlu0 %267
    %269 = vset.pattern.permute.xlu0 0
    %270 = vperm.xlu0 %269, %v91
    %v271 = vpop.permute.xlu0 %270
    %272 = vset.pattern.permute.xlu0 0
    %273 = vperm.xlu0 %272, %v92
    %v274 = vpop.permute.xlu0 %273
    %275 = vset.pattern.permute.xlu0 0
    %276 = vperm.xlu0 %275, %v93
    %v277 = vpop.permute.xlu0 %276
    %278 = vset.pattern.permute.xlu0 0
    %279 = vperm.xlu0 %278, %v94
    %v280 = vpop.permute.xlu0 %279
    %281 = vset.pattern.permute.xlu0 0
    %282 = vperm.xlu0 %281, %v95
    %v283 = vpop.permute.xlu0 %282
    %284 = vset.pattern.permute.xlu0 0
    %285 = vperm.xlu0 %284, %v96
    %v286 = vpop.permute.xlu0 %285
    %287 = vset.pattern.permute.xlu0 0
    %288 = vperm.xlu0 %287, %v97
    %v289 = vpop.permute.xlu0 %288
    %vm290 = vcmp.eq.s32.totalorder %v33, %v100
    %vm291 = vcmp.eq.s32.totalorder %v33, %v103
    %vm292 = vcmp.eq.s32.totalorder %v33, %v106
    %vm293 = vcmp.eq.s32.totalorder %v33, %v109
    %vm294 = vcmp.eq.s32.totalorder %v33, %v112
    %vm295 = vcmp.eq.s32.totalorder %v33, %v115
    %vm296 = vcmp.eq.s32.totalorder %v33, %v118
    %vm297 = vcmp.eq.s32.totalorder %v33, %v121
    %vm298 = vcmp.eq.s32.totalorder %v33, %v124
    %vm299 = vcmp.eq.s32.totalorder %v33, %v127
    %vm300 = vcmp.eq.s32.totalorder %v33, %v130
    %vm301 = vcmp.eq.s32.totalorder %v33, %v133
    %vm302 = vcmp.eq.s32.totalorder %v33, %v136
    %vm303 = vcmp.eq.s32.totalorder %v33, %v139
    %vm304 = vcmp.eq.s32.totalorder %v33, %v142
    %vm305 = vcmp.eq.s32.totalorder %v33, %v145
    %vm306 = vcmp.eq.s32.totalorder %v33, %v148
    %vm307 = vcmp.eq.s32.totalorder %v33, %v151
    %vm308 = vcmp.eq.s32.totalorder %v33, %v154
    %vm309 = vcmp.eq.s32.totalorder %v33, %v157
    %vm310 = vcmp.eq.s32.totalorder %v33, %v160
    %vm311 = vcmp.eq.s32.totalorder %v33, %v163
    %vm312 = vcmp.eq.s32.totalorder %v33, %v166
    %vm313 = vcmp.eq.s32.totalorder %v33, %v169
    %vm314 = vcmp.eq.s32.totalorder %v33, %v172
    %vm315 = vcmp.eq.s32.totalorder %v33, %v175
    %vm316 = vcmp.eq.s32.totalorder %v33, %v178
    %vm317 = vcmp.eq.s32.totalorder %v33, %v181
    %vm318 = vcmp.eq.s32.totalorder %v33, %v184
    %vm319 = vcmp.eq.s32.totalorder %v33, %v187
    %vm320 = vcmp.eq.s32.totalorder %v33, %v190
    %vm321 = vcmp.eq.s32.totalorder %v33, %v193
    %vm322 = vcmp.eq.s32.totalorder %v33, %v196
    %vm323 = vcmp.eq.s32.totalorder %v33, %v199
    %vm324 = vcmp.eq.s32.totalorder %v33, %v202
    %vm325 = vcmp.eq.s32.totalorder %v33, %v205
    %vm326 = vcmp.eq.s32.totalorder %v33, %v208
    %vm327 = vcmp.eq.s32.totalorder %v33, %v211
    %vm328 = vcmp.eq.s32.totalorder %v33, %v214
    %vm329 = vcmp.eq.s32.totalorder %v33, %v217
    %vm330 = vcmp.eq.s32.totalorder %v33, %v220
    %vm331 = vcmp.eq.s32.totalorder %v33, %v223
    %vm332 = vcmp.eq.s32.totalorder %v33, %v226
    %vm333 = vcmp.eq.s32.totalorder %v33, %v229
    %vm334 = vcmp.eq.s32.totalorder %v33, %v232
    %vm335 = vcmp.eq.s32.totalorder %v33, %v235
    %vm336 = vcmp.eq.s32.totalorder %v33, %v238
    %vm337 = vcmp.eq.s32.totalorder %v33, %v241
    %vm338 = vcmp.eq.s32.totalorder %v33, %v244
    %vm339 = vcmp.eq.s32.totalorder %v33, %v247
    %vm340 = vcmp.eq.s32.totalorder %v33, %v250
    %vm341 = vcmp.eq.s32.totalorder %v33, %v253
    %vm342 = vcmp.eq.s32.totalorder %v33, %v256
    %vm343 = vcmp.eq.s32.totalorder %v33, %v259
    %vm344 = vcmp.eq.s32.totalorder %v33, %v262
    %vm345 = vcmp.eq.s32.totalorder %v33, %v265
    %vm346 = vcmp.eq.s32.totalorder %v33, %v268
    %vm347 = vcmp.eq.s32.totalorder %v33, %v271
    %vm348 = vcmp.eq.s32.totalorder %v33, %v274
    %vm349 = vcmp.eq.s32.totalorder %v33, %v277
    %vm350 = vcmp.eq.s32.totalorder %v33, %v280
    %vm351 = vcmp.eq.s32.totalorder %v33, %v283
    %vm352 = vcmp.eq.s32.totalorder %v33, %v286
    %vm353 = vcmp.eq.s32.totalorder %v33, %v289
    %v354 = vsel %vm290, 1, 0
    %v355 = vsel %vm291, 1, 0
    %v356 = vsel %vm292, 1, 0
    %v357 = vsel %vm293, 1, 0
    %v358 = vsel %vm294, 1, 0
    %v359 = vsel %vm295, 1, 0
    %v360 = vsel %vm296, 1, 0
    %v361 = vsel %vm297, 1, 0
    %v362 = vsel %vm298, 1, 0
    %v363 = vsel %vm299, 1, 0
    %v364 = vsel %vm300, 1, 0
    %v365 = vsel %vm301, 1, 0
    %v366 = vsel %vm302, 1, 0
    %v367 = vsel %vm303, 1, 0
    %v368 = vsel %vm304, 1, 0
    %v369 = vsel %vm305, 1, 0
    %v370 = vsel %vm306, 1, 0
    %v371 = vsel %vm307, 1, 0
    %v372 = vsel %vm308, 1, 0
    %v373 = vsel %vm309, 1, 0
    %v374 = vsel %vm310, 1, 0
    %v375 = vsel %vm311, 1, 0
    %v376 = vsel %vm312, 1, 0
    %v377 = vsel %vm313, 1, 0
    %v378 = vsel %vm314, 1, 0
    %v379 = vsel %vm315, 1, 0
    %v380 = vsel %vm316, 1, 0
    %v381 = vsel %vm317, 1, 0
    %v382 = vsel %vm318, 1, 0
    %v383 = vsel %vm319, 1, 0
    %v384 = vsel %vm320, 1, 0
    %v385 = vsel %vm321, 1, 0
    %v386 = vsel %vm322, 1, 0
    %v387 = vsel %vm323, 1, 0
    %v388 = vsel %vm324, 1, 0
    %v389 = vsel %vm325, 1, 0
    %v390 = vsel %vm326, 1, 0
    %v391 = vsel %vm327, 1, 0
    %v392 = vsel %vm328, 1, 0
    %v393 = vsel %vm329, 1, 0
    %v394 = vsel %vm330, 1, 0
    %v395 = vsel %vm331, 1, 0
    %v396 = vsel %vm332, 1, 0
    %v397 = vsel %vm333, 1, 0
    %v398 = vsel %vm334, 1, 0
    %v399 = vsel %vm335, 1, 0
    %v400 = vsel %vm336, 1, 0
    %v401 = vsel %vm337, 1, 0
    %v402 = vsel %vm338, 1, 0
    %v403 = vsel %vm339, 1, 0
    %v404 = vsel %vm340, 1, 0
    %v405 = vsel %vm341, 1, 0
    %v406 = vsel %vm342, 1, 0
    %v407 = vsel %vm343, 1, 0
    %v408 = vsel %vm344, 1, 0
    %v409 = vsel %vm345, 1, 0
    %v410 = vsel %vm346, 1, 0
    %v411 = vsel %vm347, 1, 0
    %v412 = vsel %vm348, 1, 0
    %v413 = vsel %vm349, 1, 0
    %v414 = vsel %vm350, 1, 0
    %v415 = vsel %vm351, 1, 0
    %v416 = vsel %vm352, 1, 0
    %v417 = vsel %vm353, 1, 0
    %v418 = vcvt.s32.f32 %v354
    %v419 = vcvt.s32.f32 %v355
    %v420 = vcvt.s32.f32 %v356
    %v421 = vcvt.s32.f32 %v357
    %v422 = vcvt.s32.f32 %v358
    %v423 = vcvt.s32.f32 %v359
    %v424 = vcvt.s32.f32 %v360
    %v425 = vcvt.s32.f32 %v361
    %v426 = vcvt.s32.f32 %v362
    %v427 = vcvt.s32.f32 %v363
    %v428 = vcvt.s32.f32 %v364
    %v429 = vcvt.s32.f32 %v365
    %v430 = vcvt.s32.f32 %v366
    %v431 = vcvt.s32.f32 %v367
    %v432 = vcvt.s32.f32 %v368
    %v433 = vcvt.s32.f32 %v369
    %v434 = vcvt.s32.f32 %v370
    %v435 = vcvt.s32.f32 %v371
    %v436 = vcvt.s32.f32 %v372
    %v437 = vcvt.s32.f32 %v373
    %v438 = vcvt.s32.f32 %v374
    %v439 = vcvt.s32.f32 %v375
    %v440 = vcvt.s32.f32 %v376
    %v441 = vcvt.s32.f32 %v377
    %v442 = vcvt.s32.f32 %v378
    %v443 = vcvt.s32.f32 %v379
    %v444 = vcvt.s32.f32 %v380
    %v445 = vcvt.s32.f32 %v381
    %v446 = vcvt.s32.f32 %v382
    %v447 = vcvt.s32.f32 %v383
    %v448 = vcvt.s32.f32 %v384
    %v449 = vcvt.s32.f32 %v385
    %v450 = vcvt.s32.f32 %v386
    %v451 = vcvt.s32.f32 %v387
    %v452 = vcvt.s32.f32 %v388
    %v453 = vcvt.s32.f32 %v389
    %v454 = vcvt.s32.f32 %v390
    %v455 = vcvt.s32.f32 %v391
    %v456 = vcvt.s32.f32 %v392
    %v457 = vcvt.s32.f32 %v393
    %v458 = vcvt.s32.f32 %v394
    %v459 = vcvt.s32.f32 %v395
    %v460 = vcvt.s32.f32 %v396
    %v461 = vcvt.s32.f32 %v397
    %v462 = vcvt.s32.f32 %v398
    %v463 = vcvt.s32.f32 %v399
    %v464 = vcvt.s32.f32 %v400
    %v465 = vcvt.s32.f32 %v401
    %v466 = vcvt.s32.f32 %v402
    %v467 = vcvt.s32.f32 %v403
    %v468 = vcvt.s32.f32 %v404
    %v469 = vcvt.s32.f32 %v405
    %v470 = vcvt.s32.f32 %v406
    %v471 = vcvt.s32.f32 %v407
    %v472 = vcvt.s32.f32 %v408
    %v473 = vcvt.s32.f32 %v409
    %v474 = vcvt.s32.f32 %v410
    %v475 = vcvt.s32.f32 %v411
    %v476 = vcvt.s32.f32 %v412
    %v477 = vcvt.s32.f32 %v413
    %v478 = vcvt.s32.f32 %v414
    %v479 = vcvt.s32.f32 %v415
    %v480 = vcvt.s32.f32 %v416
    %v481 = vcvt.s32.f32 %v417
    %v482 = vpack.c.bf16 %v419, %v418
    %v483 = vpack.c.bf16 %v421, %v420
    %v484 = vpack.c.bf16 %v423, %v422
    %v485 = vpack.c.bf16 %v425, %v424
    %v486 = vpack.c.bf16 %v427, %v426
    %v487 = vpack.c.bf16 %v429, %v428
    %v488 = vpack.c.bf16 %v431, %v430
    %v489 = vpack.c.bf16 %v433, %v432
    %v490 = vpack.c.bf16 %v435, %v434
    %v491 = vpack.c.bf16 %v437, %v436
    %v492 = vpack.c.bf16 %v439, %v438
    %v493 = vpack.c.bf16 %v441, %v440
    %v494 = vpack.c.bf16 %v443, %v442
    %v495 = vpack.c.bf16 %v445, %v444
    %v496 = vpack.c.bf16 %v447, %v446
    %v497 = vpack.c.bf16 %v449, %v448
    %v498 = vpack.c.bf16 %v451, %v450
    %v499 = vpack.c.bf16 %v453, %v452
    %v500 = vpack.c.bf16 %v455, %v454
    %v501 = vpack.c.bf16 %v457, %v456
    %v502 = vpack.c.bf16 %v459, %v458
    %v503 = vpack.c.bf16 %v461, %v460
    %v504 = vpack.c.bf16 %v463, %v462
    %v505 = vpack.c.bf16 %v465, %v464
    %v506 = vpack.c.bf16 %v467, %v466
    %v507 = vpack.c.bf16 %v469, %v468
    %v508 = vpack.c.bf16 %v471, %v470
    %v509 = vpack.c.bf16 %v473, %v472
    %v510 = vpack.c.bf16 %v475, %v474
    %v511 = vpack.c.bf16 %v477, %v476
    %v512 = vpack.c.bf16 %v479, %v478
    %v513 = vpack.c.bf16 %v481, %v480
    %v521 = vunpack.c.l.b16 %v25
    %v522 = vunpack.c.l.b16 %v26
    %v523 = vunpack.c.l.b16 %v27
    %v524 = vunpack.c.l.b16 %v28
    %v525 = vunpack.c.l.b16 %v29
    %v526 = vunpack.c.l.b16 %v30
    %v527 = vunpack.c.l.b16 %v31
    %v528 = vpack.c.b16 %v522, %v521
    %v529 = vpack.c.b16 %v524, %v523
    %v530 = vpack.c.b16 %v526, %v525
    %v531 = vpack.c.b16 %v527, %v527
    %vm535 = vcmask 457728
    %v537 = vsel %vm535, %v482, 0
    %v540 = vsel %vm535, %v483, 0
    %v543 = vsel %vm535, %v484, 0
    %v546 = vsel %vm535, %v485, 0
    %v549 = vsel %vm535, %v486, 0
    %v552 = vsel %vm535, %v487, 0
    %v555 = vsel %vm535, %v488, 0
    %v558 = vsel %vm535, %v489, 0
    %v561 = vsel %vm535, %v490, 0
    %v564 = vsel %vm535, %v491, 0
    %v567 = vsel %vm535, %v492, 0
    %v570 = vsel %vm535, %v493, 0
    %v573 = vsel %vm535, %v494, 0
    %v576 = vsel %vm535, %v495, 0
    %v579 = vsel %vm535, %v496, 0
    %v582 = vsel %vm535, %v497, 0
    %v585 = vsel %vm535, %v498, 0
    %v588 = vsel %vm535, %v499, 0
    %v591 = vsel %vm535, %v500, 0
    %v594 = vsel %vm535, %v501, 0
    %v597 = vsel %vm535, %v502, 0
    %v600 = vsel %vm535, %v503, 0
    %v603 = vsel %vm535, %v504, 0
    %v606 = vsel %vm535, %v505, 0
    %v609 = vsel %vm535, %v506, 0
    %v612 = vsel %vm535, %v507, 0
    %v615 = vsel %vm535, %v508, 0
    %v618 = vsel %vm535, %v509, 0
    %v621 = vsel %vm535, %v510, 0
    %v624 = vsel %vm535, %v511, 0
    %v627 = vsel %vm535, %v512, 0
    %v630 = vsel %vm535, %v513, 0
    %vm632 = vcmask 1043456
    %v634 = vsel %vm632, %v531, 0
    %636 = vmatprep.subr.bf16.mxu0 0
    %637 = vmatpush1.bf16.msra.mxu0 0
    %638 = vmatprep.subr.bf16.mxu0 0
    %639 = vmatpush1.bf16.msra.mxu0 0
    %640 = vmatprep.subr.bf16.mxu0 0
    %641 = vmatpush1.bf16.msra.mxu0 0
    %642 = vmatprep.subr.bf16.mxu0 0
    %643 = vmatpush1.bf16.msra.mxu0 0
    %644 = vmatprep.subr.bf16.mxu0 0
    %645 = vmatpush1.bf16.msra.mxu0 %v634
    %646 = vmatprep.subr.bf16.mxu0 0
    %647 = vmatpush1.bf16.msra.mxu0 %v530
    %648 = vmatprep.subr.bf16.mxu0 0
    %649 = vmatpush1.bf16.msra.mxu0 %v529
    %650 = vmatprep.subr.bf16.mxu0 0
    %651 = vmatpush1.bf16.msra.mxu0 %v528
    %652 = vmatprep.subr.bf16.mxu0 0
    %653 = vmatpush2.bf16.msra.mxu0 0
    %654 = vmatprep.subr.bf16.mxu0 0
    %655 = vmatpush2.bf16.msra.mxu0 0
    %656 = vmatprep.subr.bf16.mxu0 0
    %657 = vmatpush2.bf16.msra.mxu0 0
    %658 = vmatprep.subr.bf16.mxu0 0
    %659 = vmatpush2.bf16.msra.mxu0 0
    %660 = vmatprep.subr.bf16.mxu0 0
    %661 = vmatpush2.bf16.msra.mxu0 0
    %662 = vmatprep.subr.bf16.mxu0 0
    %663 = vmatpush2.bf16.msra.mxu0 0
    %664 = vmatprep.subr.bf16.mxu0 0
    %665 = vmatpush2.bf16.msra.mxu0 0
    %666 = vmatprep.subr.bf16.mxu0 0
    %667 = vmatpush2.bf16.msra.mxu0 0
    %668 = vmatprep.mubr.bf16.mxu0 0
    %669 = vmatmul.mubr.bf16.gmra.mxu0 %v537
    %v670 = vpop.f32.mrf.mxu0
    %v671 = vadd.f32 0.0, %v670
    %v672 = vpop.f32.mrf.mxu0
    %v673 = vpop.f32.mrf.mxu0
    %v674 = vadd.f32 0.0, %v673
    %v675 = vpop.f32.mrf.mxu0
    %676 = vmatprep.mubr.bf16.mxu0 0
    %677 = vmatmul.mubr.bf16.gmra.mxu0 %v540
    %v678 = vpop.f32.mrf.mxu0
    %v679 = vadd.f32 0.0, %v678
    %v680 = vpop.f32.mrf.mxu0
    %v681 = vpop.f32.mrf.mxu0
    %v682 = vadd.f32 0.0, %v681
    %v683 = vpop.f32.mrf.mxu0
    %684 = vmatprep.mubr.bf16.mxu0 0
    %685 = vmatmul.mubr.bf16.gmra.mxu0 %v543
    %v686 = vpop.f32.mrf.mxu0
    %v687 = vadd.f32 0.0, %v686
    %v688 = vpop.f32.mrf.mxu0
    %v689 = vpop.f32.mrf.mxu0
    %v690 = vadd.f32 0.0, %v689
    %v691 = vpop.f32.mrf.mxu0
    %692 = vmatprep.mubr.bf16.mxu0 0
    %693 = vmatmul.mubr.bf16.gmra.mxu0 %v546
    %v694 = vpop.f32.mrf.mxu0
    %v695 = vadd.f32 0.0, %v694
    %v696 = vpop.f32.mrf.mxu0
    %v697 = vpop.f32.mrf.mxu0
    %v698 = vadd.f32 0.0, %v697
    %v699 = vpop.f32.mrf.mxu0
    %700 = vmatprep.mubr.bf16.mxu0 0
    %701 = vmatmul.mubr.bf16.gmra.mxu0 %v549
    %v702 = vpop.f32.mrf.mxu0
    %v703 = vadd.f32 0.0, %v702
    %v704 = vpop.f32.mrf.mxu0
    %v705 = vpop.f32.mrf.mxu0
    %v706 = vadd.f32 0.0, %v705
    %v707 = vpop.f32.mrf.mxu0
    %708 = vmatprep.mubr.bf16.mxu0 0
    %709 = vmatmul.mubr.bf16.gmra.mxu0 %v552
    %v710 = vpop.f32.mrf.mxu0
    %v711 = vadd.f32 0.0, %v710
    %v712 = vpop.f32.mrf.mxu0
    %v713 = vpop.f32.mrf.mxu0
    %v714 = vadd.f32 0.0, %v713
    %v715 = vpop.f32.mrf.mxu0
    %716 = vmatprep.mubr.bf16.mxu0 0
    %717 = vmatmul.mubr.bf16.gmra.mxu0 %v555
    %v718 = vpop.f32.mrf.mxu0
    %v719 = vadd.f32 0.0, %v718
    %v720 = vpop.f32.mrf.mxu0
    %v721 = vpop.f32.mrf.mxu0
    %v722 = vadd.f32 0.0, %v721
    %v723 = vpop.f32.mrf.mxu0
    %724 = vmatprep.mubr.bf16.mxu0 0
    %725 = vmatmul.mubr.bf16.gmra.mxu0 %v558
    %v726 = vpop.f32.mrf.mxu0
    %v727 = vadd.f32 0.0, %v726
    %v728 = vpop.f32.mrf.mxu0
    %v729 = vpop.f32.mrf.mxu0
    %v730 = vadd.f32 0.0, %v729
    %v731 = vpop.f32.mrf.mxu0
    %732 = vmatprep.mubr.bf16.mxu0 0
    %733 = vmatmul.mubr.bf16.gmra.mxu0 %v561
    %v734 = vpop.f32.mrf.mxu0
    %v735 = vadd.f32 0.0, %v734
    %v736 = vpop.f32.mrf.mxu0
    %v737 = vpop.f32.mrf.mxu0
    %v738 = vadd.f32 0.0, %v737
    %v739 = vpop.f32.mrf.mxu0
    %740 = vmatprep.mubr.bf16.mxu0 0
    %741 = vmatmul.mubr.bf16.gmra.mxu0 %v564
    %v742 = vpop.f32.mrf.mxu0
    %v743 = vadd.f32 0.0, %v742
    %v744 = vpop.f32.mrf.mxu0
    %v745 = vpop.f32.mrf.mxu0
    %v746 = vadd.f32 0.0, %v745
    %v747 = vpop.f32.mrf.mxu0
    %748 = vmatprep.mubr.bf16.mxu0 0
    %749 = vmatmul.mubr.bf16.gmra.mxu0 %v567
    %v750 = vpop.f32.mrf.mxu0
    %v751 = vadd.f32 0.0, %v750
    %v752 = vpop.f32.mrf.mxu0
    %v753 = vpop.f32.mrf.mxu0
    %v754 = vadd.f32 0.0, %v753
    %v755 = vpop.f32.mrf.mxu0
    %756 = vmatprep.mubr.bf16.mxu0 0
    %757 = vmatmul.mubr.bf16.gmra.mxu0 %v570
    %v758 = vpop.f32.mrf.mxu0
    %v759 = vadd.f32 0.0, %v758
    %v760 = vpop.f32.mrf.mxu0
    %v761 = vpop.f32.mrf.mxu0
    %v762 = vadd.f32 0.0, %v761
    %v763 = vpop.f32.mrf.mxu0
    %764 = vmatprep.mubr.bf16.mxu0 0
    %765 = vmatmul.mubr.bf16.gmra.mxu0 %v573
    %v766 = vpop.f32.mrf.mxu0
    %v767 = vadd.f32 0.0, %v766
    %v768 = vpop.f32.mrf.mxu0
    %v769 = vpop.f32.mrf.mxu0
    %v770 = vadd.f32 0.0, %v769
    %v771 = vpop.f32.mrf.mxu0
    %772 = vmatprep.mubr.bf16.mxu0 0
    %773 = vmatmul.mubr.bf16.gmra.mxu0 %v576
    %v774 = vpop.f32.mrf.mxu0
    %v775 = vadd.f32 0.0, %v774
    %v776 = vpop.f32.mrf.mxu0
    %v777 = vpop.f32.mrf.mxu0
    %v778 = vadd.f32 0.0, %v777
    %v779 = vpop.f32.mrf.mxu0
    %780 = vmatprep.mubr.bf16.mxu0 0
    %781 = vmatmul.mubr.bf16.gmra.mxu0 %v579
    %v782 = vpop.f32.mrf.mxu0
    %v783 = vadd.f32 0.0, %v782
    %v784 = vpop.f32.mrf.mxu0
    %v785 = vpop.f32.mrf.mxu0
    %v786 = vadd.f32 0.0, %v785
    %v787 = vpop.f32.mrf.mxu0
    %788 = vmatprep.mubr.bf16.mxu0 0
    %789 = vmatmul.mubr.bf16.gmra.mxu0 %v582
    %v790 = vpop.f32.mrf.mxu0
    %v791 = vadd.f32 0.0, %v790
    %v792 = vpop.f32.mrf.mxu0
    %v793 = vpop.f32.mrf.mxu0
    %v794 = vadd.f32 0.0, %v793
    %v795 = vpop.f32.mrf.mxu0
    %796 = vmatprep.mubr.bf16.mxu0 0
    %797 = vmatmul.mubr.bf16.gmra.mxu0 %v585
    %v798 = vpop.f32.mrf.mxu0
    %v799 = vadd.f32 0.0, %v798
    %v800 = vpop.f32.mrf.mxu0
    %v801 = vpop.f32.mrf.mxu0
    %v802 = vadd.f32 0.0, %v801
    %v803 = vpop.f32.mrf.mxu0
    %804 = vmatprep.mubr.bf16.mxu0 0
    %805 = vmatmul.mubr.bf16.gmra.mxu0 %v588
    %v806 = vpop.f32.mrf.mxu0
    %v807 = vadd.f32 0.0, %v806
    %v808 = vpop.f32.mrf.mxu0
    %v809 = vpop.f32.mrf.mxu0
    %v810 = vadd.f32 0.0, %v809
    %v811 = vpop.f32.mrf.mxu0
    %812 = vmatprep.mubr.bf16.mxu0 0
    %813 = vmatmul.mubr.bf16.gmra.mxu0 %v591
    %v814 = vpop.f32.mrf.mxu0
    %v815 = vadd.f32 0.0, %v814
    %v816 = vpop.f32.mrf.mxu0
    %v817 = vpop.f32.mrf.mxu0
    %v818 = vadd.f32 0.0, %v817
    %v819 = vpop.f32.mrf.mxu0
    %820 = vmatprep.mubr.bf16.mxu0 0
    %821 = vmatmul.mubr.bf16.gmra.mxu0 %v594
    %v822 = vpop.f32.mrf.mxu0
    %v823 = vadd.f32 0.0, %v822
    %v824 = vpop.f32.mrf.mxu0
    %v825 = vpop.f32.mrf.mxu0
    %v826 = vadd.f32 0.0, %v825
    %v827 = vpop.f32.mrf.mxu0
    %828 = vmatprep.mubr.bf16.mxu0 0
    %829 = vmatmul.mubr.bf16.gmra.mxu0 %v597
    %v830 = vpop.f32.mrf.mxu0
    %v831 = vadd.f32 0.0, %v830
    %v832 = vpop.f32.mrf.mxu0
    %v833 = vpop.f32.mrf.mxu0
    %v834 = vadd.f32 0.0, %v833
    %v835 = vpop.f32.mrf.mxu0
    %836 = vmatprep.mubr.bf16.mxu0 0
    %837 = vmatmul.mubr.bf16.gmra.mxu0 %v600
    %v838 = vpop.f32.mrf.mxu0
    %v839 = vadd.f32 0.0, %v838
    %v840 = vpop.f32.mrf.mxu0
    %v841 = vpop.f32.mrf.mxu0
    %v842 = vadd.f32 0.0, %v841
    %v843 = vpop.f32.mrf.mxu0
    %844 = vmatprep.mubr.bf16.mxu0 0
    %845 = vmatmul.mubr.bf16.gmra.mxu0 %v603
    %v846 = vpop.f32.mrf.mxu0
    %v847 = vadd.f32 0.0, %v846
    %v848 = vpop.f32.mrf.mxu0
    %v849 = vpop.f32.mrf.mxu0
    %v850 = vadd.f32 0.0, %v849
    %v851 = vpop.f32.mrf.mxu0
    %852 = vmatprep.mubr.bf16.mxu0 0
    %853 = vmatmul.mubr.bf16.gmra.mxu0 %v606
    %v854 = vpop.f32.mrf.mxu0
    %v855 = vadd.f32 0.0, %v854
    %v856 = vpop.f32.mrf.mxu0
    %v857 = vpop.f32.mrf.mxu0
    %v858 = vadd.f32 0.0, %v857
    %v859 = vpop.f32.mrf.mxu0
    %860 = vmatprep.mubr.bf16.mxu0 0
    %861 = vmatmul.mubr.bf16.gmra.mxu0 %v609
    %v862 = vpop.f32.mrf.mxu0
    %v863 = vadd.f32 0.0, %v862
    %v864 = vpop.f32.mrf.mxu0
    %v865 = vpop.f32.mrf.mxu0
    %v866 = vadd.f32 0.0, %v865
    %v867 = vpop.f32.mrf.mxu0
    %868 = vmatprep.mubr.bf16.mxu0 0
    %869 = vmatmul.mubr.bf16.gmra.mxu0 %v612
    %v870 = vpop.f32.mrf.mxu0
    %v871 = vadd.f32 0.0, %v870
    %v872 = vpop.f32.mrf.mxu0
    %v873 = vpop.f32.mrf.mxu0
    %v874 = vadd.f32 0.0, %v873
    %v875 = vpop.f32.mrf.mxu0
    %876 = vmatprep.mubr.bf16.mxu0 0
    %877 = vmatmul.mubr.bf16.gmra.mxu0 %v615
    %v878 = vpop.f32.mrf.mxu0
    %v879 = vadd.f32 0.0, %v878
    %v880 = vpop.f32.mrf.mxu0
    %v881 = vpop.f32.mrf.mxu0
    %v882 = vadd.f32 0.0, %v881
    %v883 = vpop.f32.mrf.mxu0
    %884 = vmatprep.mubr.bf16.mxu0 0
    %885 = vmatmul.mubr.bf16.gmra.mxu0 %v618
    %v886 = vpop.f32.mrf.mxu0
    %v887 = vadd.f32 0.0, %v886
    %v888 = vpop.f32.mrf.mxu0
    %v889 = vpop.f32.mrf.mxu0
    %v890 = vadd.f32 0.0, %v889
    %v891 = vpop.f32.mrf.mxu0
    %892 = vmatprep.mubr.bf16.mxu0 0
    %893 = vmatmul.mubr.bf16.gmra.mxu0 %v621
    %v894 = vpop.f32.mrf.mxu0
    %v895 = vadd.f32 0.0, %v894
    %v896 = vpop.f32.mrf.mxu0
    %v897 = vpop.f32.mrf.mxu0
    %v898 = vadd.f32 0.0, %v897
    %v899 = vpop.f32.mrf.mxu0
    %900 = vmatprep.mubr.bf16.mxu0 0
    %901 = vmatmul.mubr.bf16.gmra.mxu0 %v624
    %v902 = vpop.f32.mrf.mxu0
    %v903 = vadd.f32 0.0, %v902
    %v904 = vpop.f32.mrf.mxu0
    %v905 = vpop.f32.mrf.mxu0
    %v906 = vadd.f32 0.0, %v905
    %v907 = vpop.f32.mrf.mxu0
    %908 = vmatprep.mubr.bf16.mxu0 0
    %909 = vmatmul.mubr.bf16.gmra.mxu0 %v627
    %v910 = vpop.f32.mrf.mxu0
    %v911 = vadd.f32 0.0, %v910
    %v912 = vpop.f32.mrf.mxu0
    %v913 = vpop.f32.mrf.mxu0
    %v914 = vadd.f32 0.0, %v913
    %v915 = vpop.f32.mrf.mxu0
    %916 = vmatprep.mubr.bf16.mxu0 0
    %917 = vmatmul.mubr.bf16.gmra.mxu0 %v630
    %v918 = vpop.f32.mrf.mxu0
    %v919 = vadd.f32 0.0, %v918
    %v920 = vpop.f32.mrf.mxu0
    %v921 = vpop.f32.mrf.mxu0
    %v922 = vadd.f32 0.0, %v921
    %v923 = vpop.f32.mrf.mxu0
    %924 = vdwg.mxu0
    %925 = vset.pattern.permute.xlu0 1
    %926 = vperm.xlu0 %925, %v34
    %v927 = vpop.permute.xlu0 %926
    %928 = vset.pattern.permute.xlu0 1
    %929 = vperm.xlu0 %928, %v35
    %v930 = vpop.permute.xlu0 %929
    %931 = vset.pattern.permute.xlu0 1
    %932 = vperm.xlu0 %931, %v36
    %v933 = vpop.permute.xlu0 %932
    %934 = vset.pattern.permute.xlu0 1
    %935 = vperm.xlu0 %934, %v37
    %v936 = vpop.permute.xlu0 %935
    %937 = vset.pattern.permute.xlu0 1
    %938 = vperm.xlu0 %937, %v38
    %v939 = vpop.permute.xlu0 %938
    %940 = vset.pattern.permute.xlu0 1
    %941 = vperm.xlu0 %940, %v39
    %v942 = vpop.permute.xlu0 %941
    %943 = vset.pattern.permute.xlu0 1
    %944 = vperm.xlu0 %943, %v40
    %v945 = vpop.permute.xlu0 %944
    %946 = vset.pattern.permute.xlu0 1
    %947 = vperm.xlu0 %946, %v41
    %v948 = vpop.permute.xlu0 %947
    %949 = vset.pattern.permute.xlu0 1
    %950 = vperm.xlu0 %949, %v42
    %v951 = vpop.permute.xlu0 %950
    %952 = vset.pattern.permute.xlu0 1
    %953 = vperm.xlu0 %952, %v43
    %v954 = vpop.permute.xlu0 %953
    %955 = vset.pattern.permute.xlu0 1
    %956 = vperm.xlu0 %955, %v44
    %v957 = vpop.permute.xlu0 %956
    %958 = vset.pattern.permute.xlu0 1
    %959 = vperm.xlu0 %958, %v45
    %v960 = vpop.permute.xlu0 %959
    %961 = vset.pattern.permute.xlu0 1
    %962 = vperm.xlu0 %961, %v46
    %v963 = vpop.permute.xlu0 %962
    %964 = vset.pattern.permute.xlu0 1
    %965 = vperm.xlu0 %964, %v47
    %v966 = vpop.permute.xlu0 %965
    %967 = vset.pattern.permute.xlu0 1
    %968 = vperm.xlu0 %967, %v48
    %v969 = vpop.permute.xlu0 %968
    %970 = vset.pattern.permute.xlu0 1
    %971 = vperm.xlu0 %970, %v49
    %v972 = vpop.permute.xlu0 %971
    %973 = vset.pattern.permute.xlu0 1
    %974 = vperm.xlu0 %973, %v50
    %v975 = vpop.permute.xlu0 %974
    %976 = vset.pattern.permute.xlu0 1
    %977 = vperm.xlu0 %976, %v51
    %v978 = vpop.permute.xlu0 %977
    %979 = vset.pattern.permute.xlu0 1
    %980 = vperm.xlu0 %979, %v52
    %v981 = vpop.permute.xlu0 %980
    %982 = vset.pattern.permute.xlu0 1
    %983 = vperm.xlu0 %982, %v53
    %v984 = vpop.permute.xlu0 %983
    %985 = vset.pattern.permute.xlu0 1
    %986 = vperm.xlu0 %985, %v54
    %v987 = vpop.permute.xlu0 %986
    %988 = vset.pattern.permute.xlu0 1
    %989 = vperm.xlu0 %988, %v55
    %v990 = vpop.permute.xlu0 %989
    %991 = vset.pattern.permute.xlu0 1
    %992 = vperm.xlu0 %991, %v56
    %v993 = vpop.permute.xlu0 %992
    %994 = vset.pattern.permute.xlu0 1
    %995 = vperm.xlu0 %994, %v57
    %v996 = vpop.permute.xlu0 %995
    %997 = vset.pattern.permute.xlu0 1
    %998 = vperm.xlu0 %997, %v58
    %v999 = vpop.permute.xlu0 %998
    %1000 = vset.pattern.permute.xlu0 1
    %1001 = vperm.xlu0 %1000, %v59
    %v1002 = vpop.permute.xlu0 %1001
    %1003 = vset.pattern.permute.xlu0 1
    %1004 = vperm.xlu0 %1003, %v60
    %v1005 = vpop.permute.xlu0 %1004
    %1006 = vset.pattern.permute.xlu0 1
    %1007 = vperm.xlu0 %1006, %v61
    %v1008 = vpop.permute.xlu0 %1007
    %1009 = vset.pattern.permute.xlu0 1
    %1010 = vperm.xlu0 %1009, %v62
    %v1011 = vpop.permute.xlu0 %1010
    %1012 = vset.pattern.permute.xlu0 1
    %1013 = vperm.xlu0 %1012, %v63
    %v1014 = vpop.permute.xlu0 %1013
    %1015 = vset.pattern.permute.xlu0 1
    %1016 = vperm.xlu0 %1015, %v64
    %v1017 = vpop.permute.xlu0 %1016
    %1018 = vset.pattern.permute.xlu0 1
    %1019 = vperm.xlu0 %1018, %v65
    %v1020 = vpop.permute.xlu0 %1019
    %1021 = vset.pattern.permute.xlu0 1
    %1022 = vperm.xlu0 %1021, %v66
    %v1023 = vpop.permute.xlu0 %1022
    %1024 = vset.pattern.permute.xlu0 1
    %1025 = vperm.xlu0 %1024, %v67
    %v1026 = vpop.permute.xlu0 %1025
    %1027 = vset.pattern.permute.xlu0 1
    %1028 = vperm.xlu0 %1027, %v68
    %v1029 = vpop.permute.xlu0 %1028
    %1030 = vset.pattern.permute.xlu0 1
    %1031 = vperm.xlu0 %1030, %v69
    %v1032 = vpop.permute.xlu0 %1031
    %1033 = vset.pattern.permute.xlu0 1
    %1034 = vperm.xlu0 %1033, %v70
    %v1035 = vpop.permute.xlu0 %1034
    %1036 = vset.pattern.permute.xlu0 1
    %1037 = vperm.xlu0 %1036, %v71
    %v1038 = vpop.permute.xlu0 %1037
    %1039 = vset.pattern.permute.xlu0 1
    %1040 = vperm.xlu0 %1039, %v72
    %v1041 = vpop.permute.xlu0 %1040
    %1042 = vset.pattern.permute.xlu0 1
    %1043 = vperm.xlu0 %1042, %v73
    %v1044 = vpop.permute.xlu0 %1043
    %1045 = vset.pattern.permute.xlu0 1
    %1046 = vperm.xlu0 %1045, %v74
    %v1047 = vpop.permute.xlu0 %1046
    %1048 = vset.pattern.permute.xlu0 1
    %1049 = vperm.xlu0 %1048, %v75
    %v1050 = vpop.permute.xlu0 %1049
    %1051 = vset.pattern.permute.xlu0 1
    %1052 = vperm.xlu0 %1051, %v76
    %v1053 = vpop.permute.xlu0 %1052
    %1054 = vset.pattern.permute.xlu0 1
    %1055 = vperm.xlu0 %1054, %v77
    %v1056 = vpop.permute.xlu0 %1055
    %1057 = vset.pattern.permute.xlu0 1
    %1058 = vperm.xlu0 %1057, %v78
    %v1059 = vpop.permute.xlu0 %1058
    %1060 = vset.pattern.permute.xlu0 1
    %1061 = vperm.xlu0 %1060, %v79
    %v1062 = vpop.permute.xlu0 %1061
    %1063 = vset.pattern.permute.xlu0 1
    %1064 = vperm.xlu0 %1063, %v80
    %v1065 = vpop.permute.xlu0 %1064
    %1066 = vset.pattern.permute.xlu0 1
    %1067 = vperm.xlu0 %1066, %v81
    %v1068 = vpop.permute.xlu0 %1067
    %1069 = vset.pattern.permute.xlu0 1
    %1070 = vperm.xlu0 %1069, %v82
    %v1071 = vpop.permute.xlu0 %1070
    %1072 = vset.pattern.permute.xlu0 1
    %1073 = vperm.xlu0 %1072, %v83
    %v1074 = vpop.permute.xlu0 %1073
    %1075 = vset.pattern.permute.xlu0 1
    %1076 = vperm.xlu0 %1075, %v84
    %v1077 = vpop.permute.xlu0 %1076
    %1078 = vset.pattern.permute.xlu0 1
    %1079 = vperm.xlu0 %1078, %v85
    %v1080 = vpop.permute.xlu0 %1079
    %1081 = vset.pattern.permute.xlu0 1
    %1082 = vperm.xlu0 %1081, %v86
    %v1083 = vpop.permute.xlu0 %1082
    %1084 = vset.pattern.permute.xlu0 1
    %1085 = vperm.xlu0 %1084, %v87
    %v1086 = vpop.permute.xlu0 %1085
    %1087 = vset.pattern.permute.xlu0 1
    %1088 = vperm.xlu0 %1087, %v88
    %v1089 = vpop.permute.xlu0 %1088
    %1090 = vset.pattern.permute.xlu0 1
    %1091 = vperm.xlu0 %1090, %v89
    %v1092 = vpop.permute.xlu0 %1091
    %1093 = vset.pattern.permute.xlu0 1
    %1094 = vperm.xlu0 %1093, %v90
    %v1095 = vpop.permute.xlu0 %1094
    %1096 = vset.pattern.permute.xlu0 1
    %1097 = vperm.xlu0 %1096, %v91
    %v1098 = vpop.permute.xlu0 %1097
    %1099 = vset.pattern.permute.xlu0 1
    %1100 = vperm.xlu0 %1099, %v92
    %v1101 = vpop.permute.xlu0 %1100
    %1102 = vset.pattern.permute.xlu0 1
    %1103 = vperm.xlu0 %1102, %v93
    %v1104 = vpop.permute.xlu0 %1103
    %1105 = vset.pattern.permute.xlu0 1
    %1106 = vperm.xlu0 %1105, %v94
    %v1107 = vpop.permute.xlu0 %1106
    %1108 = vset.pattern.permute.xlu0 1
    %1109 = vperm.xlu0 %1108, %v95
    %v1110 = vpop.permute.xlu0 %1109
    %1111 = vset.pattern.permute.xlu0 1
    %1112 = vperm.xlu0 %1111, %v96
    %v1113 = vpop.permute.xlu0 %1112
    %1114 = vset.pattern.permute.xlu0 1
    %1115 = vperm.xlu0 %1114, %v97
    %v1116 = vpop.permute.xlu0 %1115
    %vm1117 = vcmp.eq.s32.totalorder %v33, %v927
    %vm1118 = vcmp.eq.s32.totalorder %v33, %v930
    %vm1119 = vcmp.eq.s32.totalorder %v33, %v933
    %vm1120 = vcmp.eq.s32.totalorder %v33, %v936
    %vm1121 = vcmp.eq.s32.totalorder %v33, %v939
    %vm1122 = vcmp.eq.s32.totalorder %v33, %v942
    %vm1123 = vcmp.eq.s32.totalorder %v33, %v945
    %vm1124 = vcmp.eq.s32.totalorder %v33, %v948
    %vm1125 = vcmp.eq.s32.totalorder %v33, %v951
    %vm1126 = vcmp.eq.s32.totalorder %v33, %v954
    %vm1127 = vcmp.eq.s32.totalorder %v33, %v957
    %vm1128 = vcmp.eq.s32.totalorder %v33, %v960
    %vm1129 = vcmp.eq.s32.totalorder %v33, %v963
    %vm1130 = vcmp.eq.s32.totalorder %v33, %v966
    %vm1131 = vcmp.eq.s32.totalorder %v33, %v969
    %vm1132 = vcmp.eq.s32.totalorder %v33, %v972
    %vm1133 = vcmp.eq.s32.totalorder %v33, %v975
    %vm1134 = vcmp.eq.s32.totalorder %v33, %v978
    %vm1135 = vcmp.eq.s32.totalorder %v33, %v981
    %vm1136 = vcmp.eq.s32.totalorder %v33, %v984
    %vm1137 = vcmp.eq.s32.totalorder %v33, %v987
    %vm1138 = vcmp.eq.s32.totalorder %v33, %v990
    %vm1139 = vcmp.eq.s32.totalorder %v33, %v993
    %vm1140 = vcmp.eq.s32.totalorder %v33, %v996
    %vm1141 = vcmp.eq.s32.totalorder %v33, %v999
    %vm1142 = vcmp.eq.s32.totalorder %v33, %v1002
    %vm1143 = vcmp.eq.s32.totalorder %v33, %v1005
    %vm1144 = vcmp.eq.s32.totalorder %v33, %v1008
    %vm1145 = vcmp.eq.s32.totalorder %v33, %v1011
    %vm1146 = vcmp.eq.s32.totalorder %v33, %v1014
    %vm1147 = vcmp.eq.s32.totalorder %v33, %v1017
    %vm1148 = vcmp.eq.s32.totalorder %v33, %v1020
    %vm1149 = vcmp.eq.s32.totalorder %v33, %v1023
    %vm1150 = vcmp.eq.s32.totalorder %v33, %v1026
    %vm1151 = vcmp.eq.s32.totalorder %v33, %v1029
    %vm1152 = vcmp.eq.s32.totalorder %v33, %v1032
    %vm1153 = vcmp.eq.s32.totalorder %v33, %v1035
    %vm1154 = vcmp.eq.s32.totalorder %v33, %v1038
    %vm1155 = vcmp.eq.s32.totalorder %v33, %v1041
    %vm1156 = vcmp.eq.s32.totalorder %v33, %v1044
    %vm1157 = vcmp.eq.s32.totalorder %v33, %v1047
    %vm1158 = vcmp.eq.s32.totalorder %v33, %v1050
    %vm1159 = vcmp.eq.s32.totalorder %v33, %v1053
    %vm1160 = vcmp.eq.s32.totalorder %v33, %v1056
    %vm1161 = vcmp.eq.s32.totalorder %v33, %v1059
    %vm1162 = vcmp.eq.s32.totalorder %v33, %v1062
    %vm1163 = vcmp.eq.s32.totalorder %v33, %v1065
    %vm1164 = vcmp.eq.s32.totalorder %v33, %v1068
    %vm1165 = vcmp.eq.s32.totalorder %v33, %v1071
    %vm1166 = vcmp.eq.s32.totalorder %v33, %v1074
    %vm1167 = vcmp.eq.s32.totalorder %v33, %v1077
    %vm1168 = vcmp.eq.s32.totalorder %v33, %v1080
    %vm1169 = vcmp.eq.s32.totalorder %v33, %v1083
    %vm1170 = vcmp.eq.s32.totalorder %v33, %v1086
    %vm1171 = vcmp.eq.s32.totalorder %v33, %v1089
    %vm1172 = vcmp.eq.s32.totalorder %v33, %v1092
    %vm1173 = vcmp.eq.s32.totalorder %v33, %v1095
    %vm1174 = vcmp.eq.s32.totalorder %v33, %v1098
    %vm1175 = vcmp.eq.s32.totalorder %v33, %v1101
    %vm1176 = vcmp.eq.s32.totalorder %v33, %v1104
    %vm1177 = vcmp.eq.s32.totalorder %v33, %v1107
    %vm1178 = vcmp.eq.s32.totalorder %v33, %v1110
    %vm1179 = vcmp.eq.s32.totalorder %v33, %v1113
    %vm1180 = vcmp.eq.s32.totalorder %v33, %v1116
    %v1181 = vsel %vm1117, 1, 0
    %v1182 = vsel %vm1118, 1, 0
    %v1183 = vsel %vm1119, 1, 0
    %v1184 = vsel %vm1120, 1, 0
    %v1185 = vsel %vm1121, 1, 0
    %v1186 = vsel %vm1122, 1, 0
    %v1187 = vsel %vm1123, 1, 0
    %v1188 = vsel %vm1124, 1, 0
    %v1189 = vsel %vm1125, 1, 0
    %v1190 = vsel %vm1126, 1, 0
    %v1191 = vsel %vm1127, 1, 0
    %v1192 = vsel %vm1128, 1, 0
    %v1193 = vsel %vm1129, 1, 0
    %v1194 = vsel %vm1130, 1, 0
    %v1195 = vsel %vm1131, 1, 0
    %v1196 = vsel %vm1132, 1, 0
    %v1197 = vsel %vm1133, 1, 0
    %v1198 = vsel %vm1134, 1, 0
    %v1199 = vsel %vm1135, 1, 0
    %v1200 = vsel %vm1136, 1, 0
    %v1201 = vsel %vm1137, 1, 0
    %v1202 = vsel %vm1138, 1, 0
    %v1203 = vsel %vm1139, 1, 0
    %v1204 = vsel %vm1140, 1, 0
    %v1205 = vsel %vm1141, 1, 0
    %v1206 = vsel %vm1142, 1, 0
    %v1207 = vsel %vm1143, 1, 0
    %v1208 = vsel %vm1144, 1, 0
    %v1209 = vsel %vm1145, 1, 0
    %v1210 = vsel %vm1146, 1, 0
    %v1211 = vsel %vm1147, 1, 0
    %v1212 = vsel %vm1148, 1, 0
    %v1213 = vsel %vm1149, 1, 0
    %v1214 = vsel %vm1150, 1, 0
    %v1215 = vsel %vm1151, 1, 0
    %v1216 = vsel %vm1152, 1, 0
    %v1217 = vsel %vm1153, 1, 0
    %v1218 = vsel %vm1154, 1, 0
    %v1219 = vsel %vm1155, 1, 0
    %v1220 = vsel %vm1156, 1, 0
    %v1221 = vsel %vm1157, 1, 0
    %v1222 = vsel %vm1158, 1, 0
    %v1223 = vsel %vm1159, 1, 0
    %v1224 = vsel %vm1160, 1, 0
    %v1225 = vsel %vm1161, 1, 0
    %v1226 = vsel %vm1162, 1, 0
    %v1227 = vsel %vm1163, 1, 0
    %v1228 = vsel %vm1164, 1, 0
    %v1229 = vsel %vm1165, 1, 0
    %v1230 = vsel %vm1166, 1, 0
    %v1231 = vsel %vm1167, 1, 0
    %v1232 = vsel %vm1168, 1, 0
    %v1233 = vsel %vm1169, 1, 0
    %v1234 = vsel %vm1170, 1, 0
    %v1235 = vsel %vm1171, 1, 0
    %v1236 = vsel %vm1172, 1, 0
    %v1237 = vsel %vm1173, 1, 0
    %v1238 = vsel %vm1174, 1, 0
    %v1239 = vsel %vm1175, 1, 0
    %v1240 = vsel %vm1176, 1, 0
    %v1241 = vsel %vm1177, 1, 0
    %v1242 = vsel %vm1178, 1, 0
    %v1243 = vsel %vm1179, 1, 0
    %v1244 = vsel %vm1180, 1, 0
    %v1245 = vcvt.s32.f32 %v1181
    %v1246 = vcvt.s32.f32 %v1182
    %v1247 = vcvt.s32.f32 %v1183
    %v1248 = vcvt.s32.f32 %v1184
    %v1249 = vcvt.s32.f32 %v1185
    %v1250 = vcvt.s32.f32 %v1186
    %v1251 = vcvt.s32.f32 %v1187
    %v1252 = vcvt.s32.f32 %v1188
    %v1253 = vcvt.s32.f32 %v1189
    %v1254 = vcvt.s32.f32 %v1190
    %v1255 = vcvt.s32.f32 %v1191
    %v1256 = vcvt.s32.f32 %v1192
    %v1257 = vcvt.s32.f32 %v1193
    %v1258 = vcvt.s32.f32 %v1194
    %v1259 = vcvt.s32.f32 %v1195
    %v1260 = vcvt.s32.f32 %v1196
    %v1261 = vcvt.s32.f32 %v1197
    %v1262 = vcvt.s32.f32 %v1198
    %v1263 = vcvt.s32.f32 %v1199
    %v1264 = vcvt.s32.f32 %v1200
    %v1265 = vcvt.s32.f32 %v1201
    %v1266 = vcvt.s32.f32 %v1202
    %v1267 = vcvt.s32.f32 %v1203
    %v1268 = vcvt.s32.f32 %v1204
    %v1269 = vcvt.s32.f32 %v1205
    %v1270 = vcvt.s32.f32 %v1206
    %v1271 = vcvt.s32.f32 %v1207
    %v1272 = vcvt.s32.f32 %v1208
    %v1273 = vcvt.s32.f32 %v1209
    %v1274 = vcvt.s32.f32 %v1210
    %v1275 = vcvt.s32.f32 %v1211
    %v1276 = vcvt.s32.f32 %v1212
    %v1277 = vcvt.s32.f32 %v1213
    %v1278 = vcvt.s32.f32 %v1214
    %v1279 = vcvt.s32.f32 %v1215
    %v1280 = vcvt.s32.f32 %v1216
    %v1281 = vcvt.s32.f32 %v1217
    %v1282 = vcvt.s32.f32 %v1218
    %v1283 = vcvt.s32.f32 %v1219
    %v1284 = vcvt.s32.f32 %v1220
    %v1285 = vcvt.s32.f32 %v1221
    %v1286 = vcvt.s32.f32 %v1222
    %v1287 = vcvt.s32.f32 %v1223
    %v1288 = vcvt.s32.f32 %v1224
    %v1289 = vcvt.s32.f32 %v1225
    %v1290 = vcvt.s32.f32 %v1226
    %v1291 = vcvt.s32.f32 %v1227
    %v1292 = vcvt.s32.f32 %v1228
    %v1293 = vcvt.s32.f32 %v1229
    %v1294 = vcvt.s32.f32 %v1230
    %v1295 = vcvt.s32.f32 %v1231
    %v1296 = vcvt.s32.f32 %v1232
    %v1297 = vcvt.s32.f32 %v1233
    %v1298 = vcvt.s32.f32 %v1234
    %v1299 = vcvt.s32.f32 %v1235
    %v1300 = vcvt.s32.f32 %v1236
    %v1301 = vcvt.s32.f32 %v1237
    %v1302 = vcvt.s32.f32 %v1238
    %v1303 = vcvt.s32.f32 %v1239
    %v1304 = vcvt.s32.f32 %v1240
    %v1305 = vcvt.s32.f32 %v1241
    %v1306 = vcvt.s32.f32 %v1242
    %v1307 = vcvt.s32.f32 %v1243
    %v1308 = vcvt.s32.f32 %v1244
    %v1309 = vpack.c.bf16 %v1246, %v1245
    %v1310 = vpack.c.bf16 %v1248, %v1247
    %v1311 = vpack.c.bf16 %v1250, %v1249
    %v1312 = vpack.c.bf16 %v1252, %v1251
    %v1313 = vpack.c.bf16 %v1254, %v1253
    %v1314 = vpack.c.bf16 %v1256, %v1255
    %v1315 = vpack.c.bf16 %v1258, %v1257
    %v1316 = vpack.c.bf16 %v1260, %v1259
    %v1317 = vpack.c.bf16 %v1262, %v1261
    %v1318 = vpack.c.bf16 %v1264, %v1263
    %v1319 = vpack.c.bf16 %v1266, %v1265
    %v1320 = vpack.c.bf16 %v1268, %v1267
    %v1321 = vpack.c.bf16 %v1270, %v1269
    %v1322 = vpack.c.bf16 %v1272, %v1271
    %v1323 = vpack.c.bf16 %v1274, %v1273
    %v1324 = vpack.c.bf16 %v1276, %v1275
    %v1325 = vpack.c.bf16 %v1278, %v1277
    %v1326 = vpack.c.bf16 %v1280, %v1279
    %v1327 = vpack.c.bf16 %v1282, %v1281
    %v1328 = vpack.c.bf16 %v1284, %v1283
    %v1329 = vpack.c.bf16 %v1286, %v1285
    %v1330 = vpack.c.bf16 %v1288, %v1287
    %v1331 = vpack.c.bf16 %v1290, %v1289
    %v1332 = vpack.c.bf16 %v1292, %v1291
    %v1333 = vpack.c.bf16 %v1294, %v1293
    %v1334 = vpack.c.bf16 %v1296, %v1295
    %v1335 = vpack.c.bf16 %v1298, %v1297
    %v1336 = vpack.c.bf16 %v1300, %v1299
    %v1337 = vpack.c.bf16 %v1302, %v1301
    %v1338 = vpack.c.bf16 %v1304, %v1303
    %v1339 = vpack.c.bf16 %v1306, %v1305
    %v1340 = vpack.c.bf16 %v1308, %v1307
    %v1342 = vsel %vm535, %v1309, 0
    %v1345 = vsel %vm535, %v1310, 0
    %v1348 = vsel %vm535, %v1311, 0
    %v1351 = vsel %vm535, %v1312, 0
    %v1354 = vsel %vm535, %v1313, 0
    %v1357 = vsel %vm535, %v1314, 0
    %v1360 = vsel %vm535, %v1315, 0
    %v1363 = vsel %vm535, %v1316, 0
    %v1366 = vsel %vm535, %v1317, 0
    %v1369 = vsel %vm535, %v1318, 0
    %v1372 = vsel %vm535, %v1319, 0
    %v1375 = vsel %vm535, %v1320, 0
    %v1378 = vsel %vm535, %v1321, 0
    %v1381 = vsel %vm535, %v1322, 0
    %v1384 = vsel %vm535, %v1323, 0
    %v1387 = vsel %vm535, %v1324, 0
    %v1390 = vsel %vm535, %v1325, 0
    %v1393 = vsel %vm535, %v1326, 0
    %v1396 = vsel %vm535, %v1327, 0
    %v1399 = vsel %vm535, %v1328, 0
    %v1402 = vsel %vm535, %v1329, 0
    %v1405 = vsel %vm535, %v1330, 0
    %v1408 = vsel %vm535, %v1331, 0
    %v1411 = vsel %vm535, %v1332, 0
    %v1414 = vsel %vm535, %v1333, 0
    %v1417 = vsel %vm535, %v1334, 0
    %v1420 = vsel %vm535, %v1335, 0
    %v1423 = vsel %vm535, %v1336, 0
    %v1426 = vsel %vm535, %v1337, 0
    %v1429 = vsel %vm535, %v1338, 0
    %v1432 = vsel %vm535, %v1339, 0
    %v1435 = vsel %vm535, %v1340, 0
    %1437 = vmatprep.subr.bf16.mxu0 0
    %1438 = vmatpush1.bf16.msra.mxu0 0
    %1439 = vmatprep.subr.bf16.mxu0 0
    %1440 = vmatpush1.bf16.msra.mxu0 0
    %1441 = vmatprep.subr.bf16.mxu0 0
    %1442 = vmatpush1.bf16.msra.mxu0 0
    %1443 = vmatprep.subr.bf16.mxu0 0
    %1444 = vmatpush1.bf16.msra.mxu0 0
    %1445 = vmatprep.subr.bf16.mxu0 0
    %1446 = vmatpush1.bf16.msra.mxu0 %v634
    %1447 = vmatprep.subr.bf16.mxu0 0
    %1448 = vmatpush1.bf16.msra.mxu0 %v530
    %1449 = vmatprep.subr.bf16.mxu0 0
    %1450 = vmatpush1.bf16.msra.mxu0 %v529
    %1451 = vmatprep.subr.bf16.mxu0 0
    %1452 = vmatpush1.bf16.msra.mxu0 %v528
    %1453 = vmatprep.subr.bf16.mxu0 0
    %1454 = vmatpush2.bf16.msra.mxu0 0
    %1455 = vmatprep.subr.bf16.mxu0 0
    %1456 = vmatpush2.bf16.msra.mxu0 0
    %1457 = vmatprep.subr.bf16.mxu0 0
    %1458 = vmatpush2.bf16.msra.mxu0 0
    %1459 = vmatprep.subr.bf16.mxu0 0
    %1460 = vmatpush2.bf16.msra.mxu0 0
    %1461 = vmatprep.subr.bf16.mxu0 0
    %1462 = vmatpush2.bf16.msra.mxu0 0
    %1463 = vmatprep.subr.bf16.mxu0 0
    %1464 = vmatpush2.bf16.msra.mxu0 0
    %1465 = vmatprep.subr.bf16.mxu0 0
    %1466 = vmatpush2.bf16.msra.mxu0 0
    %1467 = vmatprep.subr.bf16.mxu0 0
    %1468 = vmatpush2.bf16.msra.mxu0 0
    %1469 = vmatprep.mubr.bf16.mxu0 0
    %1470 = vmatmul.mubr.bf16.gmra.mxu0 %v1342
    %v1471 = vpop.f32.mrf.mxu0
    %v1472 = vadd.f32 0.0, %v1471
    %v1473 = vpop.f32.mrf.mxu0
    %v1474 = vpop.f32.mrf.mxu0
    %v1475 = vadd.f32 0.0, %v1474
    %v1476 = vpop.f32.mrf.mxu0
    %1477 = vmatprep.mubr.bf16.mxu0 0
    %1478 = vmatmul.mubr.bf16.gmra.mxu0 %v1345
    %v1479 = vpop.f32.mrf.mxu0
    %v1480 = vadd.f32 0.0, %v1479
    %v1481 = vpop.f32.mrf.mxu0
    %v1482 = vpop.f32.mrf.mxu0
    %v1483 = vadd.f32 0.0, %v1482
    %v1484 = vpop.f32.mrf.mxu0
    %1485 = vmatprep.mubr.bf16.mxu0 0
    %1486 = vmatmul.mubr.bf16.gmra.mxu0 %v1348
    %v1487 = vpop.f32.mrf.mxu0
    %v1488 = vadd.f32 0.0, %v1487
    %v1489 = vpop.f32.mrf.mxu0
    %v1490 = vpop.f32.mrf.mxu0
    %v1491 = vadd.f32 0.0, %v1490
    %v1492 = vpop.f32.mrf.mxu0
    %1493 = vmatprep.mubr.bf16.mxu0 0
    %1494 = vmatmul.mubr.bf16.gmra.mxu0 %v1351
    %v1495 = vpop.f32.mrf.mxu0
    %v1496 = vadd.f32 0.0, %v1495
    %v1497 = vpop.f32.mrf.mxu0
    %v1498 = vpop.f32.mrf.mxu0
    %v1499 = vadd.f32 0.0, %v1498
    %v1500 = vpop.f32.mrf.mxu0
    %1501 = vmatprep.mubr.bf16.mxu0 0
    %1502 = vmatmul.mubr.bf16.gmra.mxu0 %v1354
    %v1503 = vpop.f32.mrf.mxu0
    %v1504 = vadd.f32 0.0, %v1503
    %v1505 = vpop.f32.mrf.mxu0
    %v1506 = vpop.f32.mrf.mxu0
    %v1507 = vadd.f32 0.0, %v1506
    %v1508 = vpop.f32.mrf.mxu0
    %1509 = vmatprep.mubr.bf16.mxu0 0
    %1510 = vmatmul.mubr.bf16.gmra.mxu0 %v1357
    %v1511 = vpop.f32.mrf.mxu0
    %v1512 = vadd.f32 0.0, %v1511
    %v1513 = vpop.f32.mrf.mxu0
    %v1514 = vpop.f32.mrf.mxu0
    %v1515 = vadd.f32 0.0, %v1514
    %v1516 = vpop.f32.mrf.mxu0
    %1517 = vmatprep.mubr.bf16.mxu0 0
    %1518 = vmatmul.mubr.bf16.gmra.mxu0 %v1360
    %v1519 = vpop.f32.mrf.mxu0
    %v1520 = vadd.f32 0.0, %v1519
    %v1521 = vpop.f32.mrf.mxu0
    %v1522 = vpop.f32.mrf.mxu0
    %v1523 = vadd.f32 0.0, %v1522
    %v1524 = vpop.f32.mrf.mxu0
    %1525 = vmatprep.mubr.bf16.mxu0 0
    %1526 = vmatmul.mubr.bf16.gmra.mxu0 %v1363
    %v1527 = vpop.f32.mrf.mxu0
    %v1528 = vadd.f32 0.0, %v1527
    %v1529 = vpop.f32.mrf.mxu0
    %v1530 = vpop.f32.mrf.mxu0
    %v1531 = vadd.f32 0.0, %v1530
    %v1532 = vpop.f32.mrf.mxu0
    %1533 = vmatprep.mubr.bf16.mxu0 0
    %1534 = vmatmul.mubr.bf16.gmra.mxu0 %v1366
    %v1535 = vpop.f32.mrf.mxu0
    %v1536 = vadd.f32 0.0, %v1535
    %v1537 = vpop.f32.mrf.mxu0
    %v1538 = vpop.f32.mrf.mxu0
    %v1539 = vadd.f32 0.0, %v1538
    %v1540 = vpop.f32.mrf.mxu0
    %1541 = vmatprep.mubr.bf16.mxu0 0
    %1542 = vmatmul.mubr.bf16.gmra.mxu0 %v1369
    %v1543 = vpop.f32.mrf.mxu0
    %v1544 = vadd.f32 0.0, %v1543
    %v1545 = vpop.f32.mrf.mxu0
    %v1546 = vpop.f32.mrf.mxu0
    %v1547 = vadd.f32 0.0, %v1546
    %v1548 = vpop.f32.mrf.mxu0
    %1549 = vmatprep.mubr.bf16.mxu0 0
    %1550 = vmatmul.mubr.bf16.gmra.mxu0 %v1372
    %v1551 = vpop.f32.mrf.mxu0
    %v1552 = vadd.f32 0.0, %v1551
    %v1553 = vpop.f32.mrf.mxu0
    %v1554 = vpop.f32.mrf.mxu0
    %v1555 = vadd.f32 0.0, %v1554
    %v1556 = vpop.f32.mrf.mxu0
    %1557 = vmatprep.mubr.bf16.mxu0 0
    %1558 = vmatmul.mubr.bf16.gmra.mxu0 %v1375
    %v1559 = vpop.f32.mrf.mxu0
    %v1560 = vadd.f32 0.0, %v1559
    %v1561 = vpop.f32.mrf.mxu0
    %v1562 = vpop.f32.mrf.mxu0
    %v1563 = vadd.f32 0.0, %v1562
    %v1564 = vpop.f32.mrf.mxu0
    %1565 = vmatprep.mubr.bf16.mxu0 0
    %1566 = vmatmul.mubr.bf16.gmra.mxu0 %v1378
    %v1567 = vpop.f32.mrf.mxu0
    %v1568 = vadd.f32 0.0, %v1567
    %v1569 = vpop.f32.mrf.mxu0
    %v1570 = vpop.f32.mrf.mxu0
    %v1571 = vadd.f32 0.0, %v1570
    %v1572 = vpop.f32.mrf.mxu0
    %1573 = vmatprep.mubr.bf16.mxu0 0
    %1574 = vmatmul.mubr.bf16.gmra.mxu0 %v1381
    %v1575 = vpop.f32.mrf.mxu0
    %v1576 = vadd.f32 0.0, %v1575
    %v1577 = vpop.f32.mrf.mxu0
    %v1578 = vpop.f32.mrf.mxu0
    %v1579 = vadd.f32 0.0, %v1578
    %v1580 = vpop.f32.mrf.mxu0
    %1581 = vmatprep.mubr.bf16.mxu0 0
    %1582 = vmatmul.mubr.bf16.gmra.mxu0 %v1384
    %v1583 = vpop.f32.mrf.mxu0
    %v1584 = vadd.f32 0.0, %v1583
    %v1585 = vpop.f32.mrf.mxu0
    %v1586 = vpop.f32.mrf.mxu0
    %v1587 = vadd.f32 0.0, %v1586
    %v1588 = vpop.f32.mrf.mxu0
    %1589 = vmatprep.mubr.bf16.mxu0 0
    %1590 = vmatmul.mubr.bf16.gmra.mxu0 %v1387
    %v1591 = vpop.f32.mrf.mxu0
    %v1592 = vadd.f32 0.0, %v1591
    %v1593 = vpop.f32.mrf.mxu0
    %v1594 = vpop.f32.mrf.mxu0
    %v1595 = vadd.f32 0.0, %v1594
    %v1596 = vpop.f32.mrf.mxu0
    %1597 = vmatprep.mubr.bf16.mxu0 0
    %1598 = vmatmul.mubr.bf16.gmra.mxu0 %v1390
    %v1599 = vpop.f32.mrf.mxu0
    %v1600 = vadd.f32 0.0, %v1599
    %v1601 = vpop.f32.mrf.mxu0
    %v1602 = vpop.f32.mrf.mxu0
    %v1603 = vadd.f32 0.0, %v1602
    %v1604 = vpop.f32.mrf.mxu0
    %1605 = vmatprep.mubr.bf16.mxu0 0
    %1606 = vmatmul.mubr.bf16.gmra.mxu0 %v1393
    %v1607 = vpop.f32.mrf.mxu0
    %v1608 = vadd.f32 0.0, %v1607
    %v1609 = vpop.f32.mrf.mxu0
    %v1610 = vpop.f32.mrf.mxu0
    %v1611 = vadd.f32 0.0, %v1610
    %v1612 = vpop.f32.mrf.mxu0
    %1613 = vmatprep.mubr.bf16.mxu0 0
    %1614 = vmatmul.mubr.bf16.gmra.mxu0 %v1396
    %v1615 = vpop.f32.mrf.mxu0
    %v1616 = vadd.f32 0.0, %v1615
    %v1617 = vpop.f32.mrf.mxu0
    %v1618 = vpop.f32.mrf.mxu0
    %v1619 = vadd.f32 0.0, %v1618
    %v1620 = vpop.f32.mrf.mxu0
    %1621 = vmatprep.mubr.bf16.mxu0 0
    %1622 = vmatmul.mubr.bf16.gmra.mxu0 %v1399
    %v1623 = vpop.f32.mrf.mxu0
    %v1624 = vadd.f32 0.0, %v1623
    %v1625 = vpop.f32.mrf.mxu0
    %v1626 = vpop.f32.mrf.mxu0
    %v1627 = vadd.f32 0.0, %v1626
    %v1628 = vpop.f32.mrf.mxu0
    %1629 = vmatprep.mubr.bf16.mxu0 0
    %1630 = vmatmul.mubr.bf16.gmra.mxu0 %v1402
    %v1631 = vpop.f32.mrf.mxu0
    %v1632 = vadd.f32 0.0, %v1631
    %v1633 = vpop.f32.mrf.mxu0
    %v1634 = vpop.f32.mrf.mxu0
    %v1635 = vadd.f32 0.0, %v1634
    %v1636 = vpop.f32.mrf.mxu0
    %1637 = vmatprep.mubr.bf16.mxu0 0
    %1638 = vmatmul.mubr.bf16.gmra.mxu0 %v1405
    %v1639 = vpop.f32.mrf.mxu0
    %v1640 = vadd.f32 0.0, %v1639
    %v1641 = vpop.f32.mrf.mxu0
    %v1642 = vpop.f32.mrf.mxu0
    %v1643 = vadd.f32 0.0, %v1642
    %v1644 = vpop.f32.mrf.mxu0
    %1645 = vmatprep.mubr.bf16.mxu0 0
    %1646 = vmatmul.mubr.bf16.gmra.mxu0 %v1408
    %v1647 = vpop.f32.mrf.mxu0
    %v1648 = vadd.f32 0.0, %v1647
    %v1649 = vpop.f32.mrf.mxu0
    %v1650 = vpop.f32.mrf.mxu0
    %v1651 = vadd.f32 0.0, %v1650
    %v1652 = vpop.f32.mrf.mxu0
    %1653 = vmatprep.mubr.bf16.mxu0 0
    %1654 = vmatmul.mubr.bf16.gmra.mxu0 %v1411
    %v1655 = vpop.f32.mrf.mxu0
    %v1656 = vadd.f32 0.0, %v1655
    %v1657 = vpop.f32.mrf.mxu0
    %v1658 = vpop.f32.mrf.mxu0
    %v1659 = vadd.f32 0.0, %v1658
    %v1660 = vpop.f32.mrf.mxu0
    %1661 = vmatprep.mubr.bf16.mxu0 0
    %1662 = vmatmul.mubr.bf16.gmra.mxu0 %v1414
    %v1663 = vpop.f32.mrf.mxu0
    %v1664 = vadd.f32 0.0, %v1663
    %v1665 = vpop.f32.mrf.mxu0
    %v1666 = vpop.f32.mrf.mxu0
    %v1667 = vadd.f32 0.0, %v1666
    %v1668 = vpop.f32.mrf.mxu0
    %1669 = vmatprep.mubr.bf16.mxu0 0
    %1670 = vmatmul.mubr.bf16.gmra.mxu0 %v1417
    %v1671 = vpop.f32.mrf.mxu0
    %v1672 = vadd.f32 0.0, %v1671
    %v1673 = vpop.f32.mrf.mxu0
    %v1674 = vpop.f32.mrf.mxu0
    %v1675 = vadd.f32 0.0, %v1674
    %v1676 = vpop.f32.mrf.mxu0
    %1677 = vmatprep.mubr.bf16.mxu0 0
    %1678 = vmatmul.mubr.bf16.gmra.mxu0 %v1420
    %v1679 = vpop.f32.mrf.mxu0
    %v1680 = vadd.f32 0.0, %v1679
    %v1681 = vpop.f32.mrf.mxu0
    %v1682 = vpop.f32.mrf.mxu0
    %v1683 = vadd.f32 0.0, %v1682
    %v1684 = vpop.f32.mrf.mxu0
    %1685 = vmatprep.mubr.bf16.mxu0 0
    %1686 = vmatmul.mubr.bf16.gmra.mxu0 %v1423
    %v1687 = vpop.f32.mrf.mxu0
    %v1688 = vadd.f32 0.0, %v1687
    %v1689 = vpop.f32.mrf.mxu0
    %v1690 = vpop.f32.mrf.mxu0
    %v1691 = vadd.f32 0.0, %v1690
    %v1692 = vpop.f32.mrf.mxu0
    %1693 = vmatprep.mubr.bf16.mxu0 0
    %1694 = vmatmul.mubr.bf16.gmra.mxu0 %v1426
    %v1695 = vpop.f32.mrf.mxu0
    %v1696 = vadd.f32 0.0, %v1695
    %v1697 = vpop.f32.mrf.mxu0
    %v1698 = vpop.f32.mrf.mxu0
    %v1699 = vadd.f32 0.0, %v1698
    %v1700 = vpop.f32.mrf.mxu0
    %1701 = vmatprep.mubr.bf16.mxu0 0
    %1702 = vmatmul.mubr.bf16.gmra.mxu0 %v1429
    %v1703 = vpop.f32.mrf.mxu0
    %v1704 = vadd.f32 0.0, %v1703
    %v1705 = vpop.f32.mrf.mxu0
    %v1706 = vpop.f32.mrf.mxu0
    %v1707 = vadd.f32 0.0, %v1706
    %v1708 = vpop.f32.mrf.mxu0
    %1709 = vmatprep.mubr.bf16.mxu0 0
    %1710 = vmatmul.mubr.bf16.gmra.mxu0 %v1432
    %v1711 = vpop.f32.mrf.mxu0
    %v1712 = vadd.f32 0.0, %v1711
    %v1713 = vpop.f32.mrf.mxu0
    %v1714 = vpop.f32.mrf.mxu0
    %v1715 = vadd.f32 0.0, %v1714
    %v1716 = vpop.f32.mrf.mxu0
    %1717 = vmatprep.mubr.bf16.mxu0 0
    %1718 = vmatmul.mubr.bf16.gmra.mxu0 %v1435
    %v1719 = vpop.f32.mrf.mxu0
    %v1720 = vadd.f32 0.0, %v1719
    %v1721 = vpop.f32.mrf.mxu0
    %v1722 = vpop.f32.mrf.mxu0
    %v1723 = vadd.f32 0.0, %v1722
    %v1724 = vpop.f32.mrf.mxu0
    %1725 = vdwg.mxu0
    %1726 = vset.pattern.permute.xlu0 2
    %1727 = vperm.xlu0 %1726, %v34
    %v1728 = vpop.permute.xlu0 %1727
    %1729 = vset.pattern.permute.xlu0 2
    %1730 = vperm.xlu0 %1729, %v35
    %v1731 = vpop.permute.xlu0 %1730
    %1732 = vset.pattern.permute.xlu0 2
    %1733 = vperm.xlu0 %1732, %v36
    %v1734 = vpop.permute.xlu0 %1733
    %1735 = vset.pattern.permute.xlu0 2
    %1736 = vperm.xlu0 %1735, %v37
    %v1737 = vpop.permute.xlu0 %1736
    %1738 = vset.pattern.permute.xlu0 2
    %1739 = vperm.xlu0 %1738, %v38
    %v1740 = vpop.permute.xlu0 %1739
    %1741 = vset.pattern.permute.xlu0 2
    %1742 = vperm.xlu0 %1741, %v39
    %v1743 = vpop.permute.xlu0 %1742
    %1744 = vset.pattern.permute.xlu0 2
    %1745 = vperm.xlu0 %1744, %v40
    %v1746 = vpop.permute.xlu0 %1745
    %1747 = vset.pattern.permute.xlu0 2
    %1748 = vperm.xlu0 %1747, %v41
    %v1749 = vpop.permute.xlu0 %1748
    %1750 = vset.pattern.permute.xlu0 2
    %1751 = vperm.xlu0 %1750, %v42
    %v1752 = vpop.permute.xlu0 %1751
    %1753 = vset.pattern.permute.xlu0 2
    %1754 = vperm.xlu0 %1753, %v43
    %v1755 = vpop.permute.xlu0 %1754
    %1756 = vset.pattern.permute.xlu0 2
    %1757 = vperm.xlu0 %1756, %v44
    %v1758 = vpop.permute.xlu0 %1757
    %1759 = vset.pattern.permute.xlu0 2
    %1760 = vperm.xlu0 %1759, %v45
    %v1761 = vpop.permute.xlu0 %1760
    %1762 = vset.pattern.permute.xlu0 2
    %1763 = vperm.xlu0 %1762, %v46
    %v1764 = vpop.permute.xlu0 %1763
    %1765 = vset.pattern.permute.xlu0 2
    %1766 = vperm.xlu0 %1765, %v47
    %v1767 = vpop.permute.xlu0 %1766
    %1768 = vset.pattern.permute.xlu0 2
    %1769 = vperm.xlu0 %1768, %v48
    %v1770 = vpop.permute.xlu0 %1769
    %1771 = vset.pattern.permute.xlu0 2
    %1772 = vperm.xlu0 %1771, %v49
    %v1773 = vpop.permute.xlu0 %1772
    %1774 = vset.pattern.permute.xlu0 2
    %1775 = vperm.xlu0 %1774, %v50
    %v1776 = vpop.permute.xlu0 %1775
    %1777 = vset.pattern.permute.xlu0 2
    %1778 = vperm.xlu0 %1777, %v51
    %v1779 = vpop.permute.xlu0 %1778
    %1780 = vset.pattern.permute.xlu0 2
    %1781 = vperm.xlu0 %1780, %v52
    %v1782 = vpop.permute.xlu0 %1781
    %1783 = vset.pattern.permute.xlu0 2
    %1784 = vperm.xlu0 %1783, %v53
    %v1785 = vpop.permute.xlu0 %1784
    %1786 = vset.pattern.permute.xlu0 2
    %1787 = vperm.xlu0 %1786, %v54
    %v1788 = vpop.permute.xlu0 %1787
    %1789 = vset.pattern.permute.xlu0 2
    %1790 = vperm.xlu0 %1789, %v55
    %v1791 = vpop.permute.xlu0 %1790
    %1792 = vset.pattern.permute.xlu0 2
    %1793 = vperm.xlu0 %1792, %v56
    %v1794 = vpop.permute.xlu0 %1793
    %1795 = vset.pattern.permute.xlu0 2
    %1796 = vperm.xlu0 %1795, %v57
    %v1797 = vpop.permute.xlu0 %1796
    %1798 = vset.pattern.permute.xlu0 2
    %1799 = vperm.xlu0 %1798, %v58
    %v1800 = vpop.permute.xlu0 %1799
    %1801 = vset.pattern.permute.xlu0 2
    %1802 = vperm.xlu0 %1801, %v59
    %v1803 = vpop.permute.xlu0 %1802
    %1804 = vset.pattern.permute.xlu0 2
    %1805 = vperm.xlu0 %1804, %v60
    %v1806 = vpop.permute.xlu0 %1805
    %1807 = vset.pattern.permute.xlu0 2
    %1808 = vperm.xlu0 %1807, %v61
    %v1809 = vpop.permute.xlu0 %1808
    %1810 = vset.pattern.permute.xlu0 2
    %1811 = vperm.xlu0 %1810, %v62
    %v1812 = vpop.permute.xlu0 %1811
    %1813 = vset.pattern.permute.xlu0 2
    %1814 = vperm.xlu0 %1813, %v63
    %v1815 = vpop.permute.xlu0 %1814
    %1816 = vset.pattern.permute.xlu0 2
    %1817 = vperm.xlu0 %1816, %v64
    %v1818 = vpop.permute.xlu0 %1817
    %1819 = vset.pattern.permute.xlu0 2
    %1820 = vperm.xlu0 %1819, %v65
    %v1821 = vpop.permute.xlu0 %1820
    %1822 = vset.pattern.permute.xlu0 2
    %1823 = vperm.xlu0 %1822, %v66
    %v1824 = vpop.permute.xlu0 %1823
    %1825 = vset.pattern.permute.xlu0 2
    %1826 = vperm.xlu0 %1825, %v67
    %v1827 = vpop.permute.xlu0 %1826
    %1828 = vset.pattern.permute.xlu0 2
    %1829 = vperm.xlu0 %1828, %v68
    %v1830 = vpop.permute.xlu0 %1829
    %1831 = vset.pattern.permute.xlu0 2
    %1832 = vperm.xlu0 %1831, %v69
    %v1833 = vpop.permute.xlu0 %1832
    %1834 = vset.pattern.permute.xlu0 2
    %1835 = vperm.xlu0 %1834, %v70
    %v1836 = vpop.permute.xlu0 %1835
    %1837 = vset.pattern.permute.xlu0 2
    %1838 = vperm.xlu0 %1837, %v71
    %v1839 = vpop.permute.xlu0 %1838
    %1840 = vset.pattern.permute.xlu0 2
    %1841 = vperm.xlu0 %1840, %v72
    %v1842 = vpop.permute.xlu0 %1841
    %1843 = vset.pattern.permute.xlu0 2
    %1844 = vperm.xlu0 %1843, %v73
    %v1845 = vpop.permute.xlu0 %1844
    %1846 = vset.pattern.permute.xlu0 2
    %1847 = vperm.xlu0 %1846, %v74
    %v1848 = vpop.permute.xlu0 %1847
    %1849 = vset.pattern.permute.xlu0 2
    %1850 = vperm.xlu0 %1849, %v75
    %v1851 = vpop.permute.xlu0 %1850
    %1852 = vset.pattern.permute.xlu0 2
    %1853 = vperm.xlu0 %1852, %v76
    %v1854 = vpop.permute.xlu0 %1853
    %1855 = vset.pattern.permute.xlu0 2
    %1856 = vperm.xlu0 %1855, %v77
    %v1857 = vpop.permute.xlu0 %1856
    %1858 = vset.pattern.permute.xlu0 2
    %1859 = vperm.xlu0 %1858, %v78
    %v1860 = vpop.permute.xlu0 %1859
    %1861 = vset.pattern.permute.xlu0 2
    %1862 = vperm.xlu0 %1861, %v79
    %v1863 = vpop.permute.xlu0 %1862
    %1864 = vset.pattern.permute.xlu0 2
    %1865 = vperm.xlu0 %1864, %v80
    %v1866 = vpop.permute.xlu0 %1865
    %1867 = vset.pattern.permute.xlu0 2
    %1868 = vperm.xlu0 %1867, %v81
    %v1869 = vpop.permute.xlu0 %1868
    %1870 = vset.pattern.permute.xlu0 2
    %1871 = vperm.xlu0 %1870, %v82
    %v1872 = vpop.permute.xlu0 %1871
    %1873 = vset.pattern.permute.xlu0 2
    %1874 = vperm.xlu0 %1873, %v83
    %v1875 = vpop.permute.xlu0 %1874
    %1876 = vset.pattern.permute.xlu0 2
    %1877 = vperm.xlu0 %1876, %v84
    %v1878 = vpop.permute.xlu0 %1877
    %1879 = vset.pattern.permute.xlu0 2
    %1880 = vperm.xlu0 %1879, %v85
    %v1881 = vpop.permute.xlu0 %1880
    %1882 = vset.pattern.permute.xlu0 2
    %1883 = vperm.xlu0 %1882, %v86
    %v1884 = vpop.permute.xlu0 %1883
    %1885 = vset.pattern.permute.xlu0 2
    %1886 = vperm.xlu0 %1885, %v87
    %v1887 = vpop.permute.xlu0 %1886
    %1888 = vset.pattern.permute.xlu0 2
    %1889 = vperm.xlu0 %1888, %v88
    %v1890 = vpop.permute.xlu0 %1889
    %1891 = vset.pattern.permute.xlu0 2
    %1892 = vperm.xlu0 %1891, %v89
    %v1893 = vpop.permute.xlu0 %1892
    %1894 = vset.pattern.permute.xlu0 2
    %1895 = vperm.xlu0 %1894, %v90
    %v1896 = vpop.permute.xlu0 %1895
    %1897 = vset.pattern.permute.xlu0 2
    %1898 = vperm.xlu0 %1897, %v91
    %v1899 = vpop.permute.xlu0 %1898
    %1900 = vset.pattern.permute.xlu0 2
    %1901 = vperm.xlu0 %1900, %v92
    %v1902 = vpop.permute.xlu0 %1901
    %1903 = vset.pattern.permute.xlu0 2
    %1904 = vperm.xlu0 %1903, %v93
    %v1905 = vpop.permute.xlu0 %1904
    %1906 = vset.pattern.permute.xlu0 2
    %1907 = vperm.xlu0 %1906, %v94
    %v1908 = vpop.permute.xlu0 %1907
    %1909 = vset.pattern.permute.xlu0 2
    %1910 = vperm.xlu0 %1909, %v95
    %v1911 = vpop.permute.xlu0 %1910
    %1912 = vset.pattern.permute.xlu0 2
    %1913 = vperm.xlu0 %1912, %v96
    %v1914 = vpop.permute.xlu0 %1913
    %1915 = vset.pattern.permute.xlu0 2
    %1916 = vperm.xlu0 %1915, %v97
    %v1917 = vpop.permute.xlu0 %1916
    %vm1918 = vcmp.eq.s32.totalorder %v33, %v1728
    %vm1919 = vcmp.eq.s32.totalorder %v33, %v1731
    %vm1920 = vcmp.eq.s32.totalorder %v33, %v1734
    %vm1921 = vcmp.eq.s32.totalorder %v33, %v1737
    %vm1922 = vcmp.eq.s32.totalorder %v33, %v1740
    %vm1923 = vcmp.eq.s32.totalorder %v33, %v1743
    %vm1924 = vcmp.eq.s32.totalorder %v33, %v1746
    %vm1925 = vcmp.eq.s32.totalorder %v33, %v1749
    %vm1926 = vcmp.eq.s32.totalorder %v33, %v1752
    %vm1927 = vcmp.eq.s32.totalorder %v33, %v1755
    %vm1928 = vcmp.eq.s32.totalorder %v33, %v1758
    %vm1929 = vcmp.eq.s32.totalorder %v33, %v1761
    %vm1930 = vcmp.eq.s32.totalorder %v33, %v1764
    %vm1931 = vcmp.eq.s32.totalorder %v33, %v1767
    %vm1932 = vcmp.eq.s32.totalorder %v33, %v1770
    %vm1933 = vcmp.eq.s32.totalorder %v33, %v1773
    %vm1934 = vcmp.eq.s32.totalorder %v33, %v1776
    %vm1935 = vcmp.eq.s32.totalorder %v33, %v1779
    %vm1936 = vcmp.eq.s32.totalorder %v33, %v1782
    %vm1937 = vcmp.eq.s32.totalorder %v33, %v1785
    %vm1938 = vcmp.eq.s32.totalorder %v33, %v1788
    %vm1939 = vcmp.eq.s32.totalorder %v33, %v1791
    %vm1940 = vcmp.eq.s32.totalorder %v33, %v1794
    %vm1941 = vcmp.eq.s32.totalorder %v33, %v1797
    %vm1942 = vcmp.eq.s32.totalorder %v33, %v1800
    %vm1943 = vcmp.eq.s32.totalorder %v33, %v1803
    %vm1944 = vcmp.eq.s32.totalorder %v33, %v1806
    %vm1945 = vcmp.eq.s32.totalorder %v33, %v1809
    %vm1946 = vcmp.eq.s32.totalorder %v33, %v1812
    %vm1947 = vcmp.eq.s32.totalorder %v33, %v1815
    %vm1948 = vcmp.eq.s32.totalorder %v33, %v1818
    %vm1949 = vcmp.eq.s32.totalorder %v33, %v1821
    %vm1950 = vcmp.eq.s32.totalorder %v33, %v1824
    %vm1951 = vcmp.eq.s32.totalorder %v33, %v1827
    %vm1952 = vcmp.eq.s32.totalorder %v33, %v1830
    %vm1953 = vcmp.eq.s32.totalorder %v33, %v1833
    %vm1954 = vcmp.eq.s32.totalorder %v33, %v1836
    %vm1955 = vcmp.eq.s32.totalorder %v33, %v1839
    %vm1956 = vcmp.eq.s32.totalorder %v33, %v1842
    %vm1957 = vcmp.eq.s32.totalorder %v33, %v1845
    %vm1958 = vcmp.eq.s32.totalorder %v33, %v1848
    %vm1959 = vcmp.eq.s32.totalorder %v33, %v1851
    %vm1960 = vcmp.eq.s32.totalorder %v33, %v1854
    %vm1961 = vcmp.eq.s32.totalorder %v33, %v1857
    %vm1962 = vcmp.eq.s32.totalorder %v33, %v1860
    %vm1963 = vcmp.eq.s32.totalorder %v33, %v1863
    %vm1964 = vcmp.eq.s32.totalorder %v33, %v1866
    %vm1965 = vcmp.eq.s32.totalorder %v33, %v1869
    %vm1966 = vcmp.eq.s32.totalorder %v33, %v1872
    %vm1967 = vcmp.eq.s32.totalorder %v33, %v1875
    %vm1968 = vcmp.eq.s32.totalorder %v33, %v1878
    %vm1969 = vcmp.eq.s32.totalorder %v33, %v1881
    %vm1970 = vcmp.eq.s32.totalorder %v33, %v1884
    %vm1971 = vcmp.eq.s32.totalorder %v33, %v1887
    %vm1972 = vcmp.eq.s32.totalorder %v33, %v1890
    %vm1973 = vcmp.eq.s32.totalorder %v33, %v1893
    %vm1974 = vcmp.eq.s32.totalorder %v33, %v1896
    %vm1975 = vcmp.eq.s32.totalorder %v33, %v1899
    %vm1976 = vcmp.eq.s32.totalorder %v33, %v1902
    %vm1977 = vcmp.eq.s32.totalorder %v33, %v1905
    %vm1978 = vcmp.eq.s32.totalorder %v33, %v1908
    %vm1979 = vcmp.eq.s32.totalorder %v33, %v1911
    %vm1980 = vcmp.eq.s32.totalorder %v33, %v1914
    %vm1981 = vcmp.eq.s32.totalorder %v33, %v1917
    %v1982 = vsel %vm1918, 1, 0
    %v1983 = vsel %vm1919, 1, 0
    %v1984 = vsel %vm1920, 1, 0
    %v1985 = vsel %vm1921, 1, 0
    %v1986 = vsel %vm1922, 1, 0
    %v1987 = vsel %vm1923, 1, 0
    %v1988 = vsel %vm1924, 1, 0
    %v1989 = vsel %vm1925, 1, 0
    %v1990 = vsel %vm1926, 1, 0
    %v1991 = vsel %vm1927, 1, 0
    %v1992 = vsel %vm1928, 1, 0
    %v1993 = vsel %vm1929, 1, 0
    %v1994 = vsel %vm1930, 1, 0
    %v1995 = vsel %vm1931, 1, 0
    %v1996 = vsel %vm1932, 1, 0
    %v1997 = vsel %vm1933, 1, 0
    %v1998 = vsel %vm1934, 1, 0
    %v1999 = vsel %vm1935, 1, 0
    %v2000 = vsel %vm1936, 1, 0
    %v2001 = vsel %vm1937, 1, 0
    %v2002 = vsel %vm1938, 1, 0
    %v2003 = vsel %vm1939, 1, 0
    %v2004 = vsel %vm1940, 1, 0
    %v2005 = vsel %vm1941, 1, 0
    %v2006 = vsel %vm1942, 1, 0
    %v2007 = vsel %vm1943, 1, 0
    %v2008 = vsel %vm1944, 1, 0
    %v2009 = vsel %vm1945, 1, 0
    %v2010 = vsel %vm1946, 1, 0
    %v2011 = vsel %vm1947, 1, 0
    %v2012 = vsel %vm1948, 1, 0
    %v2013 = vsel %vm1949, 1, 0
    %v2014 = vsel %vm1950, 1, 0
    %v2015 = vsel %vm1951, 1, 0
    %v2016 = vsel %vm1952, 1, 0
    %v2017 = vsel %vm1953, 1, 0
    %v2018 = vsel %vm1954, 1, 0
    %v2019 = vsel %vm1955, 1, 0
    %v2020 = vsel %vm1956, 1, 0
    %v2021 = vsel %vm1957, 1, 0
    %v2022 = vsel %vm1958, 1, 0
    %v2023 = vsel %vm1959, 1, 0
    %v2024 = vsel %vm1960, 1, 0
    %v2025 = vsel %vm1961, 1, 0
    %v2026 = vsel %vm1962, 1, 0
    %v2027 = vsel %vm1963, 1, 0
    %v2028 = vsel %vm1964, 1, 0
    %v2029 = vsel %vm1965, 1, 0
    %v2030 = vsel %vm1966, 1, 0
    %v2031 = vsel %vm1967, 1, 0
    %v2032 = vsel %vm1968, 1, 0
    %v2033 = vsel %vm1969, 1, 0
    %v2034 = vsel %vm1970, 1, 0
    %v2035 = vsel %vm1971, 1, 0
    %v2036 = vsel %vm1972, 1, 0
    %v2037 = vsel %vm1973, 1, 0
    %v2038 = vsel %vm1974, 1, 0
    %v2039 = vsel %vm1975, 1, 0
    %v2040 = vsel %vm1976, 1, 0
    %v2041 = vsel %vm1977, 1, 0
    %v2042 = vsel %vm1978, 1, 0
    %v2043 = vsel %vm1979, 1, 0
    %v2044 = vsel %vm1980, 1, 0
    %v2045 = vsel %vm1981, 1, 0
    %v2046 = vcvt.s32.f32 %v1982
    %v2047 = vcvt.s32.f32 %v1983
    %v2048 = vcvt.s32.f32 %v1984
    %v2049 = vcvt.s32.f32 %v1985
    %v2050 = vcvt.s32.f32 %v1986
    %v2051 = vcvt.s32.f32 %v1987
    %v2052 = vcvt.s32.f32 %v1988
    %v2053 = vcvt.s32.f32 %v1989
    %v2054 = vcvt.s32.f32 %v1990
    %v2055 = vcvt.s32.f32 %v1991
    %v2056 = vcvt.s32.f32 %v1992
    %v2057 = vcvt.s32.f32 %v1993
    %v2058 = vcvt.s32.f32 %v1994
    %v2059 = vcvt.s32.f32 %v1995
    %v2060 = vcvt.s32.f32 %v1996
    %v2061 = vcvt.s32.f32 %v1997
    %v2062 = vcvt.s32.f32 %v1998
    %v2063 = vcvt.s32.f32 %v1999
    %v2064 = vcvt.s32.f32 %v2000
    %v2065 = vcvt.s32.f32 %v2001
    %v2066 = vcvt.s32.f32 %v2002
    %v2067 = vcvt.s32.f32 %v2003
    %v2068 = vcvt.s32.f32 %v2004
    %v2069 = vcvt.s32.f32 %v2005
    %v2070 = vcvt.s32.f32 %v2006
    %v2071 = vcvt.s32.f32 %v2007
    %v2072 = vcvt.s32.f32 %v2008
    %v2073 = vcvt.s32.f32 %v2009
    %v2074 = vcvt.s32.f32 %v2010
    %v2075 = vcvt.s32.f32 %v2011
    %v2076 = vcvt.s32.f32 %v2012
    %v2077 = vcvt.s32.f32 %v2013
    %v2078 = vcvt.s32.f32 %v2014
    %v2079 = vcvt.s32.f32 %v2015
    %v2080 = vcvt.s32.f32 %v2016
    %v2081 = vcvt.s32.f32 %v2017
    %v2082 = vcvt.s32.f32 %v2018
    %v2083 = vcvt.s32.f32 %v2019
    %v2084 = vcvt.s32.f32 %v2020
    %v2085 = vcvt.s32.f32 %v2021
    %v2086 = vcvt.s32.f32 %v2022
    %v2087 = vcvt.s32.f32 %v2023
    %v2088 = vcvt.s32.f32 %v2024
    %v2089 = vcvt.s32.f32 %v2025
    %v2090 = vcvt.s32.f32 %v2026
    %v2091 = vcvt.s32.f32 %v2027
    %v2092 = vcvt.s32.f32 %v2028
    %v2093 = vcvt.s32.f32 %v2029
    %v2094 = vcvt.s32.f32 %v2030
    %v2095 = vcvt.s32.f32 %v2031
    %v2096 = vcvt.s32.f32 %v2032
    %v2097 = vcvt.s32.f32 %v2033
    %v2098 = vcvt.s32.f32 %v2034
    %v2099 = vcvt.s32.f32 %v2035
    %v2100 = vcvt.s32.f32 %v2036
    %v2101 = vcvt.s32.f32 %v2037
    %v2102 = vcvt.s32.f32 %v2038
    %v2103 = vcvt.s32.f32 %v2039
    %v2104 = vcvt.s32.f32 %v2040
    %v2105 = vcvt.s32.f32 %v2041
    %v2106 = vcvt.s32.f32 %v2042
    %v2107 = vcvt.s32.f32 %v2043
    %v2108 = vcvt.s32.f32 %v2044
    %v2109 = vcvt.s32.f32 %v2045
    %v2110 = vpack.c.bf16 %v2047, %v2046
    %v2111 = vpack.c.bf16 %v2049, %v2048
    %v2112 = vpack.c.bf16 %v2051, %v2050
    %v2113 = vpack.c.bf16 %v2053, %v2052
    %v2114 = vpack.c.bf16 %v2055, %v2054
    %v2115 = vpack.c.bf16 %v2057, %v2056
    %v2116 = vpack.c.bf16 %v2059, %v2058
    %v2117 = vpack.c.bf16 %v2061, %v2060
    %v2118 = vpack.c.bf16 %v2063, %v2062
    %v2119 = vpack.c.bf16 %v2065, %v2064
    %v2120 = vpack.c.bf16 %v2067, %v2066
    %v2121 = vpack.c.bf16 %v2069, %v2068
    %v2122 = vpack.c.bf16 %v2071, %v2070
    %v2123 = vpack.c.bf16 %v2073, %v2072
    %v2124 = vpack.c.bf16 %v2075, %v2074
    %v2125 = vpack.c.bf16 %v2077, %v2076
    %v2126 = vpack.c.bf16 %v2079, %v2078
    %v2127 = vpack.c.bf16 %v2081, %v2080
    %v2128 = vpack.c.bf16 %v2083, %v2082
    %v2129 = vpack.c.bf16 %v2085, %v2084
    %v2130 = vpack.c.bf16 %v2087, %v2086
    %v2131 = vpack.c.bf16 %v2089, %v2088
    %v2132 = vpack.c.bf16 %v2091, %v2090
    %v2133 = vpack.c.bf16 %v2093, %v2092
    %v2134 = vpack.c.bf16 %v2095, %v2094
    %v2135 = vpack.c.bf16 %v2097, %v2096
    %v2136 = vpack.c.bf16 %v2099, %v2098
    %v2137 = vpack.c.bf16 %v2101, %v2100
    %v2138 = vpack.c.bf16 %v2103, %v2102
    %v2139 = vpack.c.bf16 %v2105, %v2104
    %v2140 = vpack.c.bf16 %v2107, %v2106
    %v2141 = vpack.c.bf16 %v2109, %v2108
    %v2143 = vsel %vm535, %v2110, 0
    %v2146 = vsel %vm535, %v2111, 0
    %v2149 = vsel %vm535, %v2112, 0
    %v2152 = vsel %vm535, %v2113, 0
    %v2155 = vsel %vm535, %v2114, 0
    %v2158 = vsel %vm535, %v2115, 0
    %v2161 = vsel %vm535, %v2116, 0
    %v2164 = vsel %vm535, %v2117, 0
    %v2167 = vsel %vm535, %v2118, 0
    %v2170 = vsel %vm535, %v2119, 0
    %v2173 = vsel %vm535, %v2120, 0
    %v2176 = vsel %vm535, %v2121, 0
    %v2179 = vsel %vm535, %v2122, 0
    %v2182 = vsel %vm535, %v2123, 0
    %v2185 = vsel %vm535, %v2124, 0
    %v2188 = vsel %vm535, %v2125, 0
    %v2191 = vsel %vm535, %v2126, 0
    %v2194 = vsel %vm535, %v2127, 0
    %v2197 = vsel %vm535, %v2128, 0
    %v2200 = vsel %vm535, %v2129, 0
    %v2203 = vsel %vm535, %v2130, 0
    %v2206 = vsel %vm535, %v2131, 0
    %v2209 = vsel %vm535, %v2132, 0
    %v2212 = vsel %vm535, %v2133, 0
    %v2215 = vsel %vm535, %v2134, 0
    %v2218 = vsel %vm535, %v2135, 0
    %v2221 = vsel %vm535, %v2136, 0
    %v2224 = vsel %vm535, %v2137, 0
    %v2227 = vsel %vm535, %v2138, 0
    %v2230 = vsel %vm535, %v2139, 0
    %v2233 = vsel %vm535, %v2140, 0
    %v2236 = vsel %vm535, %v2141, 0
    %2238 = vmatprep.subr.bf16.mxu0 0
    %2239 = vmatpush1.bf16.msra.mxu0 0
    %2240 = vmatprep.subr.bf16.mxu0 0
    %2241 = vmatpush1.bf16.msra.mxu0 0
    %2242 = vmatprep.subr.bf16.mxu0 0
    %2243 = vmatpush1.bf16.msra.mxu0 0
    %2244 = vmatprep.subr.bf16.mxu0 0
    %2245 = vmatpush1.bf16.msra.mxu0 0
    %2246 = vmatprep.subr.bf16.mxu0 0
    %2247 = vmatpush1.bf16.msra.mxu0 %v634
    %2248 = vmatprep.subr.bf16.mxu0 0
    %2249 = vmatpush1.bf16.msra.mxu0 %v530
    %2250 = vmatprep.subr.bf16.mxu0 0
    %2251 = vmatpush1.bf16.msra.mxu0 %v529
    %2252 = vmatprep.subr.bf16.mxu0 0
    %2253 = vmatpush1.bf16.msra.mxu0 %v528
    %2254 = vmatprep.subr.bf16.mxu0 0
    %2255 = vmatpush2.bf16.msra.mxu0 0
    %2256 = vmatprep.subr.bf16.mxu0 0
    %2257 = vmatpush2.bf16.msra.mxu0 0
    %2258 = vmatprep.subr.bf16.mxu0 0
    %2259 = vmatpush2.bf16.msra.mxu0 0
    %2260 = vmatprep.subr.bf16.mxu0 0
    %2261 = vmatpush2.bf16.msra.mxu0 0
    %2262 = vmatprep.subr.bf16.mxu0 0
    %2263 = vmatpush2.bf16.msra.mxu0 0
    %2264 = vmatprep.subr.bf16.mxu0 0
    %2265 = vmatpush2.bf16.msra.mxu0 0
    %2266 = vmatprep.subr.bf16.mxu0 0
    %2267 = vmatpush2.bf16.msra.mxu0 0
    %2268 = vmatprep.subr.bf16.mxu0 0
    %2269 = vmatpush2.bf16.msra.mxu0 0
    %2270 = vmatprep.mubr.bf16.mxu0 0
    %2271 = vmatmul.mubr.bf16.gmra.mxu0 %v2143
    %v2272 = vpop.f32.mrf.mxu0
    %v2273 = vadd.f32 0.0, %v2272
    %v2274 = vpop.f32.mrf.mxu0
    %v2275 = vpop.f32.mrf.mxu0
    %v2276 = vadd.f32 0.0, %v2275
    %v2277 = vpop.f32.mrf.mxu0
    %2278 = vmatprep.mubr.bf16.mxu0 0
    %2279 = vmatmul.mubr.bf16.gmra.mxu0 %v2146
    %v2280 = vpop.f32.mrf.mxu0
    %v2281 = vadd.f32 0.0, %v2280
    %v2282 = vpop.f32.mrf.mxu0
    %v2283 = vpop.f32.mrf.mxu0
    %v2284 = vadd.f32 0.0, %v2283
    %v2285 = vpop.f32.mrf.mxu0
    %2286 = vmatprep.mubr.bf16.mxu0 0
    %2287 = vmatmul.mubr.bf16.gmra.mxu0 %v2149
    %v2288 = vpop.f32.mrf.mxu0
    %v2289 = vadd.f32 0.0, %v2288
    %v2290 = vpop.f32.mrf.mxu0
    %v2291 = vpop.f32.mrf.mxu0
    %v2292 = vadd.f32 0.0, %v2291
    %v2293 = vpop.f32.mrf.mxu0
    %2294 = vmatprep.mubr.bf16.mxu0 0
    %2295 = vmatmul.mubr.bf16.gmra.mxu0 %v2152
    %v2296 = vpop.f32.mrf.mxu0
    %v2297 = vadd.f32 0.0, %v2296
    %v2298 = vpop.f32.mrf.mxu0
    %v2299 = vpop.f32.mrf.mxu0
    %v2300 = vadd.f32 0.0, %v2299
    %v2301 = vpop.f32.mrf.mxu0
    %2302 = vmatprep.mubr.bf16.mxu0 0
    %2303 = vmatmul.mubr.bf16.gmra.mxu0 %v2155
    %v2304 = vpop.f32.mrf.mxu0
    %v2305 = vadd.f32 0.0, %v2304
    %v2306 = vpop.f32.mrf.mxu0
    %v2307 = vpop.f32.mrf.mxu0
    %v2308 = vadd.f32 0.0, %v2307
    %v2309 = vpop.f32.mrf.mxu0
    %2310 = vmatprep.mubr.bf16.mxu0 0
    %2311 = vmatmul.mubr.bf16.gmra.mxu0 %v2158
    %v2312 = vpop.f32.mrf.mxu0
    %v2313 = vadd.f32 0.0, %v2312
    %v2314 = vpop.f32.mrf.mxu0
    %v2315 = vpop.f32.mrf.mxu0
    %v2316 = vadd.f32 0.0, %v2315
    %v2317 = vpop.f32.mrf.mxu0
    %2318 = vmatprep.mubr.bf16.mxu0 0
    %2319 = vmatmul.mubr.bf16.gmra.mxu0 %v2161
    %v2320 = vpop.f32.mrf.mxu0
    %v2321 = vadd.f32 0.0, %v2320
    %v2322 = vpop.f32.mrf.mxu0
    %v2323 = vpop.f32.mrf.mxu0
    %v2324 = vadd.f32 0.0, %v2323
    %v2325 = vpop.f32.mrf.mxu0
    %2326 = vmatprep.mubr.bf16.mxu0 0
    %2327 = vmatmul.mubr.bf16.gmra.mxu0 %v2164
    %v2328 = vpop.f32.mrf.mxu0
    %v2329 = vadd.f32 0.0, %v2328
    %v2330 = vpop.f32.mrf.mxu0
    %v2331 = vpop.f32.mrf.mxu0
    %v2332 = vadd.f32 0.0, %v2331
    %v2333 = vpop.f32.mrf.mxu0
    %2334 = vmatprep.mubr.bf16.mxu0 0
    %2335 = vmatmul.mubr.bf16.gmra.mxu0 %v2167
    %v2336 = vpop.f32.mrf.mxu0
    %v2337 = vadd.f32 0.0, %v2336
    %v2338 = vpop.f32.mrf.mxu0
    %v2339 = vpop.f32.mrf.mxu0
    %v2340 = vadd.f32 0.0, %v2339
    %v2341 = vpop.f32.mrf.mxu0
    %2342 = vmatprep.mubr.bf16.mxu0 0
    %2343 = vmatmul.mubr.bf16.gmra.mxu0 %v2170
    %v2344 = vpop.f32.mrf.mxu0
    %v2345 = vadd.f32 0.0, %v2344
    %v2346 = vpop.f32.mrf.mxu0
    %v2347 = vpop.f32.mrf.mxu0
    %v2348 = vadd.f32 0.0, %v2347
    %v2349 = vpop.f32.mrf.mxu0
    %2350 = vmatprep.mubr.bf16.mxu0 0
    %2351 = vmatmul.mubr.bf16.gmra.mxu0 %v2173
    %v2352 = vpop.f32.mrf.mxu0
    %v2353 = vadd.f32 0.0, %v2352
    %v2354 = vpop.f32.mrf.mxu0
    %v2355 = vpop.f32.mrf.mxu0
    %v2356 = vadd.f32 0.0, %v2355
    %v2357 = vpop.f32.mrf.mxu0
    %2358 = vmatprep.mubr.bf16.mxu0 0
    %2359 = vmatmul.mubr.bf16.gmra.mxu0 %v2176
    %v2360 = vpop.f32.mrf.mxu0
    %v2361 = vadd.f32 0.0, %v2360
    %v2362 = vpop.f32.mrf.mxu0
    %v2363 = vpop.f32.mrf.mxu0
    %v2364 = vadd.f32 0.0, %v2363
    %v2365 = vpop.f32.mrf.mxu0
    %2366 = vmatprep.mubr.bf16.mxu0 0
    %2367 = vmatmul.mubr.bf16.gmra.mxu0 %v2179
    %v2368 = vpop.f32.mrf.mxu0
    %v2369 = vadd.f32 0.0, %v2368
    %v2370 = vpop.f32.mrf.mxu0
    %v2371 = vpop.f32.mrf.mxu0
    %v2372 = vadd.f32 0.0, %v2371
    %v2373 = vpop.f32.mrf.mxu0
    %2374 = vmatprep.mubr.bf16.mxu0 0
    %2375 = vmatmul.mubr.bf16.gmra.mxu0 %v2182
    %v2376 = vpop.f32.mrf.mxu0
    %v2377 = vadd.f32 0.0, %v2376
    %v2378 = vpop.f32.mrf.mxu0
    %v2379 = vpop.f32.mrf.mxu0
    %v2380 = vadd.f32 0.0, %v2379
    %v2381 = vpop.f32.mrf.mxu0
    %2382 = vmatprep.mubr.bf16.mxu0 0
    %2383 = vmatmul.mubr.bf16.gmra.mxu0 %v2185
    %v2384 = vpop.f32.mrf.mxu0
    %v2385 = vadd.f32 0.0, %v2384
    %v2386 = vpop.f32.mrf.mxu0
    %v2387 = vpop.f32.mrf.mxu0
    %v2388 = vadd.f32 0.0, %v2387
    %v2389 = vpop.f32.mrf.mxu0
    %2390 = vmatprep.mubr.bf16.mxu0 0
    %2391 = vmatmul.mubr.bf16.gmra.mxu0 %v2188
    %v2392 = vpop.f32.mrf.mxu0
    %v2393 = vadd.f32 0.0, %v2392
    %v2394 = vpop.f32.mrf.mxu0
    %v2395 = vpop.f32.mrf.mxu0
    %v2396 = vadd.f32 0.0, %v2395
    %v2397 = vpop.f32.mrf.mxu0
    %2398 = vmatprep.mubr.bf16.mxu0 0
    %2399 = vmatmul.mubr.bf16.gmra.mxu0 %v2191
    %v2400 = vpop.f32.mrf.mxu0
    %v2401 = vadd.f32 0.0, %v2400
    %v2402 = vpop.f32.mrf.mxu0
    %v2403 = vpop.f32.mrf.mxu0
    %v2404 = vadd.f32 0.0, %v2403
    %v2405 = vpop.f32.mrf.mxu0
    %2406 = vmatprep.mubr.bf16.mxu0 0
    %2407 = vmatmul.mubr.bf16.gmra.mxu0 %v2194
    %v2408 = vpop.f32.mrf.mxu0
    %v2409 = vadd.f32 0.0, %v2408
    %v2410 = vpop.f32.mrf.mxu0
    %v2411 = vpop.f32.mrf.mxu0
    %v2412 = vadd.f32 0.0, %v2411
    %v2413 = vpop.f32.mrf.mxu0
    %2414 = vmatprep.mubr.bf16.mxu0 0
    %2415 = vmatmul.mubr.bf16.gmra.mxu0 %v2197
    %v2416 = vpop.f32.mrf.mxu0
    %v2417 = vadd.f32 0.0, %v2416
    %v2418 = vpop.f32.mrf.mxu0
    %v2419 = vpop.f32.mrf.mxu0
    %v2420 = vadd.f32 0.0, %v2419
    %v2421 = vpop.f32.mrf.mxu0
    %2422 = vmatprep.mubr.bf16.mxu0 0
    %2423 = vmatmul.mubr.bf16.gmra.mxu0 %v2200
    %v2424 = vpop.f32.mrf.mxu0
    %v2425 = vadd.f32 0.0, %v2424
    %v2426 = vpop.f32.mrf.mxu0
    %v2427 = vpop.f32.mrf.mxu0
    %v2428 = vadd.f32 0.0, %v2427
    %v2429 = vpop.f32.mrf.mxu0
    %2430 = vmatprep.mubr.bf16.mxu0 0
    %2431 = vmatmul.mubr.bf16.gmra.mxu0 %v2203
    %v2432 = vpop.f32.mrf.mxu0
    %v2433 = vadd.f32 0.0, %v2432
    %v2434 = vpop.f32.mrf.mxu0
    %v2435 = vpop.f32.mrf.mxu0
    %v2436 = vadd.f32 0.0, %v2435
    %v2437 = vpop.f32.mrf.mxu0
    %2438 = vmatprep.mubr.bf16.mxu0 0
    %2439 = vmatmul.mubr.bf16.gmra.mxu0 %v2206
    %v2440 = vpop.f32.mrf.mxu0
    %v2441 = vadd.f32 0.0, %v2440
    %v2442 = vpop.f32.mrf.mxu0
    %v2443 = vpop.f32.mrf.mxu0
    %v2444 = vadd.f32 0.0, %v2443
    %v2445 = vpop.f32.mrf.mxu0
    %2446 = vmatprep.mubr.bf16.mxu0 0
    %2447 = vmatmul.mubr.bf16.gmra.mxu0 %v2209
    %v2448 = vpop.f32.mrf.mxu0
    %v2449 = vadd.f32 0.0, %v2448
    %v2450 = vpop.f32.mrf.mxu0
    %v2451 = vpop.f32.mrf.mxu0
    %v2452 = vadd.f32 0.0, %v2451
    %v2453 = vpop.f32.mrf.mxu0
    %2454 = vmatprep.mubr.bf16.mxu0 0
    %2455 = vmatmul.mubr.bf16.gmra.mxu0 %v2212
    %v2456 = vpop.f32.mrf.mxu0
    %v2457 = vadd.f32 0.0, %v2456
    %v2458 = vpop.f32.mrf.mxu0
    %v2459 = vpop.f32.mrf.mxu0
    %v2460 = vadd.f32 0.0, %v2459
    %v2461 = vpop.f32.mrf.mxu0
    %2462 = vmatprep.mubr.bf16.mxu0 0
    %2463 = vmatmul.mubr.bf16.gmra.mxu0 %v2215
    %v2464 = vpop.f32.mrf.mxu0
    %v2465 = vadd.f32 0.0, %v2464
    %v2466 = vpop.f32.mrf.mxu0
    %v2467 = vpop.f32.mrf.mxu0
    %v2468 = vadd.f32 0.0, %v2467
    %v2469 = vpop.f32.mrf.mxu0
    %2470 = vmatprep.mubr.bf16.mxu0 0
    %2471 = vmatmul.mubr.bf16.gmra.mxu0 %v2218
    %v2472 = vpop.f32.mrf.mxu0
    %v2473 = vadd.f32 0.0, %v2472
    %v2474 = vpop.f32.mrf.mxu0
    %v2475 = vpop.f32.mrf.mxu0
    %v2476 = vadd.f32 0.0, %v2475
    %v2477 = vpop.f32.mrf.mxu0
    %2478 = vmatprep.mubr.bf16.mxu0 0
    %2479 = vmatmul.mubr.bf16.gmra.mxu0 %v2221
    %v2480 = vpop.f32.mrf.mxu0
    %v2481 = vadd.f32 0.0, %v2480
    %v2482 = vpop.f32.mrf.mxu0
    %v2483 = vpop.f32.mrf.mxu0
    %v2484 = vadd.f32 0.0, %v2483
    %v2485 = vpop.f32.mrf.mxu0
    %2486 = vmatprep.mubr.bf16.mxu0 0
    %2487 = vmatmul.mubr.bf16.gmra.mxu0 %v2224
    %v2488 = vpop.f32.mrf.mxu0
    %v2489 = vadd.f32 0.0, %v2488
    %v2490 = vpop.f32.mrf.mxu0
    %v2491 = vpop.f32.mrf.mxu0
    %v2492 = vadd.f32 0.0, %v2491
    %v2493 = vpop.f32.mrf.mxu0
    %2494 = vmatprep.mubr.bf16.mxu0 0
    %2495 = vmatmul.mubr.bf16.gmra.mxu0 %v2227
    %v2496 = vpop.f32.mrf.mxu0
    %v2497 = vadd.f32 0.0, %v2496
    %v2498 = vpop.f32.mrf.mxu0
    %v2499 = vpop.f32.mrf.mxu0
    %v2500 = vadd.f32 0.0, %v2499
    %v2501 = vpop.f32.mrf.mxu0
    %2502 = vmatprep.mubr.bf16.mxu0 0
    %2503 = vmatmul.mubr.bf16.gmra.mxu0 %v2230
    %v2504 = vpop.f32.mrf.mxu0
    %v2505 = vadd.f32 0.0, %v2504
    %v2506 = vpop.f32.mrf.mxu0
    %v2507 = vpop.f32.mrf.mxu0
    %v2508 = vadd.f32 0.0, %v2507
    %v2509 = vpop.f32.mrf.mxu0
    %2510 = vmatprep.mubr.bf16.mxu0 0
    %2511 = vmatmul.mubr.bf16.gmra.mxu0 %v2233
    %v2512 = vpop.f32.mrf.mxu0
    %v2513 = vadd.f32 0.0, %v2512
    %v2514 = vpop.f32.mrf.mxu0
    %v2515 = vpop.f32.mrf.mxu0
    %v2516 = vadd.f32 0.0, %v2515
    %v2517 = vpop.f32.mrf.mxu0
    %2518 = vmatprep.mubr.bf16.mxu0 0
    %2519 = vmatmul.mubr.bf16.gmra.mxu0 %v2236
    %v2520 = vpop.f32.mrf.mxu0
    %v2521 = vadd.f32 0.0, %v2520
    %v2522 = vpop.f32.mrf.mxu0
    %v2523 = vpop.f32.mrf.mxu0
    %v2524 = vadd.f32 0.0, %v2523
    %v2525 = vpop.f32.mrf.mxu0
    %2526 = vdwg.mxu0
    %2527 = vset.pattern.permute.xlu0 3
    %2528 = vperm.xlu0 %2527, %v34
    %v2529 = vpop.permute.xlu0 %2528
    %2530 = vset.pattern.permute.xlu0 3
    %2531 = vperm.xlu0 %2530, %v35
    %v2532 = vpop.permute.xlu0 %2531
    %2533 = vset.pattern.permute.xlu0 3
    %2534 = vperm.xlu0 %2533, %v36
    %v2535 = vpop.permute.xlu0 %2534
    %2536 = vset.pattern.permute.xlu0 3
    %2537 = vperm.xlu0 %2536, %v37
    %v2538 = vpop.permute.xlu0 %2537
    %2539 = vset.pattern.permute.xlu0 3
    %2540 = vperm.xlu0 %2539, %v38
    %v2541 = vpop.permute.xlu0 %2540
    %2542 = vset.pattern.permute.xlu0 3
    %2543 = vperm.xlu0 %2542, %v39
    %v2544 = vpop.permute.xlu0 %2543
    %2545 = vset.pattern.permute.xlu0 3
    %2546 = vperm.xlu0 %2545, %v40
    %v2547 = vpop.permute.xlu0 %2546
    %2548 = vset.pattern.permute.xlu0 3
    %2549 = vperm.xlu0 %2548, %v41
    %v2550 = vpop.permute.xlu0 %2549
    %2551 = vset.pattern.permute.xlu0 3
    %2552 = vperm.xlu0 %2551, %v42
    %v2553 = vpop.permute.xlu0 %2552
    %2554 = vset.pattern.permute.xlu0 3
    %2555 = vperm.xlu0 %2554, %v43
    %v2556 = vpop.permute.xlu0 %2555
    %2557 = vset.pattern.permute.xlu0 3
    %2558 = vperm.xlu0 %2557, %v44
    %v2559 = vpop.permute.xlu0 %2558
    %2560 = vset.pattern.permute.xlu0 3
    %2561 = vperm.xlu0 %2560, %v45
    %v2562 = vpop.permute.xlu0 %2561
    %2563 = vset.pattern.permute.xlu0 3
    %2564 = vperm.xlu0 %2563, %v46
    %v2565 = vpop.permute.xlu0 %2564
    %2566 = vset.pattern.permute.xlu0 3
    %2567 = vperm.xlu0 %2566, %v47
    %v2568 = vpop.permute.xlu0 %2567
    %2569 = vset.pattern.permute.xlu0 3
    %2570 = vperm.xlu0 %2569, %v48
    %v2571 = vpop.permute.xlu0 %2570
    %2572 = vset.pattern.permute.xlu0 3
    %2573 = vperm.xlu0 %2572, %v49
    %v2574 = vpop.permute.xlu0 %2573
    %2575 = vset.pattern.permute.xlu0 3
    %2576 = vperm.xlu0 %2575, %v50
    %v2577 = vpop.permute.xlu0 %2576
    %2578 = vset.pattern.permute.xlu0 3
    %2579 = vperm.xlu0 %2578, %v51
    %v2580 = vpop.permute.xlu0 %2579
    %2581 = vset.pattern.permute.xlu0 3
    %2582 = vperm.xlu0 %2581, %v52
    %v2583 = vpop.permute.xlu0 %2582
    %2584 = vset.pattern.permute.xlu0 3
    %2585 = vperm.xlu0 %2584, %v53
    %v2586 = vpop.permute.xlu0 %2585
    %2587 = vset.pattern.permute.xlu0 3
    %2588 = vperm.xlu0 %2587, %v54
    %v2589 = vpop.permute.xlu0 %2588
    %2590 = vset.pattern.permute.xlu0 3
    %2591 = vperm.xlu0 %2590, %v55
    %v2592 = vpop.permute.xlu0 %2591
    %2593 = vset.pattern.permute.xlu0 3
    %2594 = vperm.xlu0 %2593, %v56
    %v2595 = vpop.permute.xlu0 %2594
    %2596 = vset.pattern.permute.xlu0 3
    %2597 = vperm.xlu0 %2596, %v57
    %v2598 = vpop.permute.xlu0 %2597
    %2599 = vset.pattern.permute.xlu0 3
    %2600 = vperm.xlu0 %2599, %v58
    %v2601 = vpop.permute.xlu0 %2600
    %2602 = vset.pattern.permute.xlu0 3
    %2603 = vperm.xlu0 %2602, %v59
    %v2604 = vpop.permute.xlu0 %2603
    %2605 = vset.pattern.permute.xlu0 3
    %2606 = vperm.xlu0 %2605, %v60
    %v2607 = vpop.permute.xlu0 %2606
    %2608 = vset.pattern.permute.xlu0 3
    %2609 = vperm.xlu0 %2608, %v61
    %v2610 = vpop.permute.xlu0 %2609
    %2611 = vset.pattern.permute.xlu0 3
    %2612 = vperm.xlu0 %2611, %v62
    %v2613 = vpop.permute.xlu0 %2612
    %2614 = vset.pattern.permute.xlu0 3
    %2615 = vperm.xlu0 %2614, %v63
    %v2616 = vpop.permute.xlu0 %2615
    %2617 = vset.pattern.permute.xlu0 3
    %2618 = vperm.xlu0 %2617, %v64
    %v2619 = vpop.permute.xlu0 %2618
    %2620 = vset.pattern.permute.xlu0 3
    %2621 = vperm.xlu0 %2620, %v65
    %v2622 = vpop.permute.xlu0 %2621
    %2623 = vset.pattern.permute.xlu0 3
    %2624 = vperm.xlu0 %2623, %v66
    %v2625 = vpop.permute.xlu0 %2624
    %2626 = vset.pattern.permute.xlu0 3
    %2627 = vperm.xlu0 %2626, %v67
    %v2628 = vpop.permute.xlu0 %2627
    %2629 = vset.pattern.permute.xlu0 3
    %2630 = vperm.xlu0 %2629, %v68
    %v2631 = vpop.permute.xlu0 %2630
    %2632 = vset.pattern.permute.xlu0 3
    %2633 = vperm.xlu0 %2632, %v69
    %v2634 = vpop.permute.xlu0 %2633
    %2635 = vset.pattern.permute.xlu0 3
    %2636 = vperm.xlu0 %2635, %v70
    %v2637 = vpop.permute.xlu0 %2636
    %2638 = vset.pattern.permute.xlu0 3
    %2639 = vperm.xlu0 %2638, %v71
    %v2640 = vpop.permute.xlu0 %2639
    %2641 = vset.pattern.permute.xlu0 3
    %2642 = vperm.xlu0 %2641, %v72
    %v2643 = vpop.permute.xlu0 %2642
    %2644 = vset.pattern.permute.xlu0 3
    %2645 = vperm.xlu0 %2644, %v73
    %v2646 = vpop.permute.xlu0 %2645
    %2647 = vset.pattern.permute.xlu0 3
    %2648 = vperm.xlu0 %2647, %v74
    %v2649 = vpop.permute.xlu0 %2648
    %2650 = vset.pattern.permute.xlu0 3
    %2651 = vperm.xlu0 %2650, %v75
    %v2652 = vpop.permute.xlu0 %2651
    %2653 = vset.pattern.permute.xlu0 3
    %2654 = vperm.xlu0 %2653, %v76
    %v2655 = vpop.permute.xlu0 %2654
    %2656 = vset.pattern.permute.xlu0 3
    %2657 = vperm.xlu0 %2656, %v77
    %v2658 = vpop.permute.xlu0 %2657
    %2659 = vset.pattern.permute.xlu0 3
    %2660 = vperm.xlu0 %2659, %v78
    %v2661 = vpop.permute.xlu0 %2660
    %2662 = vset.pattern.permute.xlu0 3
    %2663 = vperm.xlu0 %2662, %v79
    %v2664 = vpop.permute.xlu0 %2663
    %2665 = vset.pattern.permute.xlu0 3
    %2666 = vperm.xlu0 %2665, %v80
    %v2667 = vpop.permute.xlu0 %2666
    %2668 = vset.pattern.permute.xlu0 3
    %2669 = vperm.xlu0 %2668, %v81
    %v2670 = vpop.permute.xlu0 %2669
    %2671 = vset.pattern.permute.xlu0 3
    %2672 = vperm.xlu0 %2671, %v82
    %v2673 = vpop.permute.xlu0 %2672
    %2674 = vset.pattern.permute.xlu0 3
    %2675 = vperm.xlu0 %2674, %v83
    %v2676 = vpop.permute.xlu0 %2675
    %2677 = vset.pattern.permute.xlu0 3
    %2678 = vperm.xlu0 %2677, %v84
    %v2679 = vpop.permute.xlu0 %2678
    %2680 = vset.pattern.permute.xlu0 3
    %2681 = vperm.xlu0 %2680, %v85
    %v2682 = vpop.permute.xlu0 %2681
    %2683 = vset.pattern.permute.xlu0 3
    %2684 = vperm.xlu0 %2683, %v86
    %v2685 = vpop.permute.xlu0 %2684
    %2686 = vset.pattern.permute.xlu0 3
    %2687 = vperm.xlu0 %2686, %v87
    %v2688 = vpop.permute.xlu0 %2687
    %2689 = vset.pattern.permute.xlu0 3
    %2690 = vperm.xlu0 %2689, %v88
    %v2691 = vpop.permute.xlu0 %2690
    %2692 = vset.pattern.permute.xlu0 3
    %2693 = vperm.xlu0 %2692, %v89
    %v2694 = vpop.permute.xlu0 %2693
    %2695 = vset.pattern.permute.xlu0 3
    %2696 = vperm.xlu0 %2695, %v90
    %v2697 = vpop.permute.xlu0 %2696
    %2698 = vset.pattern.permute.xlu0 3
    %2699 = vperm.xlu0 %2698, %v91
    %v2700 = vpop.permute.xlu0 %2699
    %2701 = vset.pattern.permute.xlu0 3
    %2702 = vperm.xlu0 %2701, %v92
    %v2703 = vpop.permute.xlu0 %2702
    %2704 = vset.pattern.permute.xlu0 3
    %2705 = vperm.xlu0 %2704, %v93
    %v2706 = vpop.permute.xlu0 %2705
    %2707 = vset.pattern.permute.xlu0 3
    %2708 = vperm.xlu0 %2707, %v94
    %v2709 = vpop.permute.xlu0 %2708
    %2710 = vset.pattern.permute.xlu0 3
    %2711 = vperm.xlu0 %2710, %v95
    %v2712 = vpop.permute.xlu0 %2711
    %2713 = vset.pattern.permute.xlu0 3
    %2714 = vperm.xlu0 %2713, %v96
    %v2715 = vpop.permute.xlu0 %2714
    %2716 = vset.pattern.permute.xlu0 3
    %2717 = vperm.xlu0 %2716, %v97
    %v2718 = vpop.permute.xlu0 %2717
    %vm2719 = vcmp.eq.s32.totalorder %v33, %v2529
    %vm2720 = vcmp.eq.s32.totalorder %v33, %v2532
    %vm2721 = vcmp.eq.s32.totalorder %v33, %v2535
    %vm2722 = vcmp.eq.s32.totalorder %v33, %v2538
    %vm2723 = vcmp.eq.s32.totalorder %v33, %v2541
    %vm2724 = vcmp.eq.s32.totalorder %v33, %v2544
    %vm2725 = vcmp.eq.s32.totalorder %v33, %v2547
    %vm2726 = vcmp.eq.s32.totalorder %v33, %v2550
    %vm2727 = vcmp.eq.s32.totalorder %v33, %v2553
    %vm2728 = vcmp.eq.s32.totalorder %v33, %v2556
    %vm2729 = vcmp.eq.s32.totalorder %v33, %v2559
    %vm2730 = vcmp.eq.s32.totalorder %v33, %v2562
    %vm2731 = vcmp.eq.s32.totalorder %v33, %v2565
    %vm2732 = vcmp.eq.s32.totalorder %v33, %v2568
    %vm2733 = vcmp.eq.s32.totalorder %v33, %v2571
    %vm2734 = vcmp.eq.s32.totalorder %v33, %v2574
    %vm2735 = vcmp.eq.s32.totalorder %v33, %v2577
    %vm2736 = vcmp.eq.s32.totalorder %v33, %v2580
    %vm2737 = vcmp.eq.s32.totalorder %v33, %v2583
    %vm2738 = vcmp.eq.s32.totalorder %v33, %v2586
    %vm2739 = vcmp.eq.s32.totalorder %v33, %v2589
    %vm2740 = vcmp.eq.s32.totalorder %v33, %v2592
    %vm2741 = vcmp.eq.s32.totalorder %v33, %v2595
    %vm2742 = vcmp.eq.s32.totalorder %v33, %v2598
    %vm2743 = vcmp.eq.s32.totalorder %v33, %v2601
    %vm2744 = vcmp.eq.s32.totalorder %v33, %v2604
    %vm2745 = vcmp.eq.s32.totalorder %v33, %v2607
    %vm2746 = vcmp.eq.s32.totalorder %v33, %v2610
    %vm2747 = vcmp.eq.s32.totalorder %v33, %v2613
    %vm2748 = vcmp.eq.s32.totalorder %v33, %v2616
    %vm2749 = vcmp.eq.s32.totalorder %v33, %v2619
    %vm2750 = vcmp.eq.s32.totalorder %v33, %v2622
    %vm2751 = vcmp.eq.s32.totalorder %v33, %v2625
    %vm2752 = vcmp.eq.s32.totalorder %v33, %v2628
    %vm2753 = vcmp.eq.s32.totalorder %v33, %v2631
    %vm2754 = vcmp.eq.s32.totalorder %v33, %v2634
    %vm2755 = vcmp.eq.s32.totalorder %v33, %v2637
    %vm2756 = vcmp.eq.s32.totalorder %v33, %v2640
    %vm2757 = vcmp.eq.s32.totalorder %v33, %v2643
    %vm2758 = vcmp.eq.s32.totalorder %v33, %v2646
    %vm2759 = vcmp.eq.s32.totalorder %v33, %v2649
    %vm2760 = vcmp.eq.s32.totalorder %v33, %v2652
    %vm2761 = vcmp.eq.s32.totalorder %v33, %v2655
    %vm2762 = vcmp.eq.s32.totalorder %v33, %v2658
    %vm2763 = vcmp.eq.s32.totalorder %v33, %v2661
    %vm2764 = vcmp.eq.s32.totalorder %v33, %v2664
    %vm2765 = vcmp.eq.s32.totalorder %v33, %v2667
    %vm2766 = vcmp.eq.s32.totalorder %v33, %v2670
    %vm2767 = vcmp.eq.s32.totalorder %v33, %v2673
    %vm2768 = vcmp.eq.s32.totalorder %v33, %v2676
    %vm2769 = vcmp.eq.s32.totalorder %v33, %v2679
    %vm2770 = vcmp.eq.s32.totalorder %v33, %v2682
    %vm2771 = vcmp.eq.s32.totalorder %v33, %v2685
    %vm2772 = vcmp.eq.s32.totalorder %v33, %v2688
    %vm2773 = vcmp.eq.s32.totalorder %v33, %v2691
    %vm2774 = vcmp.eq.s32.totalorder %v33, %v2694
    %vm2775 = vcmp.eq.s32.totalorder %v33, %v2697
    %vm2776 = vcmp.eq.s32.totalorder %v33, %v2700
    %vm2777 = vcmp.eq.s32.totalorder %v33, %v2703
    %vm2778 = vcmp.eq.s32.totalorder %v33, %v2706
    %vm2779 = vcmp.eq.s32.totalorder %v33, %v2709
    %vm2780 = vcmp.eq.s32.totalorder %v33, %v2712
    %vm2781 = vcmp.eq.s32.totalorder %v33, %v2715
    %vm2782 = vcmp.eq.s32.totalorder %v33, %v2718
    %v2783 = vsel %vm2719, 1, 0
    %v2784 = vsel %vm2720, 1, 0
    %v2785 = vsel %vm2721, 1, 0
    %v2786 = vsel %vm2722, 1, 0
    %v2787 = vsel %vm2723, 1, 0
    %v2788 = vsel %vm2724, 1, 0
    %v2789 = vsel %vm2725, 1, 0
    %v2790 = vsel %vm2726, 1, 0
    %v2791 = vsel %vm2727, 1, 0
    %v2792 = vsel %vm2728, 1, 0
    %v2793 = vsel %vm2729, 1, 0
    %v2794 = vsel %vm2730, 1, 0
    %v2795 = vsel %vm2731, 1, 0
    %v2796 = vsel %vm2732, 1, 0
    %v2797 = vsel %vm2733, 1, 0
    %v2798 = vsel %vm2734, 1, 0
    %v2799 = vsel %vm2735, 1, 0
    %v2800 = vsel %vm2736, 1, 0
    %v2801 = vsel %vm2737, 1, 0
    %v2802 = vsel %vm2738, 1, 0
    %v2803 = vsel %vm2739, 1, 0
    %v2804 = vsel %vm2740, 1, 0
    %v2805 = vsel %vm2741, 1, 0
    %v2806 = vsel %vm2742, 1, 0
    %v2807 = vsel %vm2743, 1, 0
    %v2808 = vsel %vm2744, 1, 0
    %v2809 = vsel %vm2745, 1, 0
    %v2810 = vsel %vm2746, 1, 0
    %v2811 = vsel %vm2747, 1, 0
    %v2812 = vsel %vm2748, 1, 0
    %v2813 = vsel %vm2749, 1, 0
    %v2814 = vsel %vm2750, 1, 0
    %v2815 = vsel %vm2751, 1, 0
    %v2816 = vsel %vm2752, 1, 0
    %v2817 = vsel %vm2753, 1, 0
    %v2818 = vsel %vm2754, 1, 0
    %v2819 = vsel %vm2755, 1, 0
    %v2820 = vsel %vm2756, 1, 0
    %v2821 = vsel %vm2757, 1, 0
    %v2822 = vsel %vm2758, 1, 0
    %v2823 = vsel %vm2759, 1, 0
    %v2824 = vsel %vm2760, 1, 0
    %v2825 = vsel %vm2761, 1, 0
    %v2826 = vsel %vm2762, 1, 0
    %v2827 = vsel %vm2763, 1, 0
    %v2828 = vsel %vm2764, 1, 0
    %v2829 = vsel %vm2765, 1, 0
    %v2830 = vsel %vm2766, 1, 0
    %v2831 = vsel %vm2767, 1, 0
    %v2832 = vsel %vm2768, 1, 0
    %v2833 = vsel %vm2769, 1, 0
    %v2834 = vsel %vm2770, 1, 0
    %v2835 = vsel %vm2771, 1, 0
    %v2836 = vsel %vm2772, 1, 0
    %v2837 = vsel %vm2773, 1, 0
    %v2838 = vsel %vm2774, 1, 0
    %v2839 = vsel %vm2775, 1, 0
    %v2840 = vsel %vm2776, 1, 0
    %v2841 = vsel %vm2777, 1, 0
    %v2842 = vsel %vm2778, 1, 0
    %v2843 = vsel %vm2779, 1, 0
    %v2844 = vsel %vm2780, 1, 0
    %v2845 = vsel %vm2781, 1, 0
    %v2846 = vsel %vm2782, 1, 0
    %v2847 = vcvt.s32.f32 %v2783
    %v2848 = vcvt.s32.f32 %v2784
    %v2849 = vcvt.s32.f32 %v2785
    %v2850 = vcvt.s32.f32 %v2786
    %v2851 = vcvt.s32.f32 %v2787
    %v2852 = vcvt.s32.f32 %v2788
    %v2853 = vcvt.s32.f32 %v2789
    %v2854 = vcvt.s32.f32 %v2790
    %v2855 = vcvt.s32.f32 %v2791
    %v2856 = vcvt.s32.f32 %v2792
    %v2857 = vcvt.s32.f32 %v2793
    %v2858 = vcvt.s32.f32 %v2794
    %v2859 = vcvt.s32.f32 %v2795
    %v2860 = vcvt.s32.f32 %v2796
    %v2861 = vcvt.s32.f32 %v2797
    %v2862 = vcvt.s32.f32 %v2798
    %v2863 = vcvt.s32.f32 %v2799
    %v2864 = vcvt.s32.f32 %v2800
    %v2865 = vcvt.s32.f32 %v2801
    %v2866 = vcvt.s32.f32 %v2802
    %v2867 = vcvt.s32.f32 %v2803
    %v2868 = vcvt.s32.f32 %v2804
    %v2869 = vcvt.s32.f32 %v2805
    %v2870 = vcvt.s32.f32 %v2806
    %v2871 = vcvt.s32.f32 %v2807
    %v2872 = vcvt.s32.f32 %v2808
    %v2873 = vcvt.s32.f32 %v2809
    %v2874 = vcvt.s32.f32 %v2810
    %v2875 = vcvt.s32.f32 %v2811
    %v2876 = vcvt.s32.f32 %v2812
    %v2877 = vcvt.s32.f32 %v2813
    %v2878 = vcvt.s32.f32 %v2814
    %v2879 = vcvt.s32.f32 %v2815
    %v2880 = vcvt.s32.f32 %v2816
    %v2881 = vcvt.s32.f32 %v2817
    %v2882 = vcvt.s32.f32 %v2818
    %v2883 = vcvt.s32.f32 %v2819
    %v2884 = vcvt.s32.f32 %v2820
    %v2885 = vcvt.s32.f32 %v2821
    %v2886 = vcvt.s32.f32 %v2822
    %v2887 = vcvt.s32.f32 %v2823
    %v2888 = vcvt.s32.f32 %v2824
    %v2889 = vcvt.s32.f32 %v2825
    %v2890 = vcvt.s32.f32 %v2826
    %v2891 = vcvt.s32.f32 %v2827
    %v2892 = vcvt.s32.f32 %v2828
    %v2893 = vcvt.s32.f32 %v2829
    %v2894 = vcvt.s32.f32 %v2830
    %v2895 = vcvt.s32.f32 %v2831
    %v2896 = vcvt.s32.f32 %v2832
    %v2897 = vcvt.s32.f32 %v2833
    %v2898 = vcvt.s32.f32 %v2834
    %v2899 = vcvt.s32.f32 %v2835
    %v2900 = vcvt.s32.f32 %v2836
    %v2901 = vcvt.s32.f32 %v2837
    %v2902 = vcvt.s32.f32 %v2838
    %v2903 = vcvt.s32.f32 %v2839
    %v2904 = vcvt.s32.f32 %v2840
    %v2905 = vcvt.s32.f32 %v2841
    %v2906 = vcvt.s32.f32 %v2842
    %v2907 = vcvt.s32.f32 %v2843
    %v2908 = vcvt.s32.f32 %v2844
    %v2909 = vcvt.s32.f32 %v2845
    %v2910 = vcvt.s32.f32 %v2846
    %v2911 = vpack.c.bf16 %v2848, %v2847
    %v2912 = vpack.c.bf16 %v2850, %v2849
    %v2913 = vpack.c.bf16 %v2852, %v2851
    %v2914 = vpack.c.bf16 %v2854, %v2853
    %v2915 = vpack.c.bf16 %v2856, %v2855
    %v2916 = vpack.c.bf16 %v2858, %v2857
    %v2917 = vpack.c.bf16 %v2860, %v2859
    %v2918 = vpack.c.bf16 %v2862, %v2861
    %v2919 = vpack.c.bf16 %v2864, %v2863
    %v2920 = vpack.c.bf16 %v2866, %v2865
    %v2921 = vpack.c.bf16 %v2868, %v2867
    %v2922 = vpack.c.bf16 %v2870, %v2869
    %v2923 = vpack.c.bf16 %v2872, %v2871
    %v2924 = vpack.c.bf16 %v2874, %v2873
    %v2925 = vpack.c.bf16 %v2876, %v2875
    %v2926 = vpack.c.bf16 %v2878, %v2877
    %v2927 = vpack.c.bf16 %v2880, %v2879
    %v2928 = vpack.c.bf16 %v2882, %v2881
    %v2929 = vpack.c.bf16 %v2884, %v2883
    %v2930 = vpack.c.bf16 %v2886, %v2885
    %v2931 = vpack.c.bf16 %v2888, %v2887
    %v2932 = vpack.c.bf16 %v2890, %v2889
    %v2933 = vpack.c.bf16 %v2892, %v2891
    %v2934 = vpack.c.bf16 %v2894, %v2893
    %v2935 = vpack.c.bf16 %v2896, %v2895
    %v2936 = vpack.c.bf16 %v2898, %v2897
    %v2937 = vpack.c.bf16 %v2900, %v2899
    %v2938 = vpack.c.bf16 %v2902, %v2901
    %v2939 = vpack.c.bf16 %v2904, %v2903
    %v2940 = vpack.c.bf16 %v2906, %v2905
    %v2941 = vpack.c.bf16 %v2908, %v2907
    %v2942 = vpack.c.bf16 %v2910, %v2909
    %v2944 = vsel %vm535, %v2911, 0
    %v2947 = vsel %vm535, %v2912, 0
    %v2950 = vsel %vm535, %v2913, 0
    %v2953 = vsel %vm535, %v2914, 0
    %v2956 = vsel %vm535, %v2915, 0
    %v2959 = vsel %vm535, %v2916, 0
    %v2962 = vsel %vm535, %v2917, 0
    %v2965 = vsel %vm535, %v2918, 0
    %v2968 = vsel %vm535, %v2919, 0
    %v2971 = vsel %vm535, %v2920, 0
    %v2974 = vsel %vm535, %v2921, 0
    %v2977 = vsel %vm535, %v2922, 0
    %v2980 = vsel %vm535, %v2923, 0
    %v2983 = vsel %vm535, %v2924, 0
    %v2986 = vsel %vm535, %v2925, 0
    %v2989 = vsel %vm535, %v2926, 0
    %v2992 = vsel %vm535, %v2927, 0
    %v2995 = vsel %vm535, %v2928, 0
    %v2998 = vsel %vm535, %v2929, 0
    %v3001 = vsel %vm535, %v2930, 0
    %v3004 = vsel %vm535, %v2931, 0
    %v3007 = vsel %vm535, %v2932, 0
    %v3010 = vsel %vm535, %v2933, 0
    %v3013 = vsel %vm535, %v2934, 0
    %v3016 = vsel %vm535, %v2935, 0
    %v3019 = vsel %vm535, %v2936, 0
    %v3022 = vsel %vm535, %v2937, 0
    %v3025 = vsel %vm535, %v2938, 0
    %v3028 = vsel %vm535, %v2939, 0
    %v3031 = vsel %vm535, %v2940, 0
    %v3034 = vsel %vm535, %v2941, 0
    %v3037 = vsel %vm535, %v2942, 0
    %3039 = vmatprep.subr.bf16.mxu0 0
    %3040 = vmatpush1.bf16.msra.mxu0 0
    %3041 = vmatprep.subr.bf16.mxu0 0
    %3042 = vmatpush1.bf16.msra.mxu0 0
    %3043 = vmatprep.subr.bf16.mxu0 0
    %3044 = vmatpush1.bf16.msra.mxu0 0
    %3045 = vmatprep.subr.bf16.mxu0 0
    %3046 = vmatpush1.bf16.msra.mxu0 0
    %3047 = vmatprep.subr.bf16.mxu0 0
    %3048 = vmatpush1.bf16.msra.mxu0 %v634
    %3049 = vmatprep.subr.bf16.mxu0 0
    %3050 = vmatpush1.bf16.msra.mxu0 %v530
    %3051 = vmatprep.subr.bf16.mxu0 0
    %3052 = vmatpush1.bf16.msra.mxu0 %v529
    %3053 = vmatprep.subr.bf16.mxu0 0
    %3054 = vmatpush1.bf16.msra.mxu0 %v528
    %3055 = vmatprep.subr.bf16.mxu0 0
    %3056 = vmatpush2.bf16.msra.mxu0 0
    %3057 = vmatprep.subr.bf16.mxu0 0
    %3058 = vmatpush2.bf16.msra.mxu0 0
    %3059 = vmatprep.subr.bf16.mxu0 0
    %3060 = vmatpush2.bf16.msra.mxu0 0
    %3061 = vmatprep.subr.bf16.mxu0 0
    %3062 = vmatpush2.bf16.msra.mxu0 0
    %3063 = vmatprep.subr.bf16.mxu0 0
    %3064 = vmatpush2.bf16.msra.mxu0 0
    %3065 = vmatprep.subr.bf16.mxu0 0
    %3066 = vmatpush2.bf16.msra.mxu0 0
    %3067 = vmatprep.subr.bf16.mxu0 0
    %3068 = vmatpush2.bf16.msra.mxu0 0
    %3069 = vmatprep.subr.bf16.mxu0 0
    %3070 = vmatpush2.bf16.msra.mxu0 0
    %3071 = vmatprep.mubr.bf16.mxu0 0
    %3072 = vmatmul.mubr.bf16.gmra.mxu0 %v2944
    %v3073 = vpop.f32.mrf.mxu0
    %v3074 = vadd.f32 0.0, %v3073
    %v3075 = vpop.f32.mrf.mxu0
    %v3076 = vpop.f32.mrf.mxu0
    %v3077 = vadd.f32 0.0, %v3076
    %v3078 = vpop.f32.mrf.mxu0
    %3079 = vmatprep.mubr.bf16.mxu0 0
    %3080 = vmatmul.mubr.bf16.gmra.mxu0 %v2947
    %v3081 = vpop.f32.mrf.mxu0
    %v3082 = vadd.f32 0.0, %v3081
    %v3083 = vpop.f32.mrf.mxu0
    %v3084 = vpop.f32.mrf.mxu0
    %v3085 = vadd.f32 0.0, %v3084
    %v3086 = vpop.f32.mrf.mxu0
    %3087 = vmatprep.mubr.bf16.mxu0 0
    %3088 = vmatmul.mubr.bf16.gmra.mxu0 %v2950
    %v3089 = vpop.f32.mrf.mxu0
    %v3090 = vadd.f32 0.0, %v3089
    %v3091 = vpop.f32.mrf.mxu0
    %v3092 = vpop.f32.mrf.mxu0
    %v3093 = vadd.f32 0.0, %v3092
    %v3094 = vpop.f32.mrf.mxu0
    %3095 = vmatprep.mubr.bf16.mxu0 0
    %3096 = vmatmul.mubr.bf16.gmra.mxu0 %v2953
    %v3097 = vpop.f32.mrf.mxu0
    %v3098 = vadd.f32 0.0, %v3097
    %v3099 = vpop.f32.mrf.mxu0
    %v3100 = vpop.f32.mrf.mxu0
    %v3101 = vadd.f32 0.0, %v3100
    %v3102 = vpop.f32.mrf.mxu0
    %3103 = vmatprep.mubr.bf16.mxu0 0
    %3104 = vmatmul.mubr.bf16.gmra.mxu0 %v2956
    %v3105 = vpop.f32.mrf.mxu0
    %v3106 = vadd.f32 0.0, %v3105
    %v3107 = vpop.f32.mrf.mxu0
    %v3108 = vpop.f32.mrf.mxu0
    %v3109 = vadd.f32 0.0, %v3108
    %v3110 = vpop.f32.mrf.mxu0
    %3111 = vmatprep.mubr.bf16.mxu0 0
    %3112 = vmatmul.mubr.bf16.gmra.mxu0 %v2959
    %v3113 = vpop.f32.mrf.mxu0
    %v3114 = vadd.f32 0.0, %v3113
    %v3115 = vpop.f32.mrf.mxu0
    %v3116 = vpop.f32.mrf.mxu0
    %v3117 = vadd.f32 0.0, %v3116
    %v3118 = vpop.f32.mrf.mxu0
    %3119 = vmatprep.mubr.bf16.mxu0 0
    %3120 = vmatmul.mubr.bf16.gmra.mxu0 %v2962
    %v3121 = vpop.f32.mrf.mxu0
    %v3122 = vadd.f32 0.0, %v3121
    %v3123 = vpop.f32.mrf.mxu0
    %v3124 = vpop.f32.mrf.mxu0
    %v3125 = vadd.f32 0.0, %v3124
    %v3126 = vpop.f32.mrf.mxu0
    %3127 = vmatprep.mubr.bf16.mxu0 0
    %3128 = vmatmul.mubr.bf16.gmra.mxu0 %v2965
    %v3129 = vpop.f32.mrf.mxu0
    %v3130 = vadd.f32 0.0, %v3129
    %v3131 = vpop.f32.mrf.mxu0
    %v3132 = vpop.f32.mrf.mxu0
    %v3133 = vadd.f32 0.0, %v3132
    %v3134 = vpop.f32.mrf.mxu0
    %3135 = vmatprep.mubr.bf16.mxu0 0
    %3136 = vmatmul.mubr.bf16.gmra.mxu0 %v2968
    %v3137 = vpop.f32.mrf.mxu0
    %v3138 = vadd.f32 0.0, %v3137
    %v3139 = vpop.f32.mrf.mxu0
    %v3140 = vpop.f32.mrf.mxu0
    %v3141 = vadd.f32 0.0, %v3140
    %v3142 = vpop.f32.mrf.mxu0
    %3143 = vmatprep.mubr.bf16.mxu0 0
    %3144 = vmatmul.mubr.bf16.gmra.mxu0 %v2971
    %v3145 = vpop.f32.mrf.mxu0
    %v3146 = vadd.f32 0.0, %v3145
    %v3147 = vpop.f32.mrf.mxu0
    %v3148 = vpop.f32.mrf.mxu0
    %v3149 = vadd.f32 0.0, %v3148
    %v3150 = vpop.f32.mrf.mxu0
    %3151 = vmatprep.mubr.bf16.mxu0 0
    %3152 = vmatmul.mubr.bf16.gmra.mxu0 %v2974
    %v3153 = vpop.f32.mrf.mxu0
    %v3154 = vadd.f32 0.0, %v3153
    %v3155 = vpop.f32.mrf.mxu0
    %v3156 = vpop.f32.mrf.mxu0
    %v3157 = vadd.f32 0.0, %v3156
    %v3158 = vpop.f32.mrf.mxu0
    %3159 = vmatprep.mubr.bf16.mxu0 0
    %3160 = vmatmul.mubr.bf16.gmra.mxu0 %v2977
    %v3161 = vpop.f32.mrf.mxu0
    %v3162 = vadd.f32 0.0, %v3161
    %v3163 = vpop.f32.mrf.mxu0
    %v3164 = vpop.f32.mrf.mxu0
    %v3165 = vadd.f32 0.0, %v3164
    %v3166 = vpop.f32.mrf.mxu0
    %3167 = vmatprep.mubr.bf16.mxu0 0
    %3168 = vmatmul.mubr.bf16.gmra.mxu0 %v2980
    %v3169 = vpop.f32.mrf.mxu0
    %v3170 = vadd.f32 0.0, %v3169
    %v3171 = vpop.f32.mrf.mxu0
    %v3172 = vpop.f32.mrf.mxu0
    %v3173 = vadd.f32 0.0, %v3172
    %v3174 = vpop.f32.mrf.mxu0
    %3175 = vmatprep.mubr.bf16.mxu0 0
    %3176 = vmatmul.mubr.bf16.gmra.mxu0 %v2983
    %v3177 = vpop.f32.mrf.mxu0
    %v3178 = vadd.f32 0.0, %v3177
    %v3179 = vpop.f32.mrf.mxu0
    %v3180 = vpop.f32.mrf.mxu0
    %v3181 = vadd.f32 0.0, %v3180
    %v3182 = vpop.f32.mrf.mxu0
    %3183 = vmatprep.mubr.bf16.mxu0 0
    %3184 = vmatmul.mubr.bf16.gmra.mxu0 %v2986
    %v3185 = vpop.f32.mrf.mxu0
    %v3186 = vadd.f32 0.0, %v3185
    %v3187 = vpop.f32.mrf.mxu0
    %v3188 = vpop.f32.mrf.mxu0
    %v3189 = vadd.f32 0.0, %v3188
    %v3190 = vpop.f32.mrf.mxu0
    %3191 = vmatprep.mubr.bf16.mxu0 0
    %3192 = vmatmul.mubr.bf16.gmra.mxu0 %v2989
    %v3193 = vpop.f32.mrf.mxu0
    %v3194 = vadd.f32 0.0, %v3193
    %v3195 = vpop.f32.mrf.mxu0
    %v3196 = vpop.f32.mrf.mxu0
    %v3197 = vadd.f32 0.0, %v3196
    %v3198 = vpop.f32.mrf.mxu0
    %3199 = vmatprep.mubr.bf16.mxu0 0
    %3200 = vmatmul.mubr.bf16.gmra.mxu0 %v2992
    %v3201 = vpop.f32.mrf.mxu0
    %v3202 = vadd.f32 0.0, %v3201
    %v3203 = vpop.f32.mrf.mxu0
    %v3204 = vpop.f32.mrf.mxu0
    %v3205 = vadd.f32 0.0, %v3204
    %v3206 = vpop.f32.mrf.mxu0
    %3207 = vmatprep.mubr.bf16.mxu0 0
    %3208 = vmatmul.mubr.bf16.gmra.mxu0 %v2995
    %v3209 = vpop.f32.mrf.mxu0
    %v3210 = vadd.f32 0.0, %v3209
    %v3211 = vpop.f32.mrf.mxu0
    %v3212 = vpop.f32.mrf.mxu0
    %v3213 = vadd.f32 0.0, %v3212
    %v3214 = vpop.f32.mrf.mxu0
    %3215 = vmatprep.mubr.bf16.mxu0 0
    %3216 = vmatmul.mubr.bf16.gmra.mxu0 %v2998
    %v3217 = vpop.f32.mrf.mxu0
    %v3218 = vadd.f32 0.0, %v3217
    %v3219 = vpop.f32.mrf.mxu0
    %v3220 = vpop.f32.mrf.mxu0
    %v3221 = vadd.f32 0.0, %v3220
    %v3222 = vpop.f32.mrf.mxu0
    %3223 = vmatprep.mubr.bf16.mxu0 0
    %3224 = vmatmul.mubr.bf16.gmra.mxu0 %v3001
    %v3225 = vpop.f32.mrf.mxu0
    %v3226 = vadd.f32 0.0, %v3225
    %v3227 = vpop.f32.mrf.mxu0
    %v3228 = vpop.f32.mrf.mxu0
    %v3229 = vadd.f32 0.0, %v3228
    %v3230 = vpop.f32.mrf.mxu0
    %3231 = vmatprep.mubr.bf16.mxu0 0
    %3232 = vmatmul.mubr.bf16.gmra.mxu0 %v3004
    %v3233 = vpop.f32.mrf.mxu0
    %v3234 = vadd.f32 0.0, %v3233
    %v3235 = vpop.f32.mrf.mxu0
    %v3236 = vpop.f32.mrf.mxu0
    %v3237 = vadd.f32 0.0, %v3236
    %v3238 = vpop.f32.mrf.mxu0
    %3239 = vmatprep.mubr.bf16.mxu0 0
    %3240 = vmatmul.mubr.bf16.gmra.mxu0 %v3007
    %v3241 = vpop.f32.mrf.mxu0
    %v3242 = vadd.f32 0.0, %v3241
    %v3243 = vpop.f32.mrf.mxu0
    %v3244 = vpop.f32.mrf.mxu0
    %v3245 = vadd.f32 0.0, %v3244
    %v3246 = vpop.f32.mrf.mxu0
    %3247 = vmatprep.mubr.bf16.mxu0 0
    %3248 = vmatmul.mubr.bf16.gmra.mxu0 %v3010
    %v3249 = vpop.f32.mrf.mxu0
    %v3250 = vadd.f32 0.0, %v3249
    %v3251 = vpop.f32.mrf.mxu0
    %v3252 = vpop.f32.mrf.mxu0
    %v3253 = vadd.f32 0.0, %v3252
    %v3254 = vpop.f32.mrf.mxu0
    %3255 = vmatprep.mubr.bf16.mxu0 0
    %3256 = vmatmul.mubr.bf16.gmra.mxu0 %v3013
    %v3257 = vpop.f32.mrf.mxu0
    %v3258 = vadd.f32 0.0, %v3257
    %v3259 = vpop.f32.mrf.mxu0
    %v3260 = vpop.f32.mrf.mxu0
    %v3261 = vadd.f32 0.0, %v3260
    %v3262 = vpop.f32.mrf.mxu0
    %3263 = vmatprep.mubr.bf16.mxu0 0
    %3264 = vmatmul.mubr.bf16.gmra.mxu0 %v3016
    %v3265 = vpop.f32.mrf.mxu0
    %v3266 = vadd.f32 0.0, %v3265
    %v3267 = vpop.f32.mrf.mxu0
    %v3268 = vpop.f32.mrf.mxu0
    %v3269 = vadd.f32 0.0, %v3268
    %v3270 = vpop.f32.mrf.mxu0
    %3271 = vmatprep.mubr.bf16.mxu0 0
    %3272 = vmatmul.mubr.bf16.gmra.mxu0 %v3019
    %v3273 = vpop.f32.mrf.mxu0
    %v3274 = vadd.f32 0.0, %v3273
    %v3275 = vpop.f32.mrf.mxu0
    %v3276 = vpop.f32.mrf.mxu0
    %v3277 = vadd.f32 0.0, %v3276
    %v3278 = vpop.f32.mrf.mxu0
    %3279 = vmatprep.mubr.bf16.mxu0 0
    %3280 = vmatmul.mubr.bf16.gmra.mxu0 %v3022
    %v3281 = vpop.f32.mrf.mxu0
    %v3282 = vadd.f32 0.0, %v3281
    %v3283 = vpop.f32.mrf.mxu0
    %v3284 = vpop.f32.mrf.mxu0
    %v3285 = vadd.f32 0.0, %v3284
    %v3286 = vpop.f32.mrf.mxu0
    %3287 = vmatprep.mubr.bf16.mxu0 0
    %3288 = vmatmul.mubr.bf16.gmra.mxu0 %v3025
    %v3289 = vpop.f32.mrf.mxu0
    %v3290 = vadd.f32 0.0, %v3289
    %v3291 = vpop.f32.mrf.mxu0
    %v3292 = vpop.f32.mrf.mxu0
    %v3293 = vadd.f32 0.0, %v3292
    %v3294 = vpop.f32.mrf.mxu0
    %3295 = vmatprep.mubr.bf16.mxu0 0
    %3296 = vmatmul.mubr.bf16.gmra.mxu0 %v3028
    %v3297 = vpop.f32.mrf.mxu0
    %v3298 = vadd.f32 0.0, %v3297
    %v3299 = vpop.f32.mrf.mxu0
    %v3300 = vpop.f32.mrf.mxu0
    %v3301 = vadd.f32 0.0, %v3300
    %v3302 = vpop.f32.mrf.mxu0
    %3303 = vmatprep.mubr.bf16.mxu0 0
    %3304 = vmatmul.mubr.bf16.gmra.mxu0 %v3031
    %v3305 = vpop.f32.mrf.mxu0
    %v3306 = vadd.f32 0.0, %v3305
    %v3307 = vpop.f32.mrf.mxu0
    %v3308 = vpop.f32.mrf.mxu0
    %v3309 = vadd.f32 0.0, %v3308
    %v3310 = vpop.f32.mrf.mxu0
    %3311 = vmatprep.mubr.bf16.mxu0 0
    %3312 = vmatmul.mubr.bf16.gmra.mxu0 %v3034
    %v3313 = vpop.f32.mrf.mxu0
    %v3314 = vadd.f32 0.0, %v3313
    %v3315 = vpop.f32.mrf.mxu0
    %v3316 = vpop.f32.mrf.mxu0
    %v3317 = vadd.f32 0.0, %v3316
    %v3318 = vpop.f32.mrf.mxu0
    %3319 = vmatprep.mubr.bf16.mxu0 0
    %3320 = vmatmul.mubr.bf16.gmra.mxu0 %v3037
    %v3321 = vpop.f32.mrf.mxu0
    %v3322 = vadd.f32 0.0, %v3321
    %v3323 = vpop.f32.mrf.mxu0
    %v3324 = vpop.f32.mrf.mxu0
    %v3325 = vadd.f32 0.0, %v3324
    %v3326 = vpop.f32.mrf.mxu0
    %3327 = vdwg.mxu0
    %3392 = vrot.lane.b32.xlu0 %v1472, 16
    %v3393 = vpop.permute.xlu0 %3392
    %3394 = vrot.lane.b32.xlu0 %v1475, 16
    %v3395 = vpop.permute.xlu0 %3394
    %3396 = vrot.lane.b32.xlu0 %v1480, 16
    %v3397 = vpop.permute.xlu0 %3396
    %3398 = vrot.lane.b32.xlu0 %v1483, 16
    %v3399 = vpop.permute.xlu0 %3398
    %3400 = vrot.lane.b32.xlu0 %v1488, 16
    %v3401 = vpop.permute.xlu0 %3400
    %3402 = vrot.lane.b32.xlu0 %v1491, 16
    %v3403 = vpop.permute.xlu0 %3402
    %3404 = vrot.lane.b32.xlu0 %v1496, 16
    %v3405 = vpop.permute.xlu0 %3404
    %3406 = vrot.lane.b32.xlu0 %v1499, 16
    %v3407 = vpop.permute.xlu0 %3406
    %3408 = vrot.lane.b32.xlu0 %v1504, 16
    %v3409 = vpop.permute.xlu0 %3408
    %3410 = vrot.lane.b32.xlu0 %v1507, 16
    %v3411 = vpop.permute.xlu0 %3410
    %3412 = vrot.lane.b32.xlu0 %v1512, 16
    %v3413 = vpop.permute.xlu0 %3412
    %3414 = vrot.lane.b32.xlu0 %v1515, 16
    %v3415 = vpop.permute.xlu0 %3414
    %3416 = vrot.lane.b32.xlu0 %v1520, 16
    %v3417 = vpop.permute.xlu0 %3416
    %3418 = vrot.lane.b32.xlu0 %v1523, 16
    %v3419 = vpop.permute.xlu0 %3418
    %3420 = vrot.lane.b32.xlu0 %v1528, 16
    %v3421 = vpop.permute.xlu0 %3420
    %3422 = vrot.lane.b32.xlu0 %v1531, 16
    %v3423 = vpop.permute.xlu0 %3422
    %3424 = vrot.lane.b32.xlu0 %v1536, 16
    %v3425 = vpop.permute.xlu0 %3424
    %3426 = vrot.lane.b32.xlu0 %v1539, 16
    %v3427 = vpop.permute.xlu0 %3426
    %3428 = vrot.lane.b32.xlu0 %v1544, 16
    %v3429 = vpop.permute.xlu0 %3428
    %3430 = vrot.lane.b32.xlu0 %v1547, 16
    %v3431 = vpop.permute.xlu0 %3430
    %3432 = vrot.lane.b32.xlu0 %v1552, 16
    %v3433 = vpop.permute.xlu0 %3432
    %3434 = vrot.lane.b32.xlu0 %v1555, 16
    %v3435 = vpop.permute.xlu0 %3434
    %3436 = vrot.lane.b32.xlu0 %v1560, 16
    %v3437 = vpop.permute.xlu0 %3436
    %3438 = vrot.lane.b32.xlu0 %v1563, 16
    %v3439 = vpop.permute.xlu0 %3438
    %3440 = vrot.lane.b32.xlu0 %v1568, 16
    %v3441 = vpop.permute.xlu0 %3440
    %3442 = vrot.lane.b32.xlu0 %v1571, 16
    %v3443 = vpop.permute.xlu0 %3442
    %3444 = vrot.lane.b32.xlu0 %v1576, 16
    %v3445 = vpop.permute.xlu0 %3444
    %3446 = vrot.lane.b32.xlu0 %v1579, 16
    %v3447 = vpop.permute.xlu0 %3446
    %3448 = vrot.lane.b32.xlu0 %v1584, 16
    %v3449 = vpop.permute.xlu0 %3448
    %3450 = vrot.lane.b32.xlu0 %v1587, 16
    %v3451 = vpop.permute.xlu0 %3450
    %3452 = vrot.lane.b32.xlu0 %v1592, 16
    %v3453 = vpop.permute.xlu0 %3452
    %3454 = vrot.lane.b32.xlu0 %v1595, 16
    %v3455 = vpop.permute.xlu0 %3454
    %3456 = vrot.lane.b32.xlu0 %v1600, 16
    %v3457 = vpop.permute.xlu0 %3456
    %3458 = vrot.lane.b32.xlu0 %v1603, 16
    %v3459 = vpop.permute.xlu0 %3458
    %3460 = vrot.lane.b32.xlu0 %v1608, 16
    %v3461 = vpop.permute.xlu0 %3460
    %3462 = vrot.lane.b32.xlu0 %v1611, 16
    %v3463 = vpop.permute.xlu0 %3462
    %3464 = vrot.lane.b32.xlu0 %v1616, 16
    %v3465 = vpop.permute.xlu0 %3464
    %3466 = vrot.lane.b32.xlu0 %v1619, 16
    %v3467 = vpop.permute.xlu0 %3466
    %3468 = vrot.lane.b32.xlu0 %v1624, 16
    %v3469 = vpop.permute.xlu0 %3468
    %3470 = vrot.lane.b32.xlu0 %v1627, 16
    %v3471 = vpop.permute.xlu0 %3470
    %3472 = vrot.lane.b32.xlu0 %v1632, 16
    %v3473 = vpop.permute.xlu0 %3472
    %3474 = vrot.lane.b32.xlu0 %v1635, 16
    %v3475 = vpop.permute.xlu0 %3474
    %3476 = vrot.lane.b32.xlu0 %v1640, 16
    %v3477 = vpop.permute.xlu0 %3476
    %3478 = vrot.lane.b32.xlu0 %v1643, 16
    %v3479 = vpop.permute.xlu0 %3478
    %3480 = vrot.lane.b32.xlu0 %v1648, 16
    %v3481 = vpop.permute.xlu0 %3480
    %3482 = vrot.lane.b32.xlu0 %v1651, 16
    %v3483 = vpop.permute.xlu0 %3482
    %3484 = vrot.lane.b32.xlu0 %v1656, 16
    %v3485 = vpop.permute.xlu0 %3484
    %3486 = vrot.lane.b32.xlu0 %v1659, 16
    %v3487 = vpop.permute.xlu0 %3486
    %3488 = vrot.lane.b32.xlu0 %v1664, 16
    %v3489 = vpop.permute.xlu0 %3488
    %3490 = vrot.lane.b32.xlu0 %v1667, 16
    %v3491 = vpop.permute.xlu0 %3490
    %3492 = vrot.lane.b32.xlu0 %v1672, 16
    %v3493 = vpop.permute.xlu0 %3492
    %3494 = vrot.lane.b32.xlu0 %v1675, 16
    %v3495 = vpop.permute.xlu0 %3494
    %3496 = vrot.lane.b32.xlu0 %v1680, 16
    %v3497 = vpop.permute.xlu0 %3496
    %3498 = vrot.lane.b32.xlu0 %v1683, 16
    %v3499 = vpop.permute.xlu0 %3498
    %3500 = vrot.lane.b32.xlu0 %v1688, 16
    %v3501 = vpop.permute.xlu0 %3500
    %3502 = vrot.lane.b32.xlu0 %v1691, 16
    %v3503 = vpop.permute.xlu0 %3502
    %3504 = vrot.lane.b32.xlu0 %v1696, 16
    %v3505 = vpop.permute.xlu0 %3504
    %3506 = vrot.lane.b32.xlu0 %v1699, 16
    %v3507 = vpop.permute.xlu0 %3506
    %3508 = vrot.lane.b32.xlu0 %v1704, 16
    %v3509 = vpop.permute.xlu0 %3508
    %3510 = vrot.lane.b32.xlu0 %v1707, 16
    %v3511 = vpop.permute.xlu0 %3510
    %3512 = vrot.lane.b32.xlu0 %v1712, 16
    %v3513 = vpop.permute.xlu0 %3512
    %3514 = vrot.lane.b32.xlu0 %v1715, 16
    %v3515 = vpop.permute.xlu0 %3514
    %3516 = vrot.lane.b32.xlu0 %v1720, 16
    %v3517 = vpop.permute.xlu0 %3516
    %3518 = vrot.lane.b32.xlu0 %v1723, 16
    %v3519 = vpop.permute.xlu0 %3518
    %3648 = vrot.lane.b32.xlu0 %v2273, 32
    %v3649 = vpop.permute.xlu0 %3648
    %3650 = vrot.lane.b32.xlu0 %v2276, 32
    %v3651 = vpop.permute.xlu0 %3650
    %3652 = vrot.lane.b32.xlu0 %v2281, 32
    %v3653 = vpop.permute.xlu0 %3652
    %3654 = vrot.lane.b32.xlu0 %v2284, 32
    %v3655 = vpop.permute.xlu0 %3654
    %3656 = vrot.lane.b32.xlu0 %v2289, 32
    %v3657 = vpop.permute.xlu0 %3656
    %3658 = vrot.lane.b32.xlu0 %v2292, 32
    %v3659 = vpop.permute.xlu0 %3658
    %3660 = vrot.lane.b32.xlu0 %v2297, 32
    %v3661 = vpop.permute.xlu0 %3660
    %3662 = vrot.lane.b32.xlu0 %v2300, 32
    %v3663 = vpop.permute.xlu0 %3662
    %3664 = vrot.lane.b32.xlu0 %v2305, 32
    %v3665 = vpop.permute.xlu0 %3664
    %3666 = vrot.lane.b32.xlu0 %v2308, 32
    %v3667 = vpop.permute.xlu0 %3666
    %3668 = vrot.lane.b32.xlu0 %v2313, 32
    %v3669 = vpop.permute.xlu0 %3668
    %3670 = vrot.lane.b32.xlu0 %v2316, 32
    %v3671 = vpop.permute.xlu0 %3670
    %3672 = vrot.lane.b32.xlu0 %v2321, 32
    %v3673 = vpop.permute.xlu0 %3672
    %3674 = vrot.lane.b32.xlu0 %v2324, 32
    %v3675 = vpop.permute.xlu0 %3674
    %3676 = vrot.lane.b32.xlu0 %v2329, 32
    %v3677 = vpop.permute.xlu0 %3676
    %3678 = vrot.lane.b32.xlu0 %v2332, 32
    %v3679 = vpop.permute.xlu0 %3678
    %3680 = vrot.lane.b32.xlu0 %v2337, 32
    %v3681 = vpop.permute.xlu0 %3680
    %3682 = vrot.lane.b32.xlu0 %v2340, 32
    %v3683 = vpop.permute.xlu0 %3682
    %3684 = vrot.lane.b32.xlu0 %v2345, 32
    %v3685 = vpop.permute.xlu0 %3684
    %3686 = vrot.lane.b32.xlu0 %v2348, 32
    %v3687 = vpop.permute.xlu0 %3686
    %3688 = vrot.lane.b32.xlu0 %v2353, 32
    %v3689 = vpop.permute.xlu0 %3688
    %3690 = vrot.lane.b32.xlu0 %v2356, 32
    %v3691 = vpop.permute.xlu0 %3690
    %3692 = vrot.lane.b32.xlu0 %v2361, 32
    %v3693 = vpop.permute.xlu0 %3692
    %3694 = vrot.lane.b32.xlu0 %v2364, 32
    %v3695 = vpop.permute.xlu0 %3694
    %3696 = vrot.lane.b32.xlu0 %v2369, 32
    %v3697 = vpop.permute.xlu0 %3696
    %3698 = vrot.lane.b32.xlu0 %v2372, 32
    %v3699 = vpop.permute.xlu0 %3698
    %3700 = vrot.lane.b32.xlu0 %v2377, 32
    %v3701 = vpop.permute.xlu0 %3700
    %3702 = vrot.lane.b32.xlu0 %v2380, 32
    %v3703 = vpop.permute.xlu0 %3702
    %3704 = vrot.lane.b32.xlu0 %v2385, 32
    %v3705 = vpop.permute.xlu0 %3704
    %3706 = vrot.lane.b32.xlu0 %v2388, 32
    %v3707 = vpop.permute.xlu0 %3706
    %3708 = vrot.lane.b32.xlu0 %v2393, 32
    %v3709 = vpop.permute.xlu0 %3708
    %3710 = vrot.lane.b32.xlu0 %v2396, 32
    %v3711 = vpop.permute.xlu0 %3710
    %3712 = vrot.lane.b32.xlu0 %v2401, 32
    %v3713 = vpop.permute.xlu0 %3712
    %3714 = vrot.lane.b32.xlu0 %v2404, 32
    %v3715 = vpop.permute.xlu0 %3714
    %3716 = vrot.lane.b32.xlu0 %v2409, 32
    %v3717 = vpop.permute.xlu0 %3716
    %3718 = vrot.lane.b32.xlu0 %v2412, 32
    %v3719 = vpop.permute.xlu0 %3718
    %3720 = vrot.lane.b32.xlu0 %v2417, 32
    %v3721 = vpop.permute.xlu0 %3720
    %3722 = vrot.lane.b32.xlu0 %v2420, 32
    %v3723 = vpop.permute.xlu0 %3722
    %3724 = vrot.lane.b32.xlu0 %v2425, 32
    %v3725 = vpop.permute.xlu0 %3724
    %3726 = vrot.lane.b32.xlu0 %v2428, 32
    %v3727 = vpop.permute.xlu0 %3726
    %3728 = vrot.lane.b32.xlu0 %v2433, 32
    %v3729 = vpop.permute.xlu0 %3728
    %3730 = vrot.lane.b32.xlu0 %v2436, 32
    %v3731 = vpop.permute.xlu0 %3730
    %3732 = vrot.lane.b32.xlu0 %v2441, 32
    %v3733 = vpop.permute.xlu0 %3732
    %3734 = vrot.lane.b32.xlu0 %v2444, 32
    %v3735 = vpop.permute.xlu0 %3734
    %3736 = vrot.lane.b32.xlu0 %v2449, 32
    %v3737 = vpop.permute.xlu0 %3736
    %3738 = vrot.lane.b32.xlu0 %v2452, 32
    %v3739 = vpop.permute.xlu0 %3738
    %3740 = vrot.lane.b32.xlu0 %v2457, 32
    %v3741 = vpop.permute.xlu0 %3740
    %3742 = vrot.lane.b32.xlu0 %v2460, 32
    %v3743 = vpop.permute.xlu0 %3742
    %3744 = vrot.lane.b32.xlu0 %v2465, 32
    %v3745 = vpop.permute.xlu0 %3744
    %3746 = vrot.lane.b32.xlu0 %v2468, 32
    %v3747 = vpop.permute.xlu0 %3746
    %3748 = vrot.lane.b32.xlu0 %v2473, 32
    %v3749 = vpop.permute.xlu0 %3748
    %3750 = vrot.lane.b32.xlu0 %v2476, 32
    %v3751 = vpop.permute.xlu0 %3750
    %3752 = vrot.lane.b32.xlu0 %v2481, 32
    %v3753 = vpop.permute.xlu0 %3752
    %3754 = vrot.lane.b32.xlu0 %v2484, 32
    %v3755 = vpop.permute.xlu0 %3754
    %3756 = vrot.lane.b32.xlu0 %v2489, 32
    %v3757 = vpop.permute.xlu0 %3756
    %3758 = vrot.lane.b32.xlu0 %v2492, 32
    %v3759 = vpop.permute.xlu0 %3758
    %3760 = vrot.lane.b32.xlu0 %v2497, 32
    %v3761 = vpop.permute.xlu0 %3760
    %3762 = vrot.lane.b32.xlu0 %v2500, 32
    %v3763 = vpop.permute.xlu0 %3762
    %3764 = vrot.lane.b32.xlu0 %v2505, 32
    %v3765 = vpop.permute.xlu0 %3764
    %3766 = vrot.lane.b32.xlu0 %v2508, 32
    %v3767 = vpop.permute.xlu0 %3766
    %3768 = vrot.lane.b32.xlu0 %v2513, 32
    %v3769 = vpop.permute.xlu0 %3768
    %3770 = vrot.lane.b32.xlu0 %v2516, 32
    %v3771 = vpop.permute.xlu0 %3770
    %3772 = vrot.lane.b32.xlu0 %v2521, 32
    %v3773 = vpop.permute.xlu0 %3772
    %3774 = vrot.lane.b32.xlu0 %v2524, 32
    %v3775 = vpop.permute.xlu0 %3774
    %3904 = vrot.lane.b32.xlu0 %v3074, 48
    %v3905 = vpop.permute.xlu0 %3904
    %3906 = vrot.lane.b32.xlu0 %v3077, 48
    %v3907 = vpop.permute.xlu0 %3906
    %3908 = vrot.lane.b32.xlu0 %v3082, 48
    %v3909 = vpop.permute.xlu0 %3908
    %3910 = vrot.lane.b32.xlu0 %v3085, 48
    %v3911 = vpop.permute.xlu0 %3910
    %3912 = vrot.lane.b32.xlu0 %v3090, 48
    %v3913 = vpop.permute.xlu0 %3912
    %3914 = vrot.lane.b32.xlu0 %v3093, 48
    %v3915 = vpop.permute.xlu0 %3914
    %3916 = vrot.lane.b32.xlu0 %v3098, 48
    %v3917 = vpop.permute.xlu0 %3916
    %3918 = vrot.lane.b32.xlu0 %v3101, 48
    %v3919 = vpop.permute.xlu0 %3918
    %3920 = vrot.lane.b32.xlu0 %v3106, 48
    %v3921 = vpop.permute.xlu0 %3920
    %3922 = vrot.lane.b32.xlu0 %v3109, 48
    %v3923 = vpop.permute.xlu0 %3922
    %3924 = vrot.lane.b32.xlu0 %v3114, 48
    %v3925 = vpop.permute.xlu0 %3924
    %3926 = vrot.lane.b32.xlu0 %v3117, 48
    %v3927 = vpop.permute.xlu0 %3926
    %3928 = vrot.lane.b32.xlu0 %v3122, 48
    %v3929 = vpop.permute.xlu0 %3928
    %3930 = vrot.lane.b32.xlu0 %v3125, 48
    %v3931 = vpop.permute.xlu0 %3930
    %3932 = vrot.lane.b32.xlu0 %v3130, 48
    %v3933 = vpop.permute.xlu0 %3932
    %3934 = vrot.lane.b32.xlu0 %v3133, 48
    %v3935 = vpop.permute.xlu0 %3934
    %3936 = vrot.lane.b32.xlu0 %v3138, 48
    %v3937 = vpop.permute.xlu0 %3936
    %3938 = vrot.lane.b32.xlu0 %v3141, 48
    %v3939 = vpop.permute.xlu0 %3938
    %3940 = vrot.lane.b32.xlu0 %v3146, 48
    %v3941 = vpop.permute.xlu0 %3940
    %3942 = vrot.lane.b32.xlu0 %v3149, 48
    %v3943 = vpop.permute.xlu0 %3942
    %3944 = vrot.lane.b32.xlu0 %v3154, 48
    %v3945 = vpop.permute.xlu0 %3944
    %3946 = vrot.lane.b32.xlu0 %v3157, 48
    %v3947 = vpop.permute.xlu0 %3946
    %3948 = vrot.lane.b32.xlu0 %v3162, 48
    %v3949 = vpop.permute.xlu0 %3948
    %3950 = vrot.lane.b32.xlu0 %v3165, 48
    %v3951 = vpop.permute.xlu0 %3950
    %3952 = vrot.lane.b32.xlu0 %v3170, 48
    %v3953 = vpop.permute.xlu0 %3952
    %3954 = vrot.lane.b32.xlu0 %v3173, 48
    %v3955 = vpop.permute.xlu0 %3954
    %3956 = vrot.lane.b32.xlu0 %v3178, 48
    %v3957 = vpop.permute.xlu0 %3956
    %3958 = vrot.lane.b32.xlu0 %v3181, 48
    %v3959 = vpop.permute.xlu0 %3958
    %3960 = vrot.lane.b32.xlu0 %v3186, 48
    %v3961 = vpop.permute.xlu0 %3960
    %3962 = vrot.lane.b32.xlu0 %v3189, 48
    %v3963 = vpop.permute.xlu0 %3962
    %3964 = vrot.lane.b32.xlu0 %v3194, 48
    %v3965 = vpop.permute.xlu0 %3964
    %3966 = vrot.lane.b32.xlu0 %v3197, 48
    %v3967 = vpop.permute.xlu0 %3966
    %3968 = vrot.lane.b32.xlu0 %v3202, 48
    %v3969 = vpop.permute.xlu0 %3968
    %3970 = vrot.lane.b32.xlu0 %v3205, 48
    %v3971 = vpop.permute.xlu0 %3970
    %3972 = vrot.lane.b32.xlu0 %v3210, 48
    %v3973 = vpop.permute.xlu0 %3972
    %3974 = vrot.lane.b32.xlu0 %v3213, 48
    %v3975 = vpop.permute.xlu0 %3974
    %3976 = vrot.lane.b32.xlu0 %v3218, 48
    %v3977 = vpop.permute.xlu0 %3976
    %3978 = vrot.lane.b32.xlu0 %v3221, 48
    %v3979 = vpop.permute.xlu0 %3978
    %3980 = vrot.lane.b32.xlu0 %v3226, 48
    %v3981 = vpop.permute.xlu0 %3980
    %3982 = vrot.lane.b32.xlu0 %v3229, 48
    %v3983 = vpop.permute.xlu0 %3982
    %3984 = vrot.lane.b32.xlu0 %v3234, 48
    %v3985 = vpop.permute.xlu0 %3984
    %3986 = vrot.lane.b32.xlu0 %v3237, 48
    %v3987 = vpop.permute.xlu0 %3986
    %3988 = vrot.lane.b32.xlu0 %v3242, 48
    %v3989 = vpop.permute.xlu0 %3988
    %3990 = vrot.lane.b32.xlu0 %v3245, 48
    %v3991 = vpop.permute.xlu0 %3990
    %3992 = vrot.lane.b32.xlu0 %v3250, 48
    %v3993 = vpop.permute.xlu0 %3992
    %3994 = vrot.lane.b32.xlu0 %v3253, 48
    %v3995 = vpop.permute.xlu0 %3994
    %3996 = vrot.lane.b32.xlu0 %v3258, 48
    %v3997 = vpop.permute.xlu0 %3996
    %3998 = vrot.lane.b32.xlu0 %v3261, 48
    %v3999 = vpop.permute.xlu0 %3998
    %4000 = vrot.lane.b32.xlu0 %v3266, 48
    %v4001 = vpop.permute.xlu0 %4000
    %4002 = vrot.lane.b32.xlu0 %v3269, 48
    %v4003 = vpop.permute.xlu0 %4002
    %4004 = vrot.lane.b32.xlu0 %v3274, 48
    %v4005 = vpop.permute.xlu0 %4004
    %4006 = vrot.lane.b32.xlu0 %v3277, 48
    %v4007 = vpop.permute.xlu0 %4006
    %4008 = vrot.lane.b32.xlu0 %v3282, 48
    %v4009 = vpop.permute.xlu0 %4008
    %4010 = vrot.lane.b32.xlu0 %v3285, 48
    %v4011 = vpop.permute.xlu0 %4010
    %4012 = vrot.lane.b32.xlu0 %v3290, 48
    %v4013 = vpop.permute.xlu0 %4012
    %4014 = vrot.lane.b32.xlu0 %v3293, 48
    %v4015 = vpop.permute.xlu0 %4014
    %4016 = vrot.lane.b32.xlu0 %v3298, 48
    %v4017 = vpop.permute.xlu0 %4016
    %4018 = vrot.lane.b32.xlu0 %v3301, 48
    %v4019 = vpop.permute.xlu0 %4018
    %4020 = vrot.lane.b32.xlu0 %v3306, 48
    %v4021 = vpop.permute.xlu0 %4020
    %4022 = vrot.lane.b32.xlu0 %v3309, 48
    %v4023 = vpop.permute.xlu0 %4022
    %4024 = vrot.lane.b32.xlu0 %v3314, 48
    %v4025 = vpop.permute.xlu0 %4024
    %4026 = vrot.lane.b32.xlu0 %v3317, 48
    %v4027 = vpop.permute.xlu0 %4026
    %4028 = vrot.lane.b32.xlu0 %v3322, 48
    %v4029 = vpop.permute.xlu0 %4028
    %4030 = vrot.lane.b32.xlu0 %v3325, 48
    %v4031 = vpop.permute.xlu0 %4030
    %vm4096 = vcmask 130048
    %v4097 = vsel %vm4096, %v671, %v3393
    %v4098 = vsel %vm4096, %v674, %v3395
    %v4099 = vsel %vm4096, %v679, %v3397
    %v4100 = vsel %vm4096, %v682, %v3399
    %v4101 = vsel %vm4096, %v687, %v3401
    %v4102 = vsel %vm4096, %v690, %v3403
    %v4103 = vsel %vm4096, %v695, %v3405
    %v4104 = vsel %vm4096, %v698, %v3407
    %v4105 = vsel %vm4096, %v703, %v3409
    %v4106 = vsel %vm4096, %v706, %v3411
    %v4107 = vsel %vm4096, %v711, %v3413
    %v4108 = vsel %vm4096, %v714, %v3415
    %v4109 = vsel %vm4096, %v719, %v3417
    %v4110 = vsel %vm4096, %v722, %v3419
    %v4111 = vsel %vm4096, %v727, %v3421
    %v4112 = vsel %vm4096, %v730, %v3423
    %v4113 = vsel %vm4096, %v735, %v3425
    %v4114 = vsel %vm4096, %v738, %v3427
    %v4115 = vsel %vm4096, %v743, %v3429
    %v4116 = vsel %vm4096, %v746, %v3431
    %v4117 = vsel %vm4096, %v751, %v3433
    %v4118 = vsel %vm4096, %v754, %v3435
    %v4119 = vsel %vm4096, %v759, %v3437
    %v4120 = vsel %vm4096, %v762, %v3439
    %v4121 = vsel %vm4096, %v767, %v3441
    %v4122 = vsel %vm4096, %v770, %v3443
    %v4123 = vsel %vm4096, %v775, %v3445
    %v4124 = vsel %vm4096, %v778, %v3447
    %v4125 = vsel %vm4096, %v783, %v3449
    %v4126 = vsel %vm4096, %v786, %v3451
    %v4127 = vsel %vm4096, %v791, %v3453
    %v4128 = vsel %vm4096, %v794, %v3455
    %v4129 = vsel %vm4096, %v799, %v3457
    %v4130 = vsel %vm4096, %v802, %v3459
    %v4131 = vsel %vm4096, %v807, %v3461
    %v4132 = vsel %vm4096, %v810, %v3463
    %v4133 = vsel %vm4096, %v815, %v3465
    %v4134 = vsel %vm4096, %v818, %v3467
    %v4135 = vsel %vm4096, %v823, %v3469
    %v4136 = vsel %vm4096, %v826, %v3471
    %v4137 = vsel %vm4096, %v831, %v3473
    %v4138 = vsel %vm4096, %v834, %v3475
    %v4139 = vsel %vm4096, %v839, %v3477
    %v4140 = vsel %vm4096, %v842, %v3479
    %v4141 = vsel %vm4096, %v847, %v3481
    %v4142 = vsel %vm4096, %v850, %v3483
    %v4143 = vsel %vm4096, %v855, %v3485
    %v4144 = vsel %vm4096, %v858, %v3487
    %v4145 = vsel %vm4096, %v863, %v3489
    %v4146 = vsel %vm4096, %v866, %v3491
    %v4147 = vsel %vm4096, %v871, %v3493
    %v4148 = vsel %vm4096, %v874, %v3495
    %v4149 = vsel %vm4096, %v879, %v3497
    %v4150 = vsel %vm4096, %v882, %v3499
    %v4151 = vsel %vm4096, %v887, %v3501
    %v4152 = vsel %vm4096, %v890, %v3503
    %v4153 = vsel %vm4096, %v895, %v3505
    %v4154 = vsel %vm4096, %v898, %v3507
    %v4155 = vsel %vm4096, %v903, %v3509
    %v4156 = vsel %vm4096, %v906, %v3511
    %v4157 = vsel %vm4096, %v911, %v3513
    %v4158 = vsel %vm4096, %v914, %v3515
    %v4159 = vsel %vm4096, %v919, %v3517
    %v4160 = vsel %vm4096, %v922, %v3519
    %vm4161 = vcmask 261120
    %v4162 = vsel %vm4161, %v4097, %v3649
    %v4163 = vsel %vm4161, %v4098, %v3651
    %v4164 = vsel %vm4161, %v4099, %v3653
    %v4165 = vsel %vm4161, %v4100, %v3655
    %v4166 = vsel %vm4161, %v4101, %v3657
    %v4167 = vsel %vm4161, %v4102, %v3659
    %v4168 = vsel %vm4161, %v4103, %v3661
    %v4169 = vsel %vm4161, %v4104, %v3663
    %v4170 = vsel %vm4161, %v4105, %v3665
    %v4171 = vsel %vm4161, %v4106, %v3667
    %v4172 = vsel %vm4161, %v4107, %v3669
    %v4173 = vsel %vm4161, %v4108, %v3671
    %v4174 = vsel %vm4161, %v4109, %v3673
    %v4175 = vsel %vm4161, %v4110, %v3675
    %v4176 = vsel %vm4161, %v4111, %v3677
    %v4177 = vsel %vm4161, %v4112, %v3679
    %v4178 = vsel %vm4161, %v4113, %v3681
    %v4179 = vsel %vm4161, %v4114, %v3683
    %v4180 = vsel %vm4161, %v4115, %v3685
    %v4181 = vsel %vm4161, %v4116, %v3687
    %v4182 = vsel %vm4161, %v4117, %v3689
    %v4183 = vsel %vm4161, %v4118, %v3691
    %v4184 = vsel %vm4161, %v4119, %v3693
    %v4185 = vsel %vm4161, %v4120, %v3695
    %v4186 = vsel %vm4161, %v4121, %v3697
    %v4187 = vsel %vm4161, %v4122, %v3699
    %v4188 = vsel %vm4161, %v4123, %v3701
    %v4189 = vsel %vm4161, %v4124, %v3703
    %v4190 = vsel %vm4161, %v4125, %v3705
    %v4191 = vsel %vm4161, %v4126, %v3707
    %v4192 = vsel %vm4161, %v4127, %v3709
    %v4193 = vsel %vm4161, %v4128, %v3711
    %v4194 = vsel %vm4161, %v4129, %v3713
    %v4195 = vsel %vm4161, %v4130, %v3715
    %v4196 = vsel %vm4161, %v4131, %v3717
    %v4197 = vsel %vm4161, %v4132, %v3719
    %v4198 = vsel %vm4161, %v4133, %v3721
    %v4199 = vsel %vm4161, %v4134, %v3723
    %v4200 = vsel %vm4161, %v4135, %v3725
    %v4201 = vsel %vm4161, %v4136, %v3727
    %v4202 = vsel %vm4161, %v4137, %v3729
    %v4203 = vsel %vm4161, %v4138, %v3731
    %v4204 = vsel %vm4161, %v4139, %v3733
    %v4205 = vsel %vm4161, %v4140, %v3735
    %v4206 = vsel %vm4161, %v4141, %v3737
    %v4207 = vsel %vm4161, %v4142, %v3739
    %v4208 = vsel %vm4161, %v4143, %v3741
    %v4209 = vsel %vm4161, %v4144, %v3743
    %v4210 = vsel %vm4161, %v4145, %v3745
    %v4211 = vsel %vm4161, %v4146, %v3747
    %v4212 = vsel %vm4161, %v4147, %v3749
    %v4213 = vsel %vm4161, %v4148, %v3751
    %v4214 = vsel %vm4161, %v4149, %v3753
    %v4215 = vsel %vm4161, %v4150, %v3755
    %v4216 = vsel %vm4161, %v4151, %v3757
    %v4217 = vsel %vm4161, %v4152, %v3759
    %v4218 = vsel %vm4161, %v4153, %v3761
    %v4219 = vsel %vm4161, %v4154, %v3763
    %v4220 = vsel %vm4161, %v4155, %v3765
    %v4221 = vsel %vm4161, %v4156, %v3767
    %v4222 = vsel %vm4161, %v4157, %v3769
    %v4223 = vsel %vm4161, %v4158, %v3771
    %v4224 = vsel %vm4161, %v4159, %v3773
    %v4225 = vsel %vm4161, %v4160, %v3775
    %vm4226 = vcmask 392192
    %v4227 = vsel %vm4226, %v4162, %v3905
    %v4228 = vsel %vm4226, %v4163, %v3907
    %v4229 = vsel %vm4226, %v4164, %v3909
    %v4230 = vsel %vm4226, %v4165, %v3911
    %v4231 = vsel %vm4226, %v4166, %v3913
    %v4232 = vsel %vm4226, %v4167, %v3915
    %v4233 = vsel %vm4226, %v4168, %v3917
    %v4234 = vsel %vm4226, %v4169, %v3919
    %v4235 = vsel %vm4226, %v4170, %v3921
    %v4236 = vsel %vm4226, %v4171, %v3923
    %v4237 = vsel %vm4226, %v4172, %v3925
    %v4238 = vsel %vm4226, %v4173, %v3927
    %v4239 = vsel %vm4226, %v4174, %v3929
    %v4240 = vsel %vm4226, %v4175, %v3931
    %v4241 = vsel %vm4226, %v4176, %v3933
    %v4242 = vsel %vm4226, %v4177, %v3935
    %v4243 = vsel %vm4226, %v4178, %v3937
    %v4244 = vsel %vm4226, %v4179, %v3939
    %v4245 = vsel %vm4226, %v4180, %v3941
    %v4246 = vsel %vm4226, %v4181, %v3943
    %v4247 = vsel %vm4226, %v4182, %v3945
    %v4248 = vsel %vm4226, %v4183, %v3947
    %v4249 = vsel %vm4226, %v4184, %v3949
    %v4250 = vsel %vm4226, %v4185, %v3951
    %v4251 = vsel %vm4226, %v4186, %v3953
    %v4252 = vsel %vm4226, %v4187, %v3955
    %v4253 = vsel %vm4226, %v4188, %v3957
    %v4254 = vsel %vm4226, %v4189, %v3959
    %v4255 = vsel %vm4226, %v4190, %v3961
    %v4256 = vsel %vm4226, %v4191, %v3963
    %v4257 = vsel %vm4226, %v4192, %v3965
    %v4258 = vsel %vm4226, %v4193, %v3967
    %v4259 = vsel %vm4226, %v4194, %v3969
    %v4260 = vsel %vm4226, %v4195, %v3971
    %v4261 = vsel %vm4226, %v4196, %v3973
    %v4262 = vsel %vm4226, %v4197, %v3975
    %v4263 = vsel %vm4226, %v4198, %v3977
    %v4264 = vsel %vm4226, %v4199, %v3979
    %v4265 = vsel %vm4226, %v4200, %v3981
    %v4266 = vsel %vm4226, %v4201, %v3983
    %v4267 = vsel %vm4226, %v4202, %v3985
    %v4268 = vsel %vm4226, %v4203, %v3987
    %v4269 = vsel %vm4226, %v4204, %v3989
    %v4270 = vsel %vm4226, %v4205, %v3991
    %v4271 = vsel %vm4226, %v4206, %v3993
    %v4272 = vsel %vm4226, %v4207, %v3995
    %v4273 = vsel %vm4226, %v4208, %v3997
    %v4274 = vsel %vm4226, %v4209, %v3999
    %v4275 = vsel %vm4226, %v4210, %v4001
    %v4276 = vsel %vm4226, %v4211, %v4003
    %v4277 = vsel %vm4226, %v4212, %v4005
    %v4278 = vsel %vm4226, %v4213, %v4007
    %v4279 = vsel %vm4226, %v4214, %v4009
    %v4280 = vsel %vm4226, %v4215, %v4011
    %v4281 = vsel %vm4226, %v4216, %v4013
    %v4282 = vsel %vm4226, %v4217, %v4015
    %v4283 = vsel %vm4226, %v4218, %v4017
    %v4284 = vsel %vm4226, %v4219, %v4019
    %v4285 = vsel %vm4226, %v4220, %v4021
    %v4286 = vsel %vm4226, %v4221, %v4023
    %v4287 = vsel %vm4226, %v4222, %v4025
    %v4288 = vsel %vm4226, %v4223, %v4027
    %v4289 = vsel %vm4226, %v4224, %v4029
    %v4290 = vsel %vm4226, %v4225, %v4031
    %v4291 = vpack.c.bf16 %v4228, %v4227
    %v4292 = vpack.c.bf16 %v4230, %v4229
    %v4293 = vpack.c.bf16 %v4232, %v4231
    %v4294 = vpack.c.bf16 %v4234, %v4233
    %v4295 = vpack.c.bf16 %v4236, %v4235
    %v4296 = vpack.c.bf16 %v4238, %v4237
    %v4297 = vpack.c.bf16 %v4240, %v4239
    %v4298 = vpack.c.bf16 %v4242, %v4241
    %v4299 = vpack.c.bf16 %v4244, %v4243
    %v4300 = vpack.c.bf16 %v4246, %v4245
    %v4301 = vpack.c.bf16 %v4248, %v4247
    %v4302 = vpack.c.bf16 %v4250, %v4249
    %v4303 = vpack.c.bf16 %v4252, %v4251
    %v4304 = vpack.c.bf16 %v4254, %v4253
    %v4305 = vpack.c.bf16 %v4256, %v4255
    %v4306 = vpack.c.bf16 %v4258, %v4257
    %v4307 = vpack.c.bf16 %v4260, %v4259
    %v4308 = vpack.c.bf16 %v4262, %v4261
    %v4309 = vpack.c.bf16 %v4264, %v4263
    %v4310 = vpack.c.bf16 %v4266, %v4265
    %v4311 = vpack.c.bf16 %v4268, %v4267
    %v4312 = vpack.c.bf16 %v4270, %v4269
    %v4313 = vpack.c.bf16 %v4272, %v4271
    %v4314 = vpack.c.bf16 %v4274, %v4273
    %v4315 = vpack.c.bf16 %v4276, %v4275
    %v4316 = vpack.c.bf16 %v4278, %v4277
    %v4317 = vpack.c.bf16 %v4280, %v4279
    %v4318 = vpack.c.bf16 %v4282, %v4281
    %v4319 = vpack.c.bf16 %v4284, %v4283
    %v4320 = vpack.c.bf16 %v4286, %v4285
    %v4321 = vpack.c.bf16 %v4288, %v4287
    %v4322 = vpack.c.bf16 %v4290, %v4289
    %v4323 = vld [vmem:[%s2] sm:$0xf]
    %v4324 = vld [vmem:[%s2 + $0x4] sm:$0xf]
    %v4325 = vld [vmem:[%s2 + $0x8] sm:$0xf]
    %v4326 = vld [vmem:[%s2 + $0xc] sm:$0xf]
    %v4327 = vld [vmem:[%s2 + $0x10] sm:$0xf]
    %v4328 = vld [vmem:[%s2 + $0x14] sm:$0xf]
    %v4329 = vld [vmem:[%s2 + $0x18] sm:$0xf]
    %v4330 = vld [vmem:[%s2 + $0x1c] sm:$0xf]
    %v4331 = vld [vmem:[%s3] sm:$0x1]
    %v4333 = vlaneseq
    %v4334 = vshrl.u32 %v4333, 7
    %v4335 = vsub.s32 0, %v4334
    %v4336 = vrot.slane %v4331, %v4335
    %v4346 = vunpack.c.l.b16 %v4323
    %v4347 = vunpack.c.l.b16 %v4324
    %v4348 = vunpack.c.l.b16 %v4325
    %v4349 = vunpack.c.l.b16 %v4326
    %v4350 = vunpack.c.l.b16 %v4327
    %v4351 = vunpack.c.l.b16 %v4328
    %v4352 = vunpack.c.l.b16 %v4329
    %v4353 = vunpack.c.l.b16 %v4330
    %v4354 = vpack.c.b16 %v4347, %v4346
    %v4355 = vpack.c.b16 %v4349, %v4348
    %v4356 = vpack.c.b16 %v4351, %v4350
    %v4357 = vpack.c.b16 %v4353, %v4352
    %vm4362 = vcmask 523264
    %v4364 = vsel %vm4362, %v4291, 0
    %v4367 = vsel %vm4362, %v4292, 0
    %v4370 = vsel %vm4362, %v4293, 0
    %v4373 = vsel %vm4362, %v4294, 0
    %v4376 = vsel %vm4362, %v4295, 0
    %v4379 = vsel %vm4362, %v4296, 0
    %v4382 = vsel %vm4362, %v4297, 0
    %v4385 = vsel %vm4362, %v4298, 0
    %v4388 = vsel %vm4362, %v4299, 0
    %v4391 = vsel %vm4362, %v4300, 0
    %v4394 = vsel %vm4362, %v4301, 0
    %v4397 = vsel %vm4362, %v4302, 0
    %v4400 = vsel %vm4362, %v4303, 0
    %v4403 = vsel %vm4362, %v4304, 0
    %v4406 = vsel %vm4362, %v4305, 0
    %v4409 = vsel %vm4362, %v4306, 0
    %v4412 = vsel %vm4362, %v4307, 0
    %v4415 = vsel %vm4362, %v4308, 0
    %v4418 = vsel %vm4362, %v4309, 0
    %v4421 = vsel %vm4362, %v4310, 0
    %v4424 = vsel %vm4362, %v4311, 0
    %v4427 = vsel %vm4362, %v4312, 0
    %v4430 = vsel %vm4362, %v4313, 0
    %v4433 = vsel %vm4362, %v4314, 0
    %v4436 = vsel %vm4362, %v4315, 0
    %v4439 = vsel %vm4362, %v4316, 0
    %v4442 = vsel %vm4362, %v4317, 0
    %v4445 = vsel %vm4362, %v4318, 0
    %v4448 = vsel %vm4362, %v4319, 0
    %v4451 = vsel %vm4362, %v4320, 0
    %v4454 = vsel %vm4362, %v4321, 0
    %v4457 = vsel %vm4362, %v4322, 0
    %4459 = vmatprep.subr.bf16.mxu0 0
    %4460 = vmatpush1.bf16.msra.mxu0 0
    %4461 = vmatprep.subr.bf16.mxu0 0
    %4462 = vmatpush1.bf16.msra.mxu0 0
    %4463 = vmatprep.subr.bf16.mxu0 0
    %4464 = vmatpush1.bf16.msra.mxu0 0
    %4465 = vmatprep.subr.bf16.mxu0 0
    %4466 = vmatpush1.bf16.msra.mxu0 0
    %4467 = vmatprep.subr.bf16.mxu0 0
    %4468 = vmatpush1.bf16.msra.mxu0 %v4357
    %4469 = vmatprep.subr.bf16.mxu0 0
    %4470 = vmatpush1.bf16.msra.mxu0 %v4356
    %4471 = vmatprep.subr.bf16.mxu0 0
    %4472 = vmatpush1.bf16.msra.mxu0 %v4355
    %4473 = vmatprep.subr.bf16.mxu0 0
    %4474 = vmatpush1.bf16.msra.mxu0 %v4354
    %4475 = vmatprep.subr.bf16.mxu0 0
    %4476 = vmatpush2.bf16.msra.mxu0 0
    %4477 = vmatprep.subr.bf16.mxu0 0
    %4478 = vmatpush2.bf16.msra.mxu0 0
    %4479 = vmatprep.subr.bf16.mxu0 0
    %4480 = vmatpush2.bf16.msra.mxu0 0
    %4481 = vmatprep.subr.bf16.mxu0 0
    %4482 = vmatpush2.bf16.msra.mxu0 0
    %4483 = vmatprep.subr.bf16.mxu0 0
    %4484 = vmatpush2.bf16.msra.mxu0 0
    %4485 = vmatprep.subr.bf16.mxu0 0
    %4486 = vmatpush2.bf16.msra.mxu0 0
    %4487 = vmatprep.subr.bf16.mxu0 0
    %4488 = vmatpush2.bf16.msra.mxu0 0
    %4489 = vmatprep.subr.bf16.mxu0 0
    %4490 = vmatpush2.bf16.msra.mxu0 0
    %4491 = vmatprep.mubr.bf16.mxu0 0
    %4492 = vmatmul.mubr.bf16.gmra.mxu0 %v4364
    %v4493 = vpop.f32.mrf.mxu0
    %v4494 = vadd.f32 %v4336, %v4493
    %v4495 = vpop.f32.mrf.mxu0
    %v4496 = vpop.f32.mrf.mxu0
    %v4497 = vadd.f32 %v4336, %v4496
    %v4498 = vpop.f32.mrf.mxu0
    %4499 = vmatprep.mubr.bf16.mxu0 0
    %4500 = vmatmul.mubr.bf16.gmra.mxu0 %v4367
    %v4501 = vpop.f32.mrf.mxu0
    %v4502 = vadd.f32 %v4336, %v4501
    %v4503 = vpop.f32.mrf.mxu0
    %v4504 = vpop.f32.mrf.mxu0
    %v4505 = vadd.f32 %v4336, %v4504
    %v4506 = vpop.f32.mrf.mxu0
    %4507 = vmatprep.mubr.bf16.mxu0 0
    %4508 = vmatmul.mubr.bf16.gmra.mxu0 %v4370
    %v4509 = vpop.f32.mrf.mxu0
    %v4510 = vadd.f32 %v4336, %v4509
    %v4511 = vpop.f32.mrf.mxu0
    %v4512 = vpop.f32.mrf.mxu0
    %v4513 = vadd.f32 %v4336, %v4512
    %v4514 = vpop.f32.mrf.mxu0
    %4515 = vmatprep.mubr.bf16.mxu0 0
    %4516 = vmatmul.mubr.bf16.gmra.mxu0 %v4373
    %v4517 = vpop.f32.mrf.mxu0
    %v4518 = vadd.f32 %v4336, %v4517
    %v4519 = vpop.f32.mrf.mxu0
    %v4520 = vpop.f32.mrf.mxu0
    %v4521 = vadd.f32 %v4336, %v4520
    %v4522 = vpop.f32.mrf.mxu0
    %4523 = vmatprep.mubr.bf16.mxu0 0
    %4524 = vmatmul.mubr.bf16.gmra.mxu0 %v4376
    %v4525 = vpop.f32.mrf.mxu0
    %v4526 = vadd.f32 %v4336, %v4525
    %v4527 = vpop.f32.mrf.mxu0
    %v4528 = vpop.f32.mrf.mxu0
    %v4529 = vadd.f32 %v4336, %v4528
    %v4530 = vpop.f32.mrf.mxu0
    %4531 = vmatprep.mubr.bf16.mxu0 0
    %4532 = vmatmul.mubr.bf16.gmra.mxu0 %v4379
    %v4533 = vpop.f32.mrf.mxu0
    %v4534 = vadd.f32 %v4336, %v4533
    %v4535 = vpop.f32.mrf.mxu0
    %v4536 = vpop.f32.mrf.mxu0
    %v4537 = vadd.f32 %v4336, %v4536
    %v4538 = vpop.f32.mrf.mxu0
    %4539 = vmatprep.mubr.bf16.mxu0 0
    %4540 = vmatmul.mubr.bf16.gmra.mxu0 %v4382
    %v4541 = vpop.f32.mrf.mxu0
    %v4542 = vadd.f32 %v4336, %v4541
    %v4543 = vpop.f32.mrf.mxu0
    %v4544 = vpop.f32.mrf.mxu0
    %v4545 = vadd.f32 %v4336, %v4544
    %v4546 = vpop.f32.mrf.mxu0
    %4547 = vmatprep.mubr.bf16.mxu0 0
    %4548 = vmatmul.mubr.bf16.gmra.mxu0 %v4385
    %v4549 = vpop.f32.mrf.mxu0
    %v4550 = vadd.f32 %v4336, %v4549
    %v4551 = vpop.f32.mrf.mxu0
    %v4552 = vpop.f32.mrf.mxu0
    %v4553 = vadd.f32 %v4336, %v4552
    %v4554 = vpop.f32.mrf.mxu0
    %4555 = vmatprep.mubr.bf16.mxu0 0
    %4556 = vmatmul.mubr.bf16.gmra.mxu0 %v4388
    %v4557 = vpop.f32.mrf.mxu0
    %v4558 = vadd.f32 %v4336, %v4557
    %v4559 = vpop.f32.mrf.mxu0
    %v4560 = vpop.f32.mrf.mxu0
    %v4561 = vadd.f32 %v4336, %v4560
    %v4562 = vpop.f32.mrf.mxu0
    %4563 = vmatprep.mubr.bf16.mxu0 0
    %4564 = vmatmul.mubr.bf16.gmra.mxu0 %v4391
    %v4565 = vpop.f32.mrf.mxu0
    %v4566 = vadd.f32 %v4336, %v4565
    %v4567 = vpop.f32.mrf.mxu0
    %v4568 = vpop.f32.mrf.mxu0
    %v4569 = vadd.f32 %v4336, %v4568
    %v4570 = vpop.f32.mrf.mxu0
    %4571 = vmatprep.mubr.bf16.mxu0 0
    %4572 = vmatmul.mubr.bf16.gmra.mxu0 %v4394
    %v4573 = vpop.f32.mrf.mxu0
    %v4574 = vadd.f32 %v4336, %v4573
    %v4575 = vpop.f32.mrf.mxu0
    %v4576 = vpop.f32.mrf.mxu0
    %v4577 = vadd.f32 %v4336, %v4576
    %v4578 = vpop.f32.mrf.mxu0
    %4579 = vmatprep.mubr.bf16.mxu0 0
    %4580 = vmatmul.mubr.bf16.gmra.mxu0 %v4397
    %v4581 = vpop.f32.mrf.mxu0
    %v4582 = vadd.f32 %v4336, %v4581
    %v4583 = vpop.f32.mrf.mxu0
    %v4584 = vpop.f32.mrf.mxu0
    %v4585 = vadd.f32 %v4336, %v4584
    %v4586 = vpop.f32.mrf.mxu0
    %4587 = vmatprep.mubr.bf16.mxu0 0
    %4588 = vmatmul.mubr.bf16.gmra.mxu0 %v4400
    %v4589 = vpop.f32.mrf.mxu0
    %v4590 = vadd.f32 %v4336, %v4589
    %v4591 = vpop.f32.mrf.mxu0
    %v4592 = vpop.f32.mrf.mxu0
    %v4593 = vadd.f32 %v4336, %v4592
    %v4594 = vpop.f32.mrf.mxu0
    %4595 = vmatprep.mubr.bf16.mxu0 0
    %4596 = vmatmul.mubr.bf16.gmra.mxu0 %v4403
    %v4597 = vpop.f32.mrf.mxu0
    %v4598 = vadd.f32 %v4336, %v4597
    %v4599 = vpop.f32.mrf.mxu0
    %v4600 = vpop.f32.mrf.mxu0
    %v4601 = vadd.f32 %v4336, %v4600
    %v4602 = vpop.f32.mrf.mxu0
    %4603 = vmatprep.mubr.bf16.mxu0 0
    %4604 = vmatmul.mubr.bf16.gmra.mxu0 %v4406
    %v4605 = vpop.f32.mrf.mxu0
    %v4606 = vadd.f32 %v4336, %v4605
    %v4607 = vpop.f32.mrf.mxu0
    %v4608 = vpop.f32.mrf.mxu0
    %v4609 = vadd.f32 %v4336, %v4608
    %v4610 = vpop.f32.mrf.mxu0
    %4611 = vmatprep.mubr.bf16.mxu0 0
    %4612 = vmatmul.mubr.bf16.gmra.mxu0 %v4409
    %v4613 = vpop.f32.mrf.mxu0
    %v4614 = vadd.f32 %v4336, %v4613
    %v4615 = vpop.f32.mrf.mxu0
    %v4616 = vpop.f32.mrf.mxu0
    %v4617 = vadd.f32 %v4336, %v4616
    %v4618 = vpop.f32.mrf.mxu0
    %4619 = vmatprep.mubr.bf16.mxu0 0
    %4620 = vmatmul.mubr.bf16.gmra.mxu0 %v4412
    %v4621 = vpop.f32.mrf.mxu0
    %v4622 = vadd.f32 %v4336, %v4621
    %v4623 = vpop.f32.mrf.mxu0
    %v4624 = vpop.f32.mrf.mxu0
    %v4625 = vadd.f32 %v4336, %v4624
    %v4626 = vpop.f32.mrf.mxu0
    %4627 = vmatprep.mubr.bf16.mxu0 0
    %4628 = vmatmul.mubr.bf16.gmra.mxu0 %v4415
    %v4629 = vpop.f32.mrf.mxu0
    %v4630 = vadd.f32 %v4336, %v4629
    %v4631 = vpop.f32.mrf.mxu0
    %v4632 = vpop.f32.mrf.mxu0
    %v4633 = vadd.f32 %v4336, %v4632
    %v4634 = vpop.f32.mrf.mxu0
    %4635 = vmatprep.mubr.bf16.mxu0 0
    %4636 = vmatmul.mubr.bf16.gmra.mxu0 %v4418
    %v4637 = vpop.f32.mrf.mxu0
    %v4638 = vadd.f32 %v4336, %v4637
    %v4639 = vpop.f32.mrf.mxu0
    %v4640 = vpop.f32.mrf.mxu0
    %v4641 = vadd.f32 %v4336, %v4640
    %v4642 = vpop.f32.mrf.mxu0
    %4643 = vmatprep.mubr.bf16.mxu0 0
    %4644 = vmatmul.mubr.bf16.gmra.mxu0 %v4421
    %v4645 = vpop.f32.mrf.mxu0
    %v4646 = vadd.f32 %v4336, %v4645
    %v4647 = vpop.f32.mrf.mxu0
    %v4648 = vpop.f32.mrf.mxu0
    %v4649 = vadd.f32 %v4336, %v4648
    %v4650 = vpop.f32.mrf.mxu0
    %4651 = vmatprep.mubr.bf16.mxu0 0
    %4652 = vmatmul.mubr.bf16.gmra.mxu0 %v4424
    %v4653 = vpop.f32.mrf.mxu0
    %v4654 = vadd.f32 %v4336, %v4653
    %v4655 = vpop.f32.mrf.mxu0
    %v4656 = vpop.f32.mrf.mxu0
    %v4657 = vadd.f32 %v4336, %v4656
    %v4658 = vpop.f32.mrf.mxu0
    %4659 = vmatprep.mubr.bf16.mxu0 0
    %4660 = vmatmul.mubr.bf16.gmra.mxu0 %v4427
    %v4661 = vpop.f32.mrf.mxu0
    %v4662 = vadd.f32 %v4336, %v4661
    %v4663 = vpop.f32.mrf.mxu0
    %v4664 = vpop.f32.mrf.mxu0
    %v4665 = vadd.f32 %v4336, %v4664
    %v4666 = vpop.f32.mrf.mxu0
    %4667 = vmatprep.mubr.bf16.mxu0 0
    %4668 = vmatmul.mubr.bf16.gmra.mxu0 %v4430
    %v4669 = vpop.f32.mrf.mxu0
    %v4670 = vadd.f32 %v4336, %v4669
    %v4671 = vpop.f32.mrf.mxu0
    %v4672 = vpop.f32.mrf.mxu0
    %v4673 = vadd.f32 %v4336, %v4672
    %v4674 = vpop.f32.mrf.mxu0
    %4675 = vmatprep.mubr.bf16.mxu0 0
    %4676 = vmatmul.mubr.bf16.gmra.mxu0 %v4433
    %v4677 = vpop.f32.mrf.mxu0
    %v4678 = vadd.f32 %v4336, %v4677
    %v4679 = vpop.f32.mrf.mxu0
    %v4680 = vpop.f32.mrf.mxu0
    %v4681 = vadd.f32 %v4336, %v4680
    %v4682 = vpop.f32.mrf.mxu0
    %4683 = vmatprep.mubr.bf16.mxu0 0
    %4684 = vmatmul.mubr.bf16.gmra.mxu0 %v4436
    %v4685 = vpop.f32.mrf.mxu0
    %v4686 = vadd.f32 %v4336, %v4685
    %v4687 = vpop.f32.mrf.mxu0
    %v4688 = vpop.f32.mrf.mxu0
    %v4689 = vadd.f32 %v4336, %v4688
    %v4690 = vpop.f32.mrf.mxu0
    %4691 = vmatprep.mubr.bf16.mxu0 0
    %4692 = vmatmul.mubr.bf16.gmra.mxu0 %v4439
    %v4693 = vpop.f32.mrf.mxu0
    %v4694 = vadd.f32 %v4336, %v4693
    %v4695 = vpop.f32.mrf.mxu0
    %v4696 = vpop.f32.mrf.mxu0
    %v4697 = vadd.f32 %v4336, %v4696
    %v4698 = vpop.f32.mrf.mxu0
    %4699 = vmatprep.mubr.bf16.mxu0 0
    %4700 = vmatmul.mubr.bf16.gmra.mxu0 %v4442
    %v4701 = vpop.f32.mrf.mxu0
    %v4702 = vadd.f32 %v4336, %v4701
    %v4703 = vpop.f32.mrf.mxu0
    %v4704 = vpop.f32.mrf.mxu0
    %v4705 = vadd.f32 %v4336, %v4704
    %v4706 = vpop.f32.mrf.mxu0
    %4707 = vmatprep.mubr.bf16.mxu0 0
    %4708 = vmatmul.mubr.bf16.gmra.mxu0 %v4445
    %v4709 = vpop.f32.mrf.mxu0
    %v4710 = vadd.f32 %v4336, %v4709
    %v4711 = vpop.f32.mrf.mxu0
    %v4712 = vpop.f32.mrf.mxu0
    %v4713 = vadd.f32 %v4336, %v4712
    %v4714 = vpop.f32.mrf.mxu0
    %4715 = vmatprep.mubr.bf16.mxu0 0
    %4716 = vmatmul.mubr.bf16.gmra.mxu0 %v4448
    %v4717 = vpop.f32.mrf.mxu0
    %v4718 = vadd.f32 %v4336, %v4717
    %v4719 = vpop.f32.mrf.mxu0
    %v4720 = vpop.f32.mrf.mxu0
    %v4721 = vadd.f32 %v4336, %v4720
    %v4722 = vpop.f32.mrf.mxu0
    %4723 = vmatprep.mubr.bf16.mxu0 0
    %4724 = vmatmul.mubr.bf16.gmra.mxu0 %v4451
    %v4725 = vpop.f32.mrf.mxu0
    %v4726 = vadd.f32 %v4336, %v4725
    %v4727 = vpop.f32.mrf.mxu0
    %v4728 = vpop.f32.mrf.mxu0
    %v4729 = vadd.f32 %v4336, %v4728
    %v4730 = vpop.f32.mrf.mxu0
    %4731 = vmatprep.mubr.bf16.mxu0 0
    %4732 = vmatmul.mubr.bf16.gmra.mxu0 %v4454
    %v4733 = vpop.f32.mrf.mxu0
    %v4734 = vadd.f32 %v4336, %v4733
    %v4735 = vpop.f32.mrf.mxu0
    %v4736 = vpop.f32.mrf.mxu0
    %v4737 = vadd.f32 %v4336, %v4736
    %v4738 = vpop.f32.mrf.mxu0
    %4739 = vmatprep.mubr.bf16.mxu0 0
    %4740 = vmatmul.mubr.bf16.gmra.mxu0 %v4457
    %v4741 = vpop.f32.mrf.mxu0
    %v4742 = vadd.f32 %v4336, %v4741
    %v4743 = vpop.f32.mrf.mxu0
    %v4744 = vpop.f32.mrf.mxu0
    %v4745 = vadd.f32 %v4336, %v4744
    %v4746 = vpop.f32.mrf.mxu0
    %4747 = vdwg.mxu0
    %v4748 = vmax.f32 %v4494, 0.0
    %v4749 = vmax.f32 %v4497, 0.0
    %v4750 = vmax.f32 %v4502, 0.0
    %v4751 = vmax.f32 %v4505, 0.0
    %v4752 = vmax.f32 %v4510, 0.0
    %v4753 = vmax.f32 %v4513, 0.0
    %v4754 = vmax.f32 %v4518, 0.0
    %v4755 = vmax.f32 %v4521, 0.0
    %v4756 = vmax.f32 %v4526, 0.0
    %v4757 = vmax.f32 %v4529, 0.0
    %v4758 = vmax.f32 %v4534, 0.0
    %v4759 = vmax.f32 %v4537, 0.0
    %v4760 = vmax.f32 %v4542, 0.0
    %v4761 = vmax.f32 %v4545, 0.0
    %v4762 = vmax.f32 %v4550, 0.0
    %v4763 = vmax.f32 %v4553, 0.0
    %v4764 = vmax.f32 %v4558, 0.0
    %v4765 = vmax.f32 %v4561, 0.0
    %v4766 = vmax.f32 %v4566, 0.0
    %v4767 = vmax.f32 %v4569, 0.0
    %v4768 = vmax.f32 %v4574, 0.0
    %v4769 = vmax.f32 %v4577, 0.0
    %v4770 = vmax.f32 %v4582, 0.0
    %v4771 = vmax.f32 %v4585, 0.0
    %v4772 = vmax.f32 %v4590, 0.0
    %v4773 = vmax.f32 %v4593, 0.0
    %v4774 = vmax.f32 %v4598, 0.0
    %v4775 = vmax.f32 %v4601, 0.0
    %v4776 = vmax.f32 %v4606, 0.0
    %v4777 = vmax.f32 %v4609, 0.0
    %v4778 = vmax.f32 %v4614, 0.0
    %v4779 = vmax.f32 %v4617, 0.0
    %v4780 = vmax.f32 %v4622, 0.0
    %v4781 = vmax.f32 %v4625, 0.0
    %v4782 = vmax.f32 %v4630, 0.0
    %v4783 = vmax.f32 %v4633, 0.0
    %v4784 = vmax.f32 %v4638, 0.0
    %v4785 = vmax.f32 %v4641, 0.0
    %v4786 = vmax.f32 %v4646, 0.0
    %v4787 = vmax.f32 %v4649, 0.0
    %v4788 = vmax.f32 %v4654, 0.0
    %v4789 = vmax.f32 %v4657, 0.0
    %v4790 = vmax.f32 %v4662, 0.0
    %v4791 = vmax.f32 %v4665, 0.0
    %v4792 = vmax.f32 %v4670, 0.0
    %v4793 = vmax.f32 %v4673, 0.0
    %v4794 = vmax.f32 %v4678, 0.0
    %v4795 = vmax.f32 %v4681, 0.0
    %v4796 = vmax.f32 %v4686, 0.0
    %v4797 = vmax.f32 %v4689, 0.0
    %v4798 = vmax.f32 %v4694, 0.0
    %v4799 = vmax.f32 %v4697, 0.0
    %v4800 = vmax.f32 %v4702, 0.0
    %v4801 = vmax.f32 %v4705, 0.0
    %v4802 = vmax.f32 %v4710, 0.0
    %v4803 = vmax.f32 %v4713, 0.0
    %v4804 = vmax.f32 %v4718, 0.0
    %v4805 = vmax.f32 %v4721, 0.0
    %v4806 = vmax.f32 %v4726, 0.0
    %v4807 = vmax.f32 %v4729, 0.0
    %v4808 = vmax.f32 %v4734, 0.0
    %v4809 = vmax.f32 %v4737, 0.0
    %v4810 = vmax.f32 %v4742, 0.0
    %v4811 = vmax.f32 %v4745, 0.0
    %v4812 = vpack.c.bf16 %v4749, %v4748
    %v4813 = vpack.c.bf16 %v4751, %v4750
    %v4814 = vpack.c.bf16 %v4753, %v4752
    %v4815 = vpack.c.bf16 %v4755, %v4754
    %v4816 = vpack.c.bf16 %v4757, %v4756
    %v4817 = vpack.c.bf16 %v4759, %v4758
    %v4818 = vpack.c.bf16 %v4761, %v4760
    %v4819 = vpack.c.bf16 %v4763, %v4762
    %v4820 = vpack.c.bf16 %v4765, %v4764
    %v4821 = vpack.c.bf16 %v4767, %v4766
    %v4822 = vpack.c.bf16 %v4769, %v4768
    %v4823 = vpack.c.bf16 %v4771, %v4770
    %v4824 = vpack.c.bf16 %v4773, %v4772
    %v4825 = vpack.c.bf16 %v4775, %v4774
    %v4826 = vpack.c.bf16 %v4777, %v4776
    %v4827 = vpack.c.bf16 %v4779, %v4778
    %v4828 = vpack.c.bf16 %v4781, %v4780
    %v4829 = vpack.c.bf16 %v4783, %v4782
    %v4830 = vpack.c.bf16 %v4785, %v4784
    %v4831 = vpack.c.bf16 %v4787, %v4786
    %v4832 = vpack.c.bf16 %v4789, %v4788
    %v4833 = vpack.c.bf16 %v4791, %v4790
    %v4834 = vpack.c.bf16 %v4793, %v4792
    %v4835 = vpack.c.bf16 %v4795, %v4794
    %v4836 = vpack.c.bf16 %v4797, %v4796
    %v4837 = vpack.c.bf16 %v4799, %v4798
    %v4838 = vpack.c.bf16 %v4801, %v4800
    %v4839 = vpack.c.bf16 %v4803, %v4802
    %v4840 = vpack.c.bf16 %v4805, %v4804
    %v4841 = vpack.c.bf16 %v4807, %v4806
    %v4842 = vpack.c.bf16 %v4809, %v4808
    %v4843 = vpack.c.bf16 %v4811, %v4810
    %v4844 = vld [vmem:[%s4] sm:$0xf]
    %v4845 = vld [vmem:[%s4 + $0x4] sm:$0xf]
    %v4846 = vld [vmem:[%s4 + $0x8] sm:$0xf]
    %v4847 = vld [vmem:[%s4 + $0xc] sm:$0xf]
    %v4848 = vld [vmem:[%s5] sm:$0x1]
    %v4850 = vlaneseq
    %v4851 = vshrl.u32 %v4850, 7
    %v4852 = vsub.s32 0, %v4851
    %v4853 = vrot.slane %v4848, %v4852
    %v4859 = vunpack.c.l.b16 %v4844
    %v4860 = vunpack.c.l.b16 %v4845
    %v4861 = vunpack.c.l.b16 %v4846
    %v4862 = vunpack.c.l.b16 %v4847
    %v4863 = vpack.c.b16 %v4860, %v4859
    %v4864 = vpack.c.b16 %v4862, %v4861
    %v4868 = vsel %vm4161, %v4812, 0
    %v4871 = vsel %vm4161, %v4813, 0
    %v4874 = vsel %vm4161, %v4814, 0
    %v4877 = vsel %vm4161, %v4815, 0
    %v4880 = vsel %vm4161, %v4816, 0
    %v4883 = vsel %vm4161, %v4817, 0
    %v4886 = vsel %vm4161, %v4818, 0
    %v4889 = vsel %vm4161, %v4819, 0
    %v4892 = vsel %vm4161, %v4820, 0
    %v4895 = vsel %vm4161, %v4821, 0
    %v4898 = vsel %vm4161, %v4822, 0
    %v4901 = vsel %vm4161, %v4823, 0
    %v4904 = vsel %vm4161, %v4824, 0
    %v4907 = vsel %vm4161, %v4825, 0
    %v4910 = vsel %vm4161, %v4826, 0
    %v4913 = vsel %vm4161, %v4827, 0
    %v4916 = vsel %vm4161, %v4828, 0
    %v4919 = vsel %vm4161, %v4829, 0
    %v4922 = vsel %vm4161, %v4830, 0
    %v4925 = vsel %vm4161, %v4831, 0
    %v4928 = vsel %vm4161, %v4832, 0
    %v4931 = vsel %vm4161, %v4833, 0
    %v4934 = vsel %vm4161, %v4834, 0
    %v4937 = vsel %vm4161, %v4835, 0
    %v4940 = vsel %vm4161, %v4836, 0
    %v4943 = vsel %vm4161, %v4837, 0
    %v4946 = vsel %vm4161, %v4838, 0
    %v4949 = vsel %vm4161, %v4839, 0
    %v4952 = vsel %vm4161, %v4840, 0
    %v4955 = vsel %vm4161, %v4841, 0
    %v4958 = vsel %vm4161, %v4842, 0
    %v4961 = vsel %vm4161, %v4843, 0
    %4963 = vmatprep.subr.bf16.mxu0 0
    %4964 = vmatpush1.bf16.msra.mxu0 0
    %4965 = vmatprep.subr.bf16.mxu0 0
    %4966 = vmatpush1.bf16.msra.mxu0 0
    %4967 = vmatprep.subr.bf16.mxu0 0
    %4968 = vmatpush1.bf16.msra.mxu0 0
    %4969 = vmatprep.subr.bf16.mxu0 0
    %4970 = vmatpush1.bf16.msra.mxu0 0
    %4971 = vmatprep.subr.bf16.mxu0 0
    %4972 = vmatpush1.bf16.msra.mxu0 0
    %4973 = vmatprep.subr.bf16.mxu0 0
    %4974 = vmatpush1.bf16.msra.mxu0 0
    %4975 = vmatprep.subr.bf16.mxu0 0
    %4976 = vmatpush1.bf16.msra.mxu0 %v4864
    %4977 = vmatprep.subr.bf16.mxu0 0
    %4978 = vmatpush1.bf16.msra.mxu0 %v4863
    %4979 = vmatprep.subr.bf16.mxu0 0
    %4980 = vmatpush2.bf16.msra.mxu0 0
    %4981 = vmatprep.subr.bf16.mxu0 0
    %4982 = vmatpush2.bf16.msra.mxu0 0
    %4983 = vmatprep.subr.bf16.mxu0 0
    %4984 = vmatpush2.bf16.msra.mxu0 0
    %4985 = vmatprep.subr.bf16.mxu0 0
    %4986 = vmatpush2.bf16.msra.mxu0 0
    %4987 = vmatprep.subr.bf16.mxu0 0
    %4988 = vmatpush2.bf16.msra.mxu0 0
    %4989 = vmatprep.subr.bf16.mxu0 0
    %4990 = vmatpush2.bf16.msra.mxu0 0
    %4991 = vmatprep.subr.bf16.mxu0 0
    %4992 = vmatpush2.bf16.msra.mxu0 0
    %4993 = vmatprep.subr.bf16.mxu0 0
    %4994 = vmatpush2.bf16.msra.mxu0 0
    %4995 = vmatprep.mubr.bf16.mxu0 0
    %4996 = vmatmul.mubr.bf16.gmra.mxu0 %v4868
    %v4997 = vpop.f32.mrf.mxu0
    %v4998 = vadd.f32 %v4853, %v4997
    %v4999 = vpop.f32.mrf.mxu0
    %v5000 = vpop.f32.mrf.mxu0
    %v5001 = vadd.f32 %v4853, %v5000
    %v5002 = vpop.f32.mrf.mxu0
    %5003 = vmatprep.mubr.bf16.mxu0 0
    %5004 = vmatmul.mubr.bf16.gmra.mxu0 %v4871
    %v5005 = vpop.f32.mrf.mxu0
    %v5006 = vadd.f32 %v4853, %v5005
    %v5007 = vpop.f32.mrf.mxu0
    %v5008 = vpop.f32.mrf.mxu0
    %v5009 = vadd.f32 %v4853, %v5008
    %v5010 = vpop.f32.mrf.mxu0
    %5011 = vmatprep.mubr.bf16.mxu0 0
    %5012 = vmatmul.mubr.bf16.gmra.mxu0 %v4874
    %v5013 = vpop.f32.mrf.mxu0
    %v5014 = vadd.f32 %v4853, %v5013
    %v5015 = vpop.f32.mrf.mxu0
    %v5016 = vpop.f32.mrf.mxu0
    %v5017 = vadd.f32 %v4853, %v5016
    %v5018 = vpop.f32.mrf.mxu0
    %5019 = vmatprep.mubr.bf16.mxu0 0
    %5020 = vmatmul.mubr.bf16.gmra.mxu0 %v4877
    %v5021 = vpop.f32.mrf.mxu0
    %v5022 = vadd.f32 %v4853, %v5021
    %v5023 = vpop.f32.mrf.mxu0
    %v5024 = vpop.f32.mrf.mxu0
    %v5025 = vadd.f32 %v4853, %v5024
    %v5026 = vpop.f32.mrf.mxu0
    %5027 = vmatprep.mubr.bf16.mxu0 0
    %5028 = vmatmul.mubr.bf16.gmra.mxu0 %v4880
    %v5029 = vpop.f32.mrf.mxu0
    %v5030 = vadd.f32 %v4853, %v5029
    %v5031 = vpop.f32.mrf.mxu0
    %v5032 = vpop.f32.mrf.mxu0
    %v5033 = vadd.f32 %v4853, %v5032
    %v5034 = vpop.f32.mrf.mxu0
    %5035 = vmatprep.mubr.bf16.mxu0 0
    %5036 = vmatmul.mubr.bf16.gmra.mxu0 %v4883
    %v5037 = vpop.f32.mrf.mxu0
    %v5038 = vadd.f32 %v4853, %v5037
    %v5039 = vpop.f32.mrf.mxu0
    %v5040 = vpop.f32.mrf.mxu0
    %v5041 = vadd.f32 %v4853, %v5040
    %v5042 = vpop.f32.mrf.mxu0
    %5043 = vmatprep.mubr.bf16.mxu0 0
    %5044 = vmatmul.mubr.bf16.gmra.mxu0 %v4886
    %v5045 = vpop.f32.mrf.mxu0
    %v5046 = vadd.f32 %v4853, %v5045
    %v5047 = vpop.f32.mrf.mxu0
    %v5048 = vpop.f32.mrf.mxu0
    %v5049 = vadd.f32 %v4853, %v5048
    %v5050 = vpop.f32.mrf.mxu0
    %5051 = vmatprep.mubr.bf16.mxu0 0
    %5052 = vmatmul.mubr.bf16.gmra.mxu0 %v4889
    %v5053 = vpop.f32.mrf.mxu0
    %v5054 = vadd.f32 %v4853, %v5053
    %v5055 = vpop.f32.mrf.mxu0
    %v5056 = vpop.f32.mrf.mxu0
    %v5057 = vadd.f32 %v4853, %v5056
    %v5058 = vpop.f32.mrf.mxu0
    %5059 = vmatprep.mubr.bf16.mxu0 0
    %5060 = vmatmul.mubr.bf16.gmra.mxu0 %v4892
    %v5061 = vpop.f32.mrf.mxu0
    %v5062 = vadd.f32 %v4853, %v5061
    %v5063 = vpop.f32.mrf.mxu0
    %v5064 = vpop.f32.mrf.mxu0
    %v5065 = vadd.f32 %v4853, %v5064
    %v5066 = vpop.f32.mrf.mxu0
    %5067 = vmatprep.mubr.bf16.mxu0 0
    %5068 = vmatmul.mubr.bf16.gmra.mxu0 %v4895
    %v5069 = vpop.f32.mrf.mxu0
    %v5070 = vadd.f32 %v4853, %v5069
    %v5071 = vpop.f32.mrf.mxu0
    %v5072 = vpop.f32.mrf.mxu0
    %v5073 = vadd.f32 %v4853, %v5072
    %v5074 = vpop.f32.mrf.mxu0
    %5075 = vmatprep.mubr.bf16.mxu0 0
    %5076 = vmatmul.mubr.bf16.gmra.mxu0 %v4898
    %v5077 = vpop.f32.mrf.mxu0
    %v5078 = vadd.f32 %v4853, %v5077
    %v5079 = vpop.f32.mrf.mxu0
    %v5080 = vpop.f32.mrf.mxu0
    %v5081 = vadd.f32 %v4853, %v5080
    %v5082 = vpop.f32.mrf.mxu0
    %5083 = vmatprep.mubr.bf16.mxu0 0
    %5084 = vmatmul.mubr.bf16.gmra.mxu0 %v4901
    %v5085 = vpop.f32.mrf.mxu0
    %v5086 = vadd.f32 %v4853, %v5085
    %v5087 = vpop.f32.mrf.mxu0
    %v5088 = vpop.f32.mrf.mxu0
    %v5089 = vadd.f32 %v4853, %v5088
    %v5090 = vpop.f32.mrf.mxu0
    %5091 = vmatprep.mubr.bf16.mxu0 0
    %5092 = vmatmul.mubr.bf16.gmra.mxu0 %v4904
    %v5093 = vpop.f32.mrf.mxu0
    %v5094 = vadd.f32 %v4853, %v5093
    %v5095 = vpop.f32.mrf.mxu0
    %v5096 = vpop.f32.mrf.mxu0
    %v5097 = vadd.f32 %v4853, %v5096
    %v5098 = vpop.f32.mrf.mxu0
    %5099 = vmatprep.mubr.bf16.mxu0 0
    %5100 = vmatmul.mubr.bf16.gmra.mxu0 %v4907
    %v5101 = vpop.f32.mrf.mxu0
    %v5102 = vadd.f32 %v4853, %v5101
    %v5103 = vpop.f32.mrf.mxu0
    %v5104 = vpop.f32.mrf.mxu0
    %v5105 = vadd.f32 %v4853, %v5104
    %v5106 = vpop.f32.mrf.mxu0
    %5107 = vmatprep.mubr.bf16.mxu0 0
    %5108 = vmatmul.mubr.bf16.gmra.mxu0 %v4910
    %v5109 = vpop.f32.mrf.mxu0
    %v5110 = vadd.f32 %v4853, %v5109
    %v5111 = vpop.f32.mrf.mxu0
    %v5112 = vpop.f32.mrf.mxu0
    %v5113 = vadd.f32 %v4853, %v5112
    %v5114 = vpop.f32.mrf.mxu0
    %5115 = vmatprep.mubr.bf16.mxu0 0
    %5116 = vmatmul.mubr.bf16.gmra.mxu0 %v4913
    %v5117 = vpop.f32.mrf.mxu0
    %v5118 = vadd.f32 %v4853, %v5117
    %v5119 = vpop.f32.mrf.mxu0
    %v5120 = vpop.f32.mrf.mxu0
    %v5121 = vadd.f32 %v4853, %v5120
    %v5122 = vpop.f32.mrf.mxu0
    %5123 = vmatprep.mubr.bf16.mxu0 0
    %5124 = vmatmul.mubr.bf16.gmra.mxu0 %v4916
    %v5125 = vpop.f32.mrf.mxu0
    %v5126 = vadd.f32 %v4853, %v5125
    %v5127 = vpop.f32.mrf.mxu0
    %v5128 = vpop.f32.mrf.mxu0
    %v5129 = vadd.f32 %v4853, %v5128
    %v5130 = vpop.f32.mrf.mxu0
    %5131 = vmatprep.mubr.bf16.mxu0 0
    %5132 = vmatmul.mubr.bf16.gmra.mxu0 %v4919
    %v5133 = vpop.f32.mrf.mxu0
    %v5134 = vadd.f32 %v4853, %v5133
    %v5135 = vpop.f32.mrf.mxu0
    %v5136 = vpop.f32.mrf.mxu0
    %v5137 = vadd.f32 %v4853, %v5136
    %v5138 = vpop.f32.mrf.mxu0
    %5139 = vmatprep.mubr.bf16.mxu0 0
    %5140 = vmatmul.mubr.bf16.gmra.mxu0 %v4922
    %v5141 = vpop.f32.mrf.mxu0
    %v5142 = vadd.f32 %v4853, %v5141
    %v5143 = vpop.f32.mrf.mxu0
    %v5144 = vpop.f32.mrf.mxu0
    %v5145 = vadd.f32 %v4853, %v5144
    %v5146 = vpop.f32.mrf.mxu0
    %5147 = vmatprep.mubr.bf16.mxu0 0
    %5148 = vmatmul.mubr.bf16.gmra.mxu0 %v4925
    %v5149 = vpop.f32.mrf.mxu0
    %v5150 = vadd.f32 %v4853, %v5149
    %v5151 = vpop.f32.mrf.mxu0
    %v5152 = vpop.f32.mrf.mxu0
    %v5153 = vadd.f32 %v4853, %v5152
    %v5154 = vpop.f32.mrf.mxu0
    %5155 = vmatprep.mubr.bf16.mxu0 0
    %5156 = vmatmul.mubr.bf16.gmra.mxu0 %v4928
    %v5157 = vpop.f32.mrf.mxu0
    %v5158 = vadd.f32 %v4853, %v5157
    %v5159 = vpop.f32.mrf.mxu0
    %v5160 = vpop.f32.mrf.mxu0
    %v5161 = vadd.f32 %v4853, %v5160
    %v5162 = vpop.f32.mrf.mxu0
    %5163 = vmatprep.mubr.bf16.mxu0 0
    %5164 = vmatmul.mubr.bf16.gmra.mxu0 %v4931
    %v5165 = vpop.f32.mrf.mxu0
    %v5166 = vadd.f32 %v4853, %v5165
    %v5167 = vpop.f32.mrf.mxu0
    %v5168 = vpop.f32.mrf.mxu0
    %v5169 = vadd.f32 %v4853, %v5168
    %v5170 = vpop.f32.mrf.mxu0
    %5171 = vmatprep.mubr.bf16.mxu0 0
    %5172 = vmatmul.mubr.bf16.gmra.mxu0 %v4934
    %v5173 = vpop.f32.mrf.mxu0
    %v5174 = vadd.f32 %v4853, %v5173
    %v5175 = vpop.f32.mrf.mxu0
    %v5176 = vpop.f32.mrf.mxu0
    %v5177 = vadd.f32 %v4853, %v5176
    %v5178 = vpop.f32.mrf.mxu0
    %5179 = vmatprep.mubr.bf16.mxu0 0
    %5180 = vmatmul.mubr.bf16.gmra.mxu0 %v4937
    %v5181 = vpop.f32.mrf.mxu0
    %v5182 = vadd.f32 %v4853, %v5181
    %v5183 = vpop.f32.mrf.mxu0
    %v5184 = vpop.f32.mrf.mxu0
    %v5185 = vadd.f32 %v4853, %v5184
    %v5186 = vpop.f32.mrf.mxu0
    %5187 = vmatprep.mubr.bf16.mxu0 0
    %5188 = vmatmul.mubr.bf16.gmra.mxu0 %v4940
    %v5189 = vpop.f32.mrf.mxu0
    %v5190 = vadd.f32 %v4853, %v5189
    %v5191 = vpop.f32.mrf.mxu0
    %v5192 = vpop.f32.mrf.mxu0
    %v5193 = vadd.f32 %v4853, %v5192
    %v5194 = vpop.f32.mrf.mxu0
    %5195 = vmatprep.mubr.bf16.mxu0 0
    %5196 = vmatmul.mubr.bf16.gmra.mxu0 %v4943
    %v5197 = vpop.f32.mrf.mxu0
    %v5198 = vadd.f32 %v4853, %v5197
    %v5199 = vpop.f32.mrf.mxu0
    %v5200 = vpop.f32.mrf.mxu0
    %v5201 = vadd.f32 %v4853, %v5200
    %v5202 = vpop.f32.mrf.mxu0
    %5203 = vmatprep.mubr.bf16.mxu0 0
    %5204 = vmatmul.mubr.bf16.gmra.mxu0 %v4946
    %v5205 = vpop.f32.mrf.mxu0
    %v5206 = vadd.f32 %v4853, %v5205
    %v5207 = vpop.f32.mrf.mxu0
    %v5208 = vpop.f32.mrf.mxu0
    %v5209 = vadd.f32 %v4853, %v5208
    %v5210 = vpop.f32.mrf.mxu0
    %5211 = vmatprep.mubr.bf16.mxu0 0
    %5212 = vmatmul.mubr.bf16.gmra.mxu0 %v4949
    %v5213 = vpop.f32.mrf.mxu0
    %v5214 = vadd.f32 %v4853, %v5213
    %v5215 = vpop.f32.mrf.mxu0
    %v5216 = vpop.f32.mrf.mxu0
    %v5217 = vadd.f32 %v4853, %v5216
    %v5218 = vpop.f32.mrf.mxu0
    %5219 = vmatprep.mubr.bf16.mxu0 0
    %5220 = vmatmul.mubr.bf16.gmra.mxu0 %v4952
    %v5221 = vpop.f32.mrf.mxu0
    %v5222 = vadd.f32 %v4853, %v5221
    %v5223 = vpop.f32.mrf.mxu0
    %v5224 = vpop.f32.mrf.mxu0
    %v5225 = vadd.f32 %v4853, %v5224
    %v5226 = vpop.f32.mrf.mxu0
    %5227 = vmatprep.mubr.bf16.mxu0 0
    %5228 = vmatmul.mubr.bf16.gmra.mxu0 %v4955
    %v5229 = vpop.f32.mrf.mxu0
    %v5230 = vadd.f32 %v4853, %v5229
    %v5231 = vpop.f32.mrf.mxu0
    %v5232 = vpop.f32.mrf.mxu0
    %v5233 = vadd.f32 %v4853, %v5232
    %v5234 = vpop.f32.mrf.mxu0
    %5235 = vmatprep.mubr.bf16.mxu0 0
    %5236 = vmatmul.mubr.bf16.gmra.mxu0 %v4958
    %v5237 = vpop.f32.mrf.mxu0
    %v5238 = vadd.f32 %v4853, %v5237
    %v5239 = vpop.f32.mrf.mxu0
    %v5240 = vpop.f32.mrf.mxu0
    %v5241 = vadd.f32 %v4853, %v5240
    %v5242 = vpop.f32.mrf.mxu0
    %5243 = vmatprep.mubr.bf16.mxu0 0
    %5244 = vmatmul.mubr.bf16.gmra.mxu0 %v4961
    %v5245 = vpop.f32.mrf.mxu0
    %v5246 = vadd.f32 %v4853, %v5245
    %v5247 = vpop.f32.mrf.mxu0
    %v5248 = vpop.f32.mrf.mxu0
    %v5249 = vadd.f32 %v4853, %v5248
    %v5250 = vpop.f32.mrf.mxu0
    %5251 = vdwg.mxu0
    %5252 = vst [vmem:[#allocation2] sm:$0xff] %v4998
    %5253 = vst [vmem:[#allocation2 + $0x8] sm:$0xff] %v5001
    %5254 = vst [vmem:[#allocation2 + $0x10] sm:$0xff] %v5006
    %5255 = vst [vmem:[#allocation2 + $0x18] sm:$0xff] %v5009
    %5256 = vst [vmem:[#allocation2 + $0x20] sm:$0xff] %v5014
    %5257 = vst [vmem:[#allocation2 + $0x28] sm:$0xff] %v5017
    %5258 = vst [vmem:[#allocation2 + $0x30] sm:$0xff] %v5022
    %5259 = vst [vmem:[#allocation2 + $0x38] sm:$0xff] %v5025
    %5260 = vst [vmem:[#allocation2 + $0x40] sm:$0xff] %v5030
    %5261 = vst [vmem:[#allocation2 + $0x48] sm:$0xff] %v5033
    %5262 = vst [vmem:[#allocation2 + $0x50] sm:$0xff] %v5038
    %5263 = vst [vmem:[#allocation2 + $0x58] sm:$0xff] %v5041
    %5264 = vst [vmem:[#allocation2 + $0x60] sm:$0xff] %v5046
    %5265 = vst [vmem:[#allocation2 + $0x68] sm:$0xff] %v5049
    %5266 = vst [vmem:[#allocation2 + $0x70] sm:$0xff] %v5054
    %5267 = vst [vmem:[#allocation2 + $0x78] sm:$0xff] %v5057
    %5268 = vst [vmem:[#allocation2 + $0x80] sm:$0xff] %v5062
    %5269 = vst [vmem:[#allocation2 + $0x88] sm:$0xff] %v5065
    %5270 = vst [vmem:[#allocation2 + $0x90] sm:$0xff] %v5070
    %5271 = vst [vmem:[#allocation2 + $0x98] sm:$0xff] %v5073
    %5272 = vst [vmem:[#allocation2 + $0xa0] sm:$0xff] %v5078
    %5273 = vst [vmem:[#allocation2 + $0xa8] sm:$0xff] %v5081
    %5274 = vst [vmem:[#allocation2 + $0xb0] sm:$0xff] %v5086
    %5275 = vst [vmem:[#allocation2 + $0xb8] sm:$0xff] %v5089
    %5276 = vst [vmem:[#allocation2 + $0xc0] sm:$0xff] %v5094
    %5277 = vst [vmem:[#allocation2 + $0xc8] sm:$0xff] %v5097
    %5278 = vst [vmem:[#allocation2 + $0xd0] sm:$0xff] %v5102
    %5279 = vst [vmem:[#allocation2 + $0xd8] sm:$0xff] %v5105
    %5280 = vst [vmem:[#allocation2 + $0xe0] sm:$0xff] %v5110
    %5281 = vst [vmem:[#allocation2 + $0xe8] sm:$0xff] %v5113
    %5282 = vst [vmem:[#allocation2 + $0xf0] sm:$0xff] %v5118
    %5283 = vst [vmem:[#allocation2 + $0xf8] sm:$0xff] %v5121
    %5284 = vst [vmem:[#allocation2 + $0x100] sm:$0xff] %v5126
    %5285 = vst [vmem:[#allocation2 + $0x108] sm:$0xff] %v5129
    %5286 = vst [vmem:[#allocation2 + $0x110] sm:$0xff] %v5134
    %5287 = vst [vmem:[#allocation2 + $0x118] sm:$0xff] %v5137
    %5288 = vst [vmem:[#allocation2 + $0x120] sm:$0xff] %v5142
    %5289 = vst [vmem:[#allocation2 + $0x128] sm:$0xff] %v5145
    %5290 = vst [vmem:[#allocation2 + $0x130] sm:$0xff] %v5150
    %5291 = vst [vmem:[#allocation2 + $0x138] sm:$0xff] %v5153
    %5292 = vst [vmem:[#allocation2 + $0x140] sm:$0xff] %v5158
    %5293 = vst [vmem:[#allocation2 + $0x148] sm:$0xff] %v5161
    %5294 = vst [vmem:[#allocation2 + $0x150] sm:$0xff] %v5166
    %5295 = vst [vmem:[#allocation2 + $0x158] sm:$0xff] %v5169
    %5296 = vst [vmem:[#allocation2 + $0x160] sm:$0xff] %v5174
    %5297 = vst [vmem:[#allocation2 + $0x168] sm:$0xff] %v5177
    %5298 = vst [vmem:[#allocation2 + $0x170] sm:$0xff] %v5182
    %5299 = vst [vmem:[#allocation2 + $0x178] sm:$0xff] %v5185
    %5300 = vst [vmem:[#allocation2 + $0x180] sm:$0xff] %v5190
    %5301 = vst [vmem:[#allocation2 + $0x188] sm:$0xff] %v5193
    %5302 = vst [vmem:[#allocation2 + $0x190] sm:$0xff] %v5198
    %5303 = vst [vmem:[#allocation2 + $0x198] sm:$0xff] %v5201
    %5304 = vst [vmem:[#allocation2 + $0x1a0] sm:$0xff] %v5206
    %5305 = vst [vmem:[#allocation2 + $0x1a8] sm:$0xff] %v5209
    %5306 = vst [vmem:[#allocation2 + $0x1b0] sm:$0xff] %v5214
    %5307 = vst [vmem:[#allocation2 + $0x1b8] sm:$0xff] %v5217
    %5308 = vst [vmem:[#allocation2 + $0x1c0] sm:$0xff] %v5222
    %5309 = vst [vmem:[#allocation2 + $0x1c8] sm:$0xff] %v5225
    %5310 = vst [vmem:[#allocation2 + $0x1d0] sm:$0xff] %v5230
    %5311 = vst [vmem:[#allocation2 + $0x1d8] sm:$0xff] %v5233
    %5312 = vst [vmem:[#allocation2 + $0x1e0] sm:$0xff] %v5238
    %5313 = vst [vmem:[#allocation2 + $0x1e8] sm:$0xff] %v5241
    %5314 = vst [vmem:[#allocation2 + $0x1f0] sm:$0xff] %v5246
    %5315 = vst [vmem:[#allocation2 + $0x1f8] sm:$0xff] %v5249
    // Predicated region
    $region26: #{tpu_custom_call.1} parent=1 // pred_check
      _
    $region27: #{tpu_custom_call.1} parent=1 // pred_check_branch
      %5317 = sbr.rel (0) target = $region29
    $region28: #{tpu_custom_call.1} parent=1 // pred_region
      %s5319 = ssub.s32 8192, 8192
      %5320 = vsyncadd [#allocation3], %s5319
      %s5321 = sshll.u32 [#allocation2], 4
      %s5322 = int_to_ptr.vmem [resolvable:$true] %s5321
      %5327 = dma.vmem_to_hbm [thread:$0]  %s5322, 8192, %s6, [#allocation3], 128, 128, 8
    $region29: #{tpu_custom_call.1} parent=1 // pred_fallthru
      _
    // Predicated region
    $region30: #{tpu_custom_call.1} parent=1 // pred_check
      _
    $region31: #{tpu_custom_call.1} parent=1 // pred_check_branch
      %5329 = sbr.rel (0) target = $region33
    $region32: #{tpu_custom_call.1} parent=1 // pred_region
      %5330 = dma.done [#allocation3], 8192
    $region33: #{tpu_custom_call.1} parent=1 // pred_fallthru
      _
    %5331 = vsyncpa [#allocation3], 1

</llo_original>
